<compile_context>
chip_gen: v7x
topology: tpu7x:2x2x1
jax: 0.10.0
libtpu: 0.0.40
codegen_flags: <defaults>
</compile_context>

<pallas_src>
import math
import jax
import jax.numpy as jnp
from jax.experimental import pallas as pl
from jax.experimental.pallas import tpu as pltpu

EMBEDDING_SIZE = 512
C_IN, C_STEM, C1, C2, C3, C_HEAD = 3, 16, 16, 32, 64, 192
SE_MID = 8


# -----------------------------------------------------------------------------
# plain-JAX glue: zero-pad + space-to-depth (turns stride-2 convs into stride-1)
# -----------------------------------------------------------------------------
def _pad_hw(x):
    return jnp.pad(x, ((0, 0), (1, 1), (1, 1), (0, 0)))


def _space_to_depth2(x):
    """NHWC (H, W even) -> (N, H//2, W//2, 4*C); channel order (dh, dw, c)."""
    N, H, W, C = x.shape
    x = x.reshape(N, H // 2, 2, W // 2, 2, C)
    x = x.transpose(0, 1, 3, 2, 4, 5)
    return x.reshape(N, H // 2, W // 2, 4 * C)


def _conv3_s2_to_s2d(w):
    """(3,3,Cin,Cout) stride-2 conv weight -> (4, 4*Cin, Cout) for a 2x2 stride-1
    conv over the space-to-depth input."""
    _, _, cin, cout = w.shape
    wp = jnp.pad(w, ((0, 1), (0, 1), (0, 0), (0, 0)))   # (4,4,Cin,Cout)
    wp = wp.reshape(2, 2, 2, 2, cin, cout)               # [dh, ah, dw, aw, c, co]
    wp = wp.transpose(0, 2, 1, 3, 4, 5)                  # [dh, dw, ah, aw, c, co]
    return wp.reshape(4, 4 * cin, cout)


# -----------------------------------------------------------------------------
# Pallas kernels (one image per grid step; grid=(N,), "parallel" for megacore)
# -----------------------------------------------------------------------------
def _stem_block1(xs, w_stem, b_stem, w_b1, b_b1):
    """Fused: stem 3x3/s2 conv (as s2d 2x2, taps K-concatenated) + bias + SiLU,
    block1 3x3/s1 conv (9 taps K-concatenated) + bias + SiLU + residual add.
    BN scales are pre-folded into the bf16 weights.
    xs: (N, OH+1, OW+1, 4*C_IN) bf16 -> (N, OH, OW, C_STEM) bf16."""
    N, Hs, Ws, C4 = xs.shape
    OH, OW = Hs - 1, Ws - 1
    C = w_stem.shape[-1]
    M = OH * OW

    def kernel(x_ref, ws_ref, bs_ref, w1_ref, b1_ref, o_ref, pad_ref):
        x = x_ref[0]                                          # bf16, no f32 upcast
        # --- stem: 2x2 taps concatenated along K -> single (M,48)@(48,16) matmul
        taps = [x[dh:dh + OH, dw:dw + OW, :].reshape(M, C4)
                for dh in range(2) for dw in range(2)]
        patch = jnp.concatenate(taps, axis=-1)                # (M, 4*C4) bf16
        stem = jnp.dot(patch, ws_ref[...], preferred_element_type=jnp.float32)
        stem = stem + bs_ref[...]
        stem = stem * jax.nn.sigmoid(stem)                    # SiLU (f32 epilogue)

        # zero-padded stem lives only in VMEM; zero the 1-px border only (interior
        # is fully overwritten each step), not the whole plane.
        pad_ref[0:1, :, :] = jnp.zeros((1, OW + 2, C), jnp.float32)
        pad_ref[OH + 1:OH + 2, :, :] = jnp.zeros((1, OW + 2, C), jnp.float32)
        pad_ref[:, 0:1, :] = jnp.zeros((OH + 2, 1, C), jnp.float32)
        pad_ref[:, OW + 1:OW + 2, :] = jnp.zeros((OH + 2, 1, C), jnp.float32)
        pad_ref[1:OH + 1, 1:OW + 1, :] = stem.reshape(OH, OW, C)

        # --- block1: 9 taps concatenated along K -> single (M,144)@(144,16) matmul
        taps1 = [pad_ref[kh:kh + OH, kw:kw + OW, :].reshape(M, C).astype(jnp.bfloat16)
                 for kh in range(3) for kw in range(3)]
        patch1 = jnp.concatenate(taps1, axis=-1)              # (M, 9*C) bf16
        y = jnp.dot(patch1, w1_ref[...], preferred_element_type=jnp.float32)
        y = y + b1_ref[...]
        y = y * jax.nn.sigmoid(y)
        out = stem + y                                         # fused residual add
        o_ref[0] = out.reshape(OH, OW, C).astype(jnp.bfloat16)

    return pl.pallas_call(
        kernel,
        out_shape=jax.ShapeDtypeStruct((N, OH, OW, C), jnp.bfloat16),
        grid=(N,),
        in_specs=[
            pl.BlockSpec((1, Hs, Ws, C4), lambda n: (n, 0, 0, 0)),
            pl.BlockSpec(w_stem.shape, lambda n: (0, 0)),
            pl.BlockSpec(b_stem.shape, lambda n: (0, 0)),
            pl.BlockSpec(w_b1.shape, lambda n: (0, 0)),
            pl.BlockSpec(b_b1.shape, lambda n: (0, 0)),
        ],
        out_specs=pl.BlockSpec((1, OH, OW, C), lambda n: (n, 0, 0, 0)),
        scratch_shapes=[pltpu.VMEM((OH + 2, OW + 2, C), jnp.float32)],
        compiler_params=pltpu.CompilerParams(dimension_semantics=("parallel",)),
    )(xs, w_stem, b_stem, w_b1, b_b1)


def _block2_block3(xs, w_exp, b_exp, w_pe, b_pe):
    """Fused: block2 3x3/s2 expand conv (as s2d 2x2, taps K-concatenated -> one
    (M,256)@(256,64) matmul) + bias + SiLU, then the FOLDED
    [block2 1x1 project(+BN)] @ [block3 1x1 expand(+BN)] single 64->128 matmul
    + bias + SiLU.  xs: (N, OH+1, OW+1, 4*C1) bf16 -> (N, OH, OW, 128) bf16."""
    N, Hs, Ws, C4 = xs.shape
    OH, OW = Hs - 1, Ws - 1
    M = OH * OW
    Cmid = w_exp.shape[-1]
    Cout = w_pe.shape[-1]

    def kernel(x_ref, we_ref, be_ref, wc_ref, bc_ref, o_ref):
        x = x_ref[0]                                           # bf16, no f32 upcast
        taps = [x[dh:dh + OH, dw:dw + OW, :].reshape(M, C4)
                for dh in range(2) for dw in range(2)]
        patch = jnp.concatenate(taps, axis=-1)                 # (M, 256) bf16
        h = jnp.dot(patch, we_ref[...], preferred_element_type=jnp.float32)
        h = h + be_ref[...]
        h = h * jax.nn.sigmoid(h)                              # fused-MBConv expand
        h3 = jnp.dot(h.astype(jnp.bfloat16), wc_ref[...],
                     preferred_element_type=jnp.float32) + bc_ref[...]
        h3 = h3 * jax.nn.sigmoid(h3)                           # folded project+expand
        o_ref[0] = h3.reshape(OH, OW, Cout).astype(jnp.bfloat16)

    return pl.pallas_call(
        kernel,
        out_shape=jax.ShapeDtypeStruct((N, OH, OW, Cout), jnp.bfloat16),
        grid=(N,),
        in_specs=[
            pl.BlockSpec((1, Hs, Ws, C4), lambda n: (n, 0, 0, 0)),
            pl.BlockSpec(w_exp.shape, lambda n: (0, 0)),
            pl.BlockSpec(b_exp.shape, lambda n: (0, 0)),
            pl.BlockSpec(w_pe.shape, lambda n: (0, 0)),
            pl.BlockSpec(b_pe.shape, lambda n: (0, 0)),
        ],
        out_specs=pl.BlockSpec((1, OH, OW, Cout), lambda n: (n, 0, 0, 0)),
        compiler_params=pltpu.CompilerParams(dimension_semantics=("parallel",)),
    )(xs, w_exp, b_exp, w_pe, b_pe)


def _dw_se_head_fc(xs, w_dw, b_dw, w_se1, b_se1, w_se2, b_se2, w_ph, b_ph, w_fc, b_fc):
    """Fully fused tail: depthwise 3x3/s2 conv (BN-folded weights) + SiLU,
    SE (global pool + 2 FCs + sigmoid gate), FOLDED [block3 1x1 project(+BN)] @
    [head 1x1 conv(+BN)] single 128->192 matmul + SiLU, global average pool,
    classifier Linear -> 512.
    xs: (N, OH+1, OW+1, 4*C) bf16 -> (N, 1, EMBEDDING_SIZE) f32 (lane-dense)."""
    N, Hs, Ws, C4 = xs.shape
    OH, OW = Hs - 1, Ws - 1
    C = C4 // 4
    HW = OH * OW
    E = w_fc.shape[-1]

    def kernel(x_ref, wd_ref, bd_ref, w1_ref, b1_ref, w2_ref, b2_ref,
               wp_ref, bp_ref, wf_ref, bf_ref, o_ref):
        x = x_ref[0]                                           # bf16 (Hs, Ws, 4*C)
        # depthwise 3x3/s2 on the s2d input: 9 VPU MAC taps, f32 accumulate
        # TODO(synk): on v6e/v7x the MAC could stay in bf16 (bf16 VALUs).
        acc = jnp.zeros((OH, OW, C), jnp.float32)
        for kh in range(3):
            for kw in range(3):
                dh, ah = divmod(kh, 2)
                dw, aw = divmod(kw, 2)
                blk = ah * 2 + aw                              # lane-aligned channel block
                patch = x[dh:dh + OH, dw:dw + OW, blk * C:(blk + 1) * C].astype(jnp.float32)
                acc = acc + patch * wd_ref[kh * 3 + kw]
        h = acc + bd_ref[...]
        h = h * jax.nn.sigmoid(h)                              # depthwise + BN + SiLU
        h = h.reshape(HW, C)                                   # consumer layout, in-VMEM

        s = jnp.mean(h, axis=0, keepdims=True)                 # SE squeeze (1, C)
        g = jnp.dot(s.astype(jnp.bfloat16), w1_ref[...],
                    preferred_element_type=jnp.float32) + b1_ref[...]
        g = g * jax.nn.sigmoid(g)                              # SiLU (1, SE_MID)
        g = jnp.dot(g.astype(jnp.bfloat16), w2_ref[...],
                    preferred_element_type=jnp.float32) + b2_ref[...]
        g = jax.nn.sigmoid(g)                                  # gate (1, C)
        hg = (h * g).astype(jnp.bfloat16)                      # fused SE excite

        q = jnp.dot(hg, wp_ref[...], preferred_element_type=jnp.float32) + bp_ref[...]
        q = q * jax.nn.sigmoid(q)                              # folded project+head + SiLU
        f = jnp.mean(q, axis=0, keepdims=True)                 # global average pool
        e = jnp.dot(f.astype(jnp.bfloat16), wf_ref[...],
                    preferred_element_type=jnp.float32) + bf_ref[...]
        o_ref[0] = e                                           # (1, E) f32, lane-dense

    return pl.pallas_call(
        kernel,
        out_shape=jax.ShapeDtypeStruct((N, 1, E), jnp.float32),
        grid=(N,),
        in_specs=[
            pl.BlockSpec((1, Hs, Ws, C4), lambda n: (n, 0, 0, 0)),
            pl.BlockSpec(w_dw.shape, lambda n: (0, 0, 0)),
            pl.BlockSpec(b_dw.shape, lambda n: (0, 0)),
            pl.BlockSpec(w_se1.shape, lambda n: (0, 0)),
            pl.BlockSpec(b_se1.shape, lambda n: (0, 0)),
            pl.BlockSpec(w_se2.shape, lambda n: (0, 0)),
            pl.BlockSpec(b_se2.shape, lambda n: (0, 0)),
            pl.BlockSpec(w_ph.shape, lambda n: (0, 0)),
            pl.BlockSpec(b_ph.shape, lambda n: (0, 0)),
            pl.BlockSpec(w_fc.shape, lambda n: (0, 0)),
            pl.BlockSpec(b_fc.shape, lambda n: (0, 0)),
        ],
        out_specs=pl.BlockSpec((1, 1, E), lambda n: (n, 0, 0)),
        compiler_params=pltpu.CompilerParams(dimension_semantics=("parallel",)),
    )(xs, w_dw, b_dw, w_se1, b_se1, w_se2, b_se2, w_ph, b_ph, w_fc, b_fc)


# -----------------------------------------------------------------------------
# model definition (synthetic, deterministic init) + parameter preparation
# -----------------------------------------------------------------------------
def init_params(key):
    keys = iter(jax.random.split(key, 64))

    def conv_w(kh, kw, cin, cout):
        return jax.random.normal(next(keys), (kh, kw, cin, cout), jnp.float32) / math.sqrt(kh * kw * cin)

    def bn(c):
        s = 1.0 + 0.01 * jax.random.normal(next(keys), (1, c), jnp.float32)
        b = 0.01 * jax.random.normal(next(keys), (1, c), jnp.float32)
        return s, b

    def lin(cin, cout):
        w = jax.random.normal(next(keys), (cin, cout), jnp.float32) / math.sqrt(cin)
        b = 0.01 * jax.random.normal(next(keys), (1, cout), jnp.float32)
        return w, b

    p = {}
    p["stem_w"] = conv_w(3, 3, C_IN, C_STEM); p["stem_s"], p["stem_b"] = bn(C_STEM)
    p["b1_w"] = conv_w(3, 3, C_STEM, C1); p["b1_s"], p["b1_b"] = bn(C1)
    p["b2_exp_w"] = conv_w(3, 3, C1, 4 * C1); p["b2_exp_s"], p["b2_exp_b"] = bn(4 * C1)
    p["b2_pw_w"] = conv_w(1, 1, 4 * C1, C2); p["b2_pw_s"], p["b2_pw_b"] = bn(C2)
    p["b3_exp_w"] = conv_w(1, 1, C2, 4 * C2); p["b3_exp_s"], p["b3_exp_b"] = bn(4 * C2)
    p["b3_dw_w"] = jax.random.normal(next(keys), (3, 3, 4 * C2), jnp.float32) / 3.0
    p["b3_dw_s"], p["b3_dw_b"] = bn(4 * C2)
    p["b3_se_w1"], p["b3_se_b1"] = lin(4 * C2, SE_MID)
    p["b3_se_w2"], p["b3_se_b2"] = lin(SE_MID, 4 * C2)
    p["b3_pw_w"] = conv_w(1, 1, 4 * C2, C3); p["b3_pw_s"], p["b3_pw_b"] = bn(C3)
    p["head_w"] = conv_w(1, 1, C3, C_HEAD); p["head_s"], p["head_b"] = bn(C_HEAD)
    p["fc_w"], p["fc_b"] = lin(C_HEAD, EMBEDDING_SIZE)
    return p


def prepare_params(p):
    """One-time weight layout transform: fold BN scales into conv weights, stack
    conv taps along K, fold the affine-only 1x1 pairs into single matmuls, and
    cast MXU operands to bf16 (biases stay f32)."""
    bf = jnp.bfloat16
    q = {}

    # stem 3x3/s2 -> s2d 2x2, BN scale folded, 4 taps stacked along K: (48, 16)
    ws = _conv3_s2_to_s2d(p["stem_w"]) * p["stem_s"][0][None, None, :]
    q["stem_w"] = ws.reshape(4 * 4 * C_IN, C_STEM).astype(bf)
    q["stem_b"] = p["stem_b"]

    # block1 3x3/s1, BN scale folded, 9 taps stacked along K: (144, 16)
    w1 = p["b1_w"].reshape(9, C_STEM, C1) * p["b1_s"][0][None, None, :]
    q["b1_w"] = w1.reshape(9 * C_STEM, C1).astype(bf)
    q["b1_b"] = p["b1_b"]

    # block2 expand 3x3/s2 -> s2d 2x2, BN scale folded, 4 taps stacked: (256, 64)
    we = _conv3_s2_to_s2d(p["b2_exp_w"]) * p["b2_exp_s"][0][None, None, :]
    q["b2_exp_w"] = we.reshape(4 * 4 * C1, 4 * C1).astype(bf)
    q["b2_exp_b"] = p["b2_exp_b"]

    # fold block2 1x1 project(+BN) with block3 1x1 expand(+BN): one (64,128) matmul
    wpw = p["b2_pw_w"].reshape(4 * C1, C2) * p["b2_pw_s"]          # (64, 32)
    we3 = p["b3_exp_w"].reshape(C2, 4 * C2) * p["b3_exp_s"]        # (32, 128)
    q["b2b3_w"] = (wpw @ we3).astype(bf)                           # (64, 128)
    q["b2b3_b"] = p["b2_pw_b"] @ we3 + p["b3_exp_b"]               # (1, 128) f32

    # depthwise 3x3/s2: BN scale folded into weight (elementwise VPU path, f32)
    wd = p["b3_dw_w"] * p["b3_dw_s"][0][None, None, :]
    q["b3_dw_w"] = wd.reshape(9, 1, 4 * C2)
    q["b3_dw_b"] = p["b3_dw_b"]

    # SE
    q["b3_se_w1"] = p["b3_se_w1"].astype(bf); q["b3_se_b1"] = p["b3_se_b1"]
    q["b3_se_w2"] = p["b3_se_w2"].astype(bf); q["b3_se_b2"] = p["b3_se_b2"]

    # fold block3 1x1 project(+BN) with head 1x1 conv(+BN): one (128,192) matmul
    wp3 = p["b3_pw_w"].reshape(4 * C2, C3) * p["b3_pw_s"]          # (128, 64)
    wh = p["head_w"].reshape(C3, C_HEAD) * p["head_s"]             # (64, 192)
    q["ph_w"] = (wp3 @ wh).astype(bf)                              # (128, 192)
    q["ph_b"] = p["b3_pw_b"] @ wh + p["head_b"]                    # (1, 192) f32

    # classifier Linear(num_features, 512)
    q["fc_w"] = p["fc_w"].astype(bf)
    q["fc_b"] = p["fc_b"]
    return q


def efficientnet_forward(params, x_nchw):
    p = params
    x = jnp.transpose(x_nchw, (0, 2, 3, 1)).astype(jnp.float32)    # NCHW -> NHWC
    N, H, W, _ = x.shape
    assert H % 8 == 0 and W % 8 == 0, "spatial dims must be divisible by 8"

    # stem 3x3/s2 + SiLU, then block1 fused-MBConv (3x3/s1 + SiLU + residual)
    xs = _space_to_depth2(_pad_hw(x)).astype(jnp.bfloat16)          # (N, H/2+1, W/2+1, 12)
    x = _stem_block1(xs, p["stem_w"], p["stem_b"], p["b1_w"], p["b1_b"])  # (N, H/2, W/2, 16)

    # block2 fused-MBConv (3x3/s2 expand + folded 1x1 project) + block3 1x1 expand
    # TODO(synk): emit padded s2d layout directly from the kernels to drop these
    # XLA-side pad + space-to-depth round trips.
    xs = _space_to_depth2(_pad_hw(x))                               # (N, H/4+1, W/4+1, 64)
    x = _block2_block3(xs, p["b2_exp_w"], p["b2_exp_b"],
                       p["b2b3_w"], p["b2b3_b"])                    # (N, H/4, W/4, 128)

    # depthwise 3x3/s2 + SE + folded project/head + global pool + Linear -> 512
    xs = _space_to_depth2(_pad_hw(x))                               # (N, H/8+1, W/8+1, 512)
    emb = _dw_se_head_fc(xs, p["b3_dw_w"], p["b3_dw_b"],
                         p["b3_se_w1"], p["b3_se_b1"], p["b3_se_w2"], p["b3_se_b2"],
                         p["ph_w"], p["ph_b"], p["fc_w"], p["fc_b"])
    return emb.reshape(N, EMBEDDING_SIZE)


if __name__ == "__main__":
    key = jax.random.PRNGKey(0)
    k_param, k_x = jax.random.split(key)
    params = prepare_params(init_params(k_param))
    x = jax.random.normal(k_x, (2, 3, 32, 32), jnp.float32)   # NCHW, like PyTorch
    fwd = jax.jit(efficientnet_forward)
    out = fwd(params, x)
    out = jax.block_until_ready(out)
    assert out.shape == (2, EMBEDDING_SIZE) and out.dtype == jnp.float32
    print("KERNEL_OK")
</pallas_src>

<mosaic_0001>
module attributes {stable_mosaic.version = 11 : i64} {
  func.func @kernel(%arg0: i32, %arg1: memref<1x17x17x12xbf16, #tpu.memory_space<vmem>>, %arg2: memref<48x16xbf16, #tpu.memory_space<vmem>>, %arg3: memref<1x16xf32, #tpu.memory_space<vmem>>, %arg4: memref<144x16xbf16, #tpu.memory_space<vmem>>, %arg5: memref<1x16xf32, #tpu.memory_space<vmem>>, %arg6: memref<1x16x16x16xbf16, #tpu.memory_space<vmem>>, %arg7: memref<18x18x16xf32, #tpu.memory_space<vmem>>) attributes {dimension_semantics = [#tpu.dimension_semantics<parallel>], iteration_bounds = array<i64: 2>, scalar_prefetch = 0 : i64, scratch_operands = 1 : i64, tpu.core_type = #tpu.core_type<tc>, window_params = [{transform_indices = @transform_0, window_bounds = array<i64: 1, 17, 17, 12>}, {pipeline_mode = #tpu.pipeline_mode<synchronous>, transform_indices = @transform_1, window_bounds = array<i64: 48, 16>}, {pipeline_mode = #tpu.pipeline_mode<synchronous>, transform_indices = @transform_2, window_bounds = array<i64: 1, 16>}, {pipeline_mode = #tpu.pipeline_mode<synchronous>, transform_indices = @transform_3, window_bounds = array<i64: 144, 16>}, {pipeline_mode = #tpu.pipeline_mode<synchronous>, transform_indices = @transform_4, window_bounds = array<i64: 1, 16>}, {transform_indices = @transform_5, window_bounds = array<i64: 1, 16, 16, 16>}]} {
    %c0 = arith.constant 0 : index
    %c0_0 = arith.constant 0 : index
    %c0_1 = arith.constant 0 : index
    %c0_2 = arith.constant 0 : index
    %0 = vector.load %arg1[%c0, %c0_0, %c0_1, %c0_2] : memref<1x17x17x12xbf16, #tpu.memory_space<vmem>>, vector<1x17x17x12xbf16>
    %1 = vector.shape_cast %0 : vector<1x17x17x12xbf16> to vector<17x17x12xbf16>
    %2 = vector.extract_strided_slice %1 {offsets = [0, 0, 0], sizes = [16, 16, 12], strides = [1, 1, 1]} : vector<17x17x12xbf16> to vector<16x16x12xbf16>
    %3 = vector.shape_cast %2 : vector<16x16x12xbf16> to vector<256x12xbf16>
    %4 = vector.extract_strided_slice %1 {offsets = [0, 1, 0], sizes = [16, 16, 12], strides = [1, 1, 1]} : vector<17x17x12xbf16> to vector<16x16x12xbf16>
    %5 = vector.shape_cast %4 : vector<16x16x12xbf16> to vector<256x12xbf16>
    %6 = vector.extract_strided_slice %1 {offsets = [1, 0, 0], sizes = [16, 16, 12], strides = [1, 1, 1]} : vector<17x17x12xbf16> to vector<16x16x12xbf16>
    %7 = vector.shape_cast %6 : vector<16x16x12xbf16> to vector<256x12xbf16>
    %8 = vector.extract_strided_slice %1 {offsets = [1, 1, 0], sizes = [16, 16, 12], strides = [1, 1, 1]} : vector<17x17x12xbf16> to vector<16x16x12xbf16>
    %9 = vector.shape_cast %8 : vector<16x16x12xbf16> to vector<256x12xbf16>
    %10 = tpu.concatenate %3, %5, %7, %9 in 1 : vector<256x12xbf16>, vector<256x12xbf16>, vector<256x12xbf16>, vector<256x12xbf16> -> vector<256x48xbf16>
    %c0_3 = arith.constant 0 : index
    %c0_4 = arith.constant 0 : index
    %11 = vector.load %arg2[%c0_3, %c0_4] : memref<48x16xbf16, #tpu.memory_space<vmem>>, vector<48x16xbf16>
    %cst = arith.constant dense<0.000000e+00> : vector<256x16xf32>
    %12 = tpu.matmul %10, %11, %cst {dimension_numbers = #tpu.dot_dimension_numbers<[1], [0], [0], [1], [0, 0, 1, 1], [], []>} : vector<256x48xbf16>, vector<48x16xbf16>, vector<256x16xf32> -> vector<256x16xf32>
    %c0_5 = arith.constant 0 : index
    %c0_6 = arith.constant 0 : index
    %13 = vector.load %arg3[%c0_5, %c0_6] : memref<1x16xf32, #tpu.memory_space<vmem>>, vector<1x16xf32>
    %14 = vector.broadcast %13 : vector<1x16xf32> to vector<256x16xf32>
    %15 = arith.addf %12, %14 : vector<256x16xf32>
    %16 = arith.negf %15 : vector<256x16xf32>
    %17 = math.exp %16 : vector<256x16xf32>
    %cst_7 = arith.constant 1.000000e+00 : f32
    %18 = vector.broadcast %cst_7 : f32 to vector<256x16xf32>
    %19 = arith.addf %18, %17 : vector<256x16xf32>
    %20 = arith.divf %18, %19 : vector<256x16xf32>
    %21 = arith.mulf %15, %20 : vector<256x16xf32>
    %cst_8 = arith.constant 0.000000e+00 : f32
    %22 = vector.broadcast %cst_8 : f32 to vector<1x18x16xf32>
    %c0_9 = arith.constant 0 : index
    %c0_10 = arith.constant 0 : index
    %c0_11 = arith.constant 0 : index
    %23 = vector.load %arg7[%c0_9, %c0_10, %c0_11] : memref<18x18x16xf32, #tpu.memory_space<vmem>>, vector<1x18x16xf32>
    tpu.vector_store %arg7[%c0_9, %c0_10, %c0_11], %22 {strides = array<i32>} : memref<18x18x16xf32, #tpu.memory_space<vmem>>, vector<1x18x16xf32>,
    %cst_12 = arith.constant 0.000000e+00 : f32
    %24 = vector.broadcast %cst_12 : f32 to vector<1x18x16xf32>
    %c17 = arith.constant 17 : index
    %c0_13 = arith.constant 0 : index
    %c0_14 = arith.constant 0 : index
    %25 = vector.load %arg7[%c17, %c0_13, %c0_14] : memref<18x18x16xf32, #tpu.memory_space<vmem>>, vector<1x18x16xf32>
    tpu.vector_store %arg7[%c17, %c0_13, %c0_14], %24 {strides = array<i32>} : memref<18x18x16xf32, #tpu.memory_space<vmem>>, vector<1x18x16xf32>,
    %cst_15 = arith.constant 0.000000e+00 : f32
    %26 = vector.broadcast %cst_15 : f32 to vector<18x1x16xf32>
    %c0_16 = arith.constant 0 : index
    %c0_17 = arith.constant 0 : index
    %c0_18 = arith.constant 0 : index
    %27 = vector.load %arg7[%c0_16, %c0_17, %c0_18] : memref<18x18x16xf32, #tpu.memory_space<vmem>>, vector<18x1x16xf32>
    tpu.vector_store %arg7[%c0_16, %c0_17, %c0_18], %26 {strides = array<i32>} : memref<18x18x16xf32, #tpu.memory_space<vmem>>, vector<18x1x16xf32>,
    %cst_19 = arith.constant 0.000000e+00 : f32
    %28 = vector.broadcast %cst_19 : f32 to vector<18x1x16xf32>
    %c0_20 = arith.constant 0 : index
    %c17_21 = arith.constant 17 : index
    %c0_22 = arith.constant 0 : index
    %29 = vector.load %arg7[%c0_20, %c17_21, %c0_22] : memref<18x18x16xf32, #tpu.memory_space<vmem>>, vector<18x1x16xf32>
    tpu.vector_store %arg7[%c0_20, %c17_21, %c0_22], %28 {strides = array<i32>} : memref<18x18x16xf32, #tpu.memory_space<vmem>>, vector<18x1x16xf32>,
    %30 = vector.shape_cast %21 : vector<256x16xf32> to vector<16x16x16xf32>
    %c1 = arith.constant 1 : index
    %c1_23 = arith.constant 1 : index
    %c0_24 = arith.constant 0 : index
    %31 = vector.load %arg7[%c1, %c1_23, %c0_24] : memref<18x18x16xf32, #tpu.memory_space<vmem>>, vector<16x16x16xf32>
    tpu.vector_store %arg7[%c1, %c1_23, %c0_24], %30 {strides = array<i32>} : memref<18x18x16xf32, #tpu.memory_space<vmem>>, vector<16x16x16xf32>,
    %c0_25 = arith.constant 0 : index
    %c0_26 = arith.constant 0 : index
    %c0_27 = arith.constant 0 : index
    %32 = vector.load %arg7[%c0_25, %c0_26, %c0_27] : memref<18x18x16xf32, #tpu.memory_space<vmem>>, vector<16x16x16xf32>
    %33 = vector.shape_cast %32 : vector<16x16x16xf32> to vector<256x16xf32>
    %34 = arith.truncf %33 : vector<256x16xf32> to vector<256x16xbf16>
    %c0_28 = arith.constant 0 : index
    %c1_29 = arith.constant 1 : index
    %c0_30 = arith.constant 0 : index
    %35 = vector.load %arg7[%c0_28, %c1_29, %c0_30] : memref<18x18x16xf32, #tpu.memory_space<vmem>>, vector<16x16x16xf32>
    %36 = vector.shape_cast %35 : vector<16x16x16xf32> to vector<256x16xf32>
    %37 = arith.truncf %36 : vector<256x16xf32> to vector<256x16xbf16>
    %c0_31 = arith.constant 0 : index
    %c2 = arith.constant 2 : index
    %c0_32 = arith.constant 0 : index
    %38 = vector.load %arg7[%c0_31, %c2, %c0_32] : memref<18x18x16xf32, #tpu.memory_space<vmem>>, vector<16x16x16xf32>
    %39 = vector.shape_cast %38 : vector<16x16x16xf32> to vector<256x16xf32>
    %40 = arith.truncf %39 : vector<256x16xf32> to vector<256x16xbf16>
    %c1_33 = arith.constant 1 : index
    %c0_34 = arith.constant 0 : index
    %c0_35 = arith.constant 0 : index
    %41 = vector.load %arg7[%c1_33, %c0_34, %c0_35] : memref<18x18x16xf32, #tpu.memory_space<vmem>>, vector<16x16x16xf32>
    %42 = vector.shape_cast %41 : vector<16x16x16xf32> to vector<256x16xf32>
    %43 = arith.truncf %42 : vector<256x16xf32> to vector<256x16xbf16>
    %c1_36 = arith.constant 1 : index
    %c1_37 = arith.constant 1 : index
    %c0_38 = arith.constant 0 : index
    %44 = vector.load %arg7[%c1_36, %c1_37, %c0_38] : memref<18x18x16xf32, #tpu.memory_space<vmem>>, vector<16x16x16xf32>
    %45 = vector.shape_cast %44 : vector<16x16x16xf32> to vector<256x16xf32>
    %46 = arith.truncf %45 : vector<256x16xf32> to vector<256x16xbf16>
    %c1_39 = arith.constant 1 : index
    %c2_40 = arith.constant 2 : index
    %c0_41 = arith.constant 0 : index
    %47 = vector.load %arg7[%c1_39, %c2_40, %c0_41] : memref<18x18x16xf32, #tpu.memory_space<vmem>>, vector<16x16x16xf32>
    %48 = vector.shape_cast %47 : vector<16x16x16xf32> to vector<256x16xf32>
    %49 = arith.truncf %48 : vector<256x16xf32> to vector<256x16xbf16>
    %c2_42 = arith.constant 2 : index
    %c0_43 = arith.constant 0 : index
    %c0_44 = arith.constant 0 : index
    %50 = vector.load %arg7[%c2_42, %c0_43, %c0_44] : memref<18x18x16xf32, #tpu.memory_space<vmem>>, vector<16x16x16xf32>
    %51 = vector.shape_cast %50 : vector<16x16x16xf32> to vector<256x16xf32>
    %52 = arith.truncf %51 : vector<256x16xf32> to vector<256x16xbf16>
    %c2_45 = arith.constant 2 : index
    %c1_46 = arith.constant 1 : index
    %c0_47 = arith.constant 0 : index
    %53 = vector.load %arg7[%c2_45, %c1_46, %c0_47] : memref<18x18x16xf32, #tpu.memory_space<vmem>>, vector<16x16x16xf32>
    %54 = vector.shape_cast %53 : vector<16x16x16xf32> to vector<256x16xf32>
    %55 = arith.truncf %54 : vector<256x16xf32> to vector<256x16xbf16>
    %c2_48 = arith.constant 2 : index
    %c2_49 = arith.constant 2 : index
    %c0_50 = arith.constant 0 : index
    %56 = vector.load %arg7[%c2_48, %c2_49, %c0_50] : memref<18x18x16xf32, #tpu.memory_space<vmem>>, vector<16x16x16xf32>
    %57 = vector.shape_cast %56 : vector<16x16x16xf32> to vector<256x16xf32>
    %58 = arith.truncf %57 : vector<256x16xf32> to vector<256x16xbf16>
    %59 = tpu.concatenate %34, %37, %40, %43, %46, %49, %52, %55, %58 in 1 : vector<256x16xbf16>, vector<256x16xbf16>, vector<256x16xbf16>, vector<256x16xbf16>, vector<256x16xbf16>, vector<256x16xbf16>, vector<256x16xbf16>, vector<256x16xbf16>, vector<256x16xbf16> -> vector<256x144xbf16>
    %c0_51 = arith.constant 0 : index
    %c0_52 = arith.constant 0 : index
    %60 = vector.load %arg4[%c0_51, %c0_52] : memref<144x16xbf16, #tpu.memory_space<vmem>>, vector<144x16xbf16>
    %cst_53 = arith.constant dense<0.000000e+00> : vector<256x16xf32>
    %61 = tpu.matmul %59, %60, %cst_53 {dimension_numbers = #tpu.dot_dimension_numbers<[1], [0], [0], [1], [0, 0, 1, 1], [], []>} : vector<256x144xbf16>, vector<144x16xbf16>, vector<256x16xf32> -> vector<256x16xf32>
    %c0_54 = arith.constant 0 : index
    %c0_55 = arith.constant 0 : index
    %62 = vector.load %arg5[%c0_54, %c0_55] : memref<1x16xf32, #tpu.memory_space<vmem>>, vector<1x16xf32>
    %63 = vector.broadcast %62 : vector<1x16xf32> to vector<256x16xf32>
    %64 = arith.addf %61, %63 : vector<256x16xf32>
    %65 = arith.negf %64 : vector<256x16xf32>
    %66 = math.exp %65 : vector<256x16xf32>
    %cst_56 = arith.constant 1.000000e+00 : f32
    %67 = vector.broadcast %cst_56 : f32 to vector<256x16xf32>
    %68 = arith.addf %67, %66 : vector<256x16xf32>
    %69 = arith.divf %67, %68 : vector<256x16xf32>
    %70 = arith.mulf %64, %69 : vector<256x16xf32>
    %71 = arith.addf %21, %70 : vector<256x16xf32>
    %72 = vector.shape_cast %71 : vector<256x16xf32> to vector<16x16x16xf32>
    %73 = arith.truncf %72 : vector<16x16x16xf32> to vector<16x16x16xbf16>
    %c0_57 = arith.constant 0 : index
    %c0_58 = arith.constant 0 : index
    %c0_59 = arith.constant 0 : index
    %c0_60 = arith.constant 0 : index
    %74 = vector.load %arg6[%c0_57, %c0_58, %c0_59, %c0_60] : memref<1x16x16x16xbf16, #tpu.memory_space<vmem>>, vector<1x16x16x16xbf16>
    %75 = vector.shape_cast %74 : vector<1x16x16x16xbf16> to vector<16x16x16xbf16>
    %76 = vector.shape_cast %73 : vector<16x16x16xbf16> to vector<1x16x16x16xbf16>
    tpu.vector_store %arg6[%c0_57, %c0_58, %c0_59, %c0_60], %76 {strides = array<i32>} : memref<1x16x16x16xbf16, #tpu.memory_space<vmem>>, vector<1x16x16x16xbf16>,
    return
  }
  func.func @transform_0(%arg0: i32) -> (i32, i32, i32, i32) {
    %c0_i32 = arith.constant 0 : i32
    %c0_i32_0 = arith.constant 0 : i32
    %c0_i32_1 = arith.constant 0 : i32
    %c0_i32_2 = arith.constant 0 : i32
    return %arg0, %c0_i32, %c0_i32_0, %c0_i32_1 : i32, i32, i32, i32
  }
  func.func @transform_1(%arg0: i32) -> (i32, i32) {
    %c0_i32 = arith.constant 0 : i32
    %c0_i32_0 = arith.constant 0 : i32
    %c0_i32_1 = arith.constant 0 : i32
    return %c0_i32, %c0_i32_0 : i32, i32
  }
  func.func @transform_2(%arg0: i32) -> (i32, i32) {
    %c0_i32 = arith.constant 0 : i32
    %c0_i32_0 = arith.constant 0 : i32
    %c0_i32_1 = arith.constant 0 : i32
    return %c0_i32, %c0_i32_0 : i32, i32
  }
  func.func @transform_3(%arg0: i32) -> (i32, i32) {
    %c0_i32 = arith.constant 0 : i32
    %c0_i32_0 = arith.constant 0 : i32
    %c0_i32_1 = arith.constant 0 : i32
    return %c0_i32, %c0_i32_0 : i32, i32
  }
  func.func @transform_4(%arg0: i32) -> (i32, i32) {
    %c0_i32 = arith.constant 0 : i32
    %c0_i32_0 = arith.constant 0 : i32
    %c0_i32_1 = arith.constant 0 : i32
    return %c0_i32, %c0_i32_0 : i32, i32
  }
  func.func @transform_5(%arg0: i32) -> (i32, i32, i32, i32) {
    %c0_i32 = arith.constant 0 : i32
    %c0_i32_0 = arith.constant 0 : i32
    %c0_i32_1 = arith.constant 0 : i32
    %c0_i32_2 = arith.constant 0 : i32
    return %arg0, %c0_i32, %c0_i32_0, %c0_i32_1 : i32, i32, i32, i32
  }
}

module attributes {stable_mosaic.version = 11 : i64} {
  func.func @kernel(%arg0: i32, %arg1: memref<1x9x9x64xbf16, #tpu.memory_space<vmem>>, %arg2: memref<256x64xbf16, #tpu.memory_space<vmem>>, %arg3: memref<1x64xf32, #tpu.memory_space<vmem>>, %arg4: memref<64x128xbf16, #tpu.memory_space<vmem>>, %arg5: memref<1x128xf32, #tpu.memory_space<vmem>>, %arg6: memref<1x8x8x128xbf16, #tpu.memory_space<vmem>>) attributes {dimension_semantics = [#tpu.dimension_semantics<parallel>], iteration_bounds = array<i64: 2>, scalar_prefetch = 0 : i64, scratch_operands = 0 : i64, tpu.core_type = #tpu.core_type<tc>, window_params = [{transform_indices = @transform_0, window_bounds = array<i64: 1, 9, 9, 64>}, {pipeline_mode = #tpu.pipeline_mode<synchronous>, transform_indices = @transform_1, window_bounds = array<i64: 256, 64>}, {pipeline_mode = #tpu.pipeline_mode<synchronous>, transform_indices = @transform_2, window_bounds = array<i64: 1, 64>}, {pipeline_mode = #tpu.pipeline_mode<synchronous>, transform_indices = @transform_3, window_bounds = array<i64: 64, 128>}, {pipeline_mode = #tpu.pipeline_mode<synchronous>, transform_indices = @transform_4, window_bounds = array<i64: 1, 128>}, {transform_indices = @transform_5, window_bounds = array<i64: 1, 8, 8, 128>}]} {
    %c0 = arith.constant 0 : index
    %c0_0 = arith.constant 0 : index
    %c0_1 = arith.constant 0 : index
    %c0_2 = arith.constant 0 : index
    %0 = vector.load %arg1[%c0, %c0_0, %c0_1, %c0_2] : memref<1x9x9x64xbf16, #tpu.memory_space<vmem>>, vector<1x9x9x64xbf16>
    %1 = vector.shape_cast %0 : vector<1x9x9x64xbf16> to vector<9x9x64xbf16>
    %2 = vector.extract_strided_slice %1 {offsets = [0, 0, 0], sizes = [8, 8, 64], strides = [1, 1, 1]} : vector<9x9x64xbf16> to vector<8x8x64xbf16>
    %3 = vector.shape_cast %2 : vector<8x8x64xbf16> to vector<64x64xbf16>
    %4 = vector.extract_strided_slice %1 {offsets = [0, 1, 0], sizes = [8, 8, 64], strides = [1, 1, 1]} : vector<9x9x64xbf16> to vector<8x8x64xbf16>
    %5 = vector.shape_cast %4 : vector<8x8x64xbf16> to vector<64x64xbf16>
    %6 = vector.extract_strided_slice %1 {offsets = [1, 0, 0], sizes = [8, 8, 64], strides = [1, 1, 1]} : vector<9x9x64xbf16> to vector<8x8x64xbf16>
    %7 = vector.shape_cast %6 : vector<8x8x64xbf16> to vector<64x64xbf16>
    %8 = vector.extract_strided_slice %1 {offsets = [1, 1, 0], sizes = [8, 8, 64], strides = [1, 1, 1]} : vector<9x9x64xbf16> to vector<8x8x64xbf16>
    %9 = vector.shape_cast %8 : vector<8x8x64xbf16> to vector<64x64xbf16>
    %10 = tpu.concatenate %3, %5, %7, %9 in 1 : vector<64x64xbf16>, vector<64x64xbf16>, vector<64x64xbf16>, vector<64x64xbf16> -> vector<64x256xbf16>
    %c0_3 = arith.constant 0 : index
    %c0_4 = arith.constant 0 : index
    %11 = vector.load %arg2[%c0_3, %c0_4] : memref<256x64xbf16, #tpu.memory_space<vmem>>, vector<256x64xbf16>
    %cst = arith.constant dense<0.000000e+00> : vector<64x64xf32>
    %12 = tpu.matmul %10, %11, %cst {dimension_numbers = #tpu.dot_dimension_numbers<[1], [0], [0], [1], [0, 0, 1, 1], [], []>} : vector<64x256xbf16>, vector<256x64xbf16>, vector<64x64xf32> -> vector<64x64xf32>
    %c0_5 = arith.constant 0 : index
    %c0_6 = arith.constant 0 : index
    %13 = vector.load %arg3[%c0_5, %c0_6] : memref<1x64xf32, #tpu.memory_space<vmem>>, vector<1x64xf32>
    %14 = vector.broadcast %13 : vector<1x64xf32> to vector<64x64xf32>
    %15 = arith.addf %12, %14 : vector<64x64xf32>
    %16 = arith.negf %15 : vector<64x64xf32>
    %17 = math.exp %16 : vector<64x64xf32>
    %cst_7 = arith.constant 1.000000e+00 : f32
    %18 = vector.broadcast %cst_7 : f32 to vector<64x64xf32>
    %19 = arith.addf %18, %17 : vector<64x64xf32>
    %20 = arith.divf %18, %19 : vector<64x64xf32>
    %21 = arith.mulf %15, %20 : vector<64x64xf32>
    %22 = arith.truncf %21 : vector<64x64xf32> to vector<64x64xbf16>
    %c0_8 = arith.constant 0 : index
    %c0_9 = arith.constant 0 : index
    %23 = vector.load %arg4[%c0_8, %c0_9] : memref<64x128xbf16, #tpu.memory_space<vmem>>, vector<64x128xbf16>
    %cst_10 = arith.constant dense<0.000000e+00> : vector<64x128xf32>
    %24 = tpu.matmul %22, %23, %cst_10 {dimension_numbers = #tpu.dot_dimension_numbers<[1], [0], [0], [1], [0, 0, 1, 1], [], []>} : vector<64x64xbf16>, vector<64x128xbf16>, vector<64x128xf32> -> vector<64x128xf32>
    %c0_11 = arith.constant 0 : index
    %c0_12 = arith.constant 0 : index
    %25 = vector.load %arg5[%c0_11, %c0_12] : memref<1x128xf32, #tpu.memory_space<vmem>>, vector<1x128xf32>
    %26 = vector.broadcast %25 : vector<1x128xf32> to vector<64x128xf32>
    %27 = arith.addf %24, %26 : vector<64x128xf32>
    %28 = arith.negf %27 : vector<64x128xf32>
    %29 = math.exp %28 : vector<64x128xf32>
    %cst_13 = arith.constant 1.000000e+00 : f32
    %30 = vector.broadcast %cst_13 : f32 to vector<64x128xf32>
    %31 = arith.addf %30, %29 : vector<64x128xf32>
    %32 = arith.divf %30, %31 : vector<64x128xf32>
    %33 = arith.mulf %27, %32 : vector<64x128xf32>
    %34 = vector.shape_cast %33 : vector<64x128xf32> to vector<8x8x128xf32>
    %35 = arith.truncf %34 : vector<8x8x128xf32> to vector<8x8x128xbf16>
    %c0_14 = arith.constant 0 : index
    %c0_15 = arith.constant 0 : index
    %c0_16 = arith.constant 0 : index
    %c0_17 = arith.constant 0 : index
    %36 = vector.load %arg6[%c0_14, %c0_15, %c0_16, %c0_17] : memref<1x8x8x128xbf16, #tpu.memory_space<vmem>>, vector<1x8x8x128xbf16>
    %37 = vector.shape_cast %36 : vector<1x8x8x128xbf16> to vector<8x8x128xbf16>
    %38 = vector.shape_cast %35 : vector<8x8x128xbf16> to vector<1x8x8x128xbf16>
    tpu.vector_store %arg6[%c0_14, %c0_15, %c0_16, %c0_17], %38 {strides = array<i32>} : memref<1x8x8x128xbf16, #tpu.memory_space<vmem>>, vector<1x8x8x128xbf16>,
    return
  }
  func.func @transform_0(%arg0: i32) -> (i32, i32, i32, i32) {
    %c0_i32 = arith.constant 0 : i32
    %c0_i32_0 = arith.constant 0 : i32
    %c0_i32_1 = arith.constant 0 : i32
    %c0_i32_2 = arith.constant 0 : i32
    return %arg0, %c0_i32, %c0_i32_0, %c0_i32_1 : i32, i32, i32, i32
  }
  func.func @transform_1(%arg0: i32) -> (i32, i32) {
    %c0_i32 = arith.constant 0 : i32
    %c0_i32_0 = arith.constant 0 : i32
    %c0_i32_1 = arith.constant 0 : i32
    return %c0_i32, %c0_i32_0 : i32, i32
  }
  func.func @transform_2(%arg0: i32) -> (i32, i32) {
    %c0_i32 = arith.constant 0 : i32
    %c0_i32_0 = arith.constant 0 : i32
    %c0_i32_1 = arith.constant 0 : i32
    return %c0_i32, %c0_i32_0 : i32, i32
  }
  func.func @transform_3(%arg0: i32) -> (i32, i32) {
    %c0_i32 = arith.constant 0 : i32
    %c0_i32_0 = arith.constant 0 : i32
    %c0_i32_1 = arith.constant 0 : i32
    return %c0_i32, %c0_i32_0 : i32, i32
  }
  func.func @transform_4(%arg0: i32) -> (i32, i32) {
    %c0_i32 = arith.constant 0 : i32
    %c0_i32_0 = arith.constant 0 : i32
    %c0_i32_1 = arith.constant 0 : i32
    return %c0_i32, %c0_i32_0 : i32, i32
  }
  func.func @transform_5(%arg0: i32) -> (i32, i32, i32, i32) {
    %c0_i32 = arith.constant 0 : i32
    %c0_i32_0 = arith.constant 0 : i32
    %c0_i32_1 = arith.constant 0 : i32
    %c0_i32_2 = arith.constant 0 : i32
    return %arg0, %c0_i32, %c0_i32_0, %c0_i32_1 : i32, i32, i32, i32
  }
}

module attributes {stable_mosaic.version = 11 : i64} {
  func.func @kernel(%arg0: i32, %arg1: memref<1x5x5x512xbf16, #tpu.memory_space<vmem>>, %arg2: memref<9x1x128xf32, #tpu.memory_space<vmem>>, %arg3: memref<1x128xf32, #tpu.memory_space<vmem>>, %arg4: memref<128x8xbf16, #tpu.memory_space<vmem>>, %arg5: memref<1x8xf32, #tpu.memory_space<vmem>>, %arg6: memref<8x128xbf16, #tpu.memory_space<vmem>>, %arg7: memref<1x128xf32, #tpu.memory_space<vmem>>, %arg8: memref<128x192xbf16, #tpu.memory_space<vmem>>, %arg9: memref<1x192xf32, #tpu.memory_space<vmem>>, %arg10: memref<192x512xbf16, #tpu.memory_space<vmem>>, %arg11: memref<1x512xf32, #tpu.memory_space<vmem>>, %arg12: memref<1x1x512xf32, #tpu.memory_space<vmem>>) attributes {dimension_semantics = [#tpu.dimension_semantics<parallel>], iteration_bounds = array<i64: 2>, scalar_prefetch = 0 : i64, scratch_operands = 0 : i64, tpu.core_type = #tpu.core_type<tc>, window_params = [{transform_indices = @transform_0, window_bounds = array<i64: 1, 5, 5, 512>}, {pipeline_mode = #tpu.pipeline_mode<synchronous>, transform_indices = @transform_1, window_bounds = array<i64: 9, 1, 128>}, {pipeline_mode = #tpu.pipeline_mode<synchronous>, transform_indices = @transform_2, window_bounds = array<i64: 1, 128>}, {pipeline_mode = #tpu.pipeline_mode<synchronous>, transform_indices = @transform_3, window_bounds = array<i64: 128, 8>}, {pipeline_mode = #tpu.pipeline_mode<synchronous>, transform_indices = @transform_4, window_bounds = array<i64: 1, 8>}, {pipeline_mode = #tpu.pipeline_mode<synchronous>, transform_indices = @transform_5, window_bounds = array<i64: 8, 128>}, {pipeline_mode = #tpu.pipeline_mode<synchronous>, transform_indices = @transform_6, window_bounds = array<i64: 1, 128>}, {pipeline_mode = #tpu.pipeline_mode<synchronous>, transform_indices = @transform_7, window_bounds = array<i64: 128, 192>}, {pipeline_mode = #tpu.pipeline_mode<synchronous>, transform_indices = @transform_8, window_bounds = array<i64: 1, 192>}, {pipeline_mode = #tpu.pipeline_mode<synchronous>, transform_indices = @transform_9, window_bounds = array<i64: 192, 512>}, {pipeline_mode = #tpu.pipeline_mode<synchronous>, transform_indices = @transform_10, window_bounds = array<i64: 1, 512>}, {transform_indices = @transform_11, window_bounds = array<i64: 1, 1, 512>}]} {
    %c0 = arith.constant 0 : index
    %c0_0 = arith.constant 0 : index
    %c0_1 = arith.constant 0 : index
    %c0_2 = arith.constant 0 : index
    %0 = vector.load %arg1[%c0, %c0_0, %c0_1, %c0_2] : memref<1x5x5x512xbf16, #tpu.memory_space<vmem>>, vector<1x5x5x512xbf16>
    %1 = vector.shape_cast %0 : vector<1x5x5x512xbf16> to vector<5x5x512xbf16>
    %cst = arith.constant 0.000000e+00 : f32
    %2 = vector.broadcast %cst : f32 to vector<4x4x128xf32>
    %3 = vector.extract_strided_slice %1 {offsets = [0, 0, 0], sizes = [4, 4, 128], strides = [1, 1, 1]} : vector<5x5x512xbf16> to vector<4x4x128xbf16>
    %4 = arith.extf %3 : vector<4x4x128xbf16> to vector<4x4x128xf32>
    %c0_3 = arith.constant 0 : index
    %c0_4 = arith.constant 0 : index
    %c0_5 = arith.constant 0 : index
    %5 = vector.load %arg2[%c0_3, %c0_4, %c0_5] : memref<9x1x128xf32, #tpu.memory_space<vmem>>, vector<1x1x128xf32>
    %6 = vector.shape_cast %5 : vector<1x1x128xf32> to vector<1x128xf32>
    %7 = vector.shape_cast %6 : vector<1x128xf32> to vector<1x1x128xf32>
    %8 = vector.broadcast %7 : vector<1x1x128xf32> to vector<4x4x128xf32>
    %9 = arith.mulf %4, %8 : vector<4x4x128xf32>
    %10 = arith.addf %2, %9 : vector<4x4x128xf32>
    %11 = vector.extract_strided_slice %1 {offsets = [0, 0, 128], sizes = [4, 4, 128], strides = [1, 1, 1]} : vector<5x5x512xbf16> to vector<4x4x128xbf16>
    %12 = arith.extf %11 : vector<4x4x128xbf16> to vector<4x4x128xf32>
    %c1 = arith.constant 1 : index
    %c0_6 = arith.constant 0 : index
    %c0_7 = arith.constant 0 : index
    %13 = vector.load %arg2[%c1, %c0_6, %c0_7] : memref<9x1x128xf32, #tpu.memory_space<vmem>>, vector<1x1x128xf32>
    %14 = vector.shape_cast %13 : vector<1x1x128xf32> to vector<1x128xf32>
    %15 = vector.shape_cast %14 : vector<1x128xf32> to vector<1x1x128xf32>
    %16 = vector.broadcast %15 : vector<1x1x128xf32> to vector<4x4x128xf32>
    %17 = arith.mulf %12, %16 : vector<4x4x128xf32>
    %18 = arith.addf %10, %17 : vector<4x4x128xf32>
    %19 = vector.extract_strided_slice %1 {offsets = [0, 1, 0], sizes = [4, 4, 128], strides = [1, 1, 1]} : vector<5x5x512xbf16> to vector<4x4x128xbf16>
    %20 = arith.extf %19 : vector<4x4x128xbf16> to vector<4x4x128xf32>
    %c2 = arith.constant 2 : index
    %c0_8 = arith.constant 0 : index
    %c0_9 = arith.constant 0 : index
    %21 = vector.load %arg2[%c2, %c0_8, %c0_9] : memref<9x1x128xf32, #tpu.memory_space<vmem>>, vector<1x1x128xf32>
    %22 = vector.shape_cast %21 : vector<1x1x128xf32> to vector<1x128xf32>
    %23 = vector.shape_cast %22 : vector<1x128xf32> to vector<1x1x128xf32>
    %24 = vector.broadcast %23 : vector<1x1x128xf32> to vector<4x4x128xf32>
    %25 = arith.mulf %20, %24 : vector<4x4x128xf32>
    %26 = arith.addf %18, %25 : vector<4x4x128xf32>
    %27 = vector.extract_strided_slice %1 {offsets = [0, 0, 256], sizes = [4, 4, 128], strides = [1, 1, 1]} : vector<5x5x512xbf16> to vector<4x4x128xbf16>
    %28 = arith.extf %27 : vector<4x4x128xbf16> to vector<4x4x128xf32>
    %c3 = arith.constant 3 : index
    %c0_10 = arith.constant 0 : index
    %c0_11 = arith.constant 0 : index
    %29 = vector.load %arg2[%c3, %c0_10, %c0_11] : memref<9x1x128xf32, #tpu.memory_space<vmem>>, vector<1x1x128xf32>
    %30 = vector.shape_cast %29 : vector<1x1x128xf32> to vector<1x128xf32>
    %31 = vector.shape_cast %30 : vector<1x128xf32> to vector<1x1x128xf32>
    %32 = vector.broadcast %31 : vector<1x1x128xf32> to vector<4x4x128xf32>
    %33 = arith.mulf %28, %32 : vector<4x4x128xf32>
    %34 = arith.addf %26, %33 : vector<4x4x128xf32>
    %35 = vector.extract_strided_slice %1 {offsets = [0, 0, 384], sizes = [4, 4, 128], strides = [1, 1, 1]} : vector<5x5x512xbf16> to vector<4x4x128xbf16>
    %36 = arith.extf %35 : vector<4x4x128xbf16> to vector<4x4x128xf32>
    %c4 = arith.constant 4 : index
    %c0_12 = arith.constant 0 : index
    %c0_13 = arith.constant 0 : index
    %37 = vector.load %arg2[%c4, %c0_12, %c0_13] : memref<9x1x128xf32, #tpu.memory_space<vmem>>, vector<1x1x128xf32>
    %38 = vector.shape_cast %37 : vector<1x1x128xf32> to vector<1x128xf32>
    %39 = vector.shape_cast %38 : vector<1x128xf32> to vector<1x1x128xf32>
    %40 = vector.broadcast %39 : vector<1x1x128xf32> to vector<4x4x128xf32>
    %41 = arith.mulf %36, %40 : vector<4x4x128xf32>
    %42 = arith.addf %34, %41 : vector<4x4x128xf32>
    %43 = vector.extract_strided_slice %1 {offsets = [0, 1, 256], sizes = [4, 4, 128], strides = [1, 1, 1]} : vector<5x5x512xbf16> to vector<4x4x128xbf16>
    %44 = arith.extf %43 : vector<4x4x128xbf16> to vector<4x4x128xf32>
    %c5 = arith.constant 5 : index
    %c0_14 = arith.constant 0 : index
    %c0_15 = arith.constant 0 : index
    %45 = vector.load %arg2[%c5, %c0_14, %c0_15] : memref<9x1x128xf32, #tpu.memory_space<vmem>>, vector<1x1x128xf32>
    %46 = vector.shape_cast %45 : vector<1x1x128xf32> to vector<1x128xf32>
    %47 = vector.shape_cast %46 : vector<1x128xf32> to vector<1x1x128xf32>
    %48 = vector.broadcast %47 : vector<1x1x128xf32> to vector<4x4x128xf32>
    %49 = arith.mulf %44, %48 : vector<4x4x128xf32>
    %50 = arith.addf %42, %49 : vector<4x4x128xf32>
    %51 = vector.extract_strided_slice %1 {offsets = [1, 0, 0], sizes = [4, 4, 128], strides = [1, 1, 1]} : vector<5x5x512xbf16> to vector<4x4x128xbf16>
    %52 = arith.extf %51 : vector<4x4x128xbf16> to vector<4x4x128xf32>
    %c6 = arith.constant 6 : index
    %c0_16 = arith.constant 0 : index
    %c0_17 = arith.constant 0 : index
    %53 = vector.load %arg2[%c6, %c0_16, %c0_17] : memref<9x1x128xf32, #tpu.memory_space<vmem>>, vector<1x1x128xf32>
    %54 = vector.shape_cast %53 : vector<1x1x128xf32> to vector<1x128xf32>
    %55 = vector.shape_cast %54 : vector<1x128xf32> to vector<1x1x128xf32>
    %56 = vector.broadcast %55 : vector<1x1x128xf32> to vector<4x4x128xf32>
    %57 = arith.mulf %52, %56 : vector<4x4x128xf32>
    %58 = arith.addf %50, %57 : vector<4x4x128xf32>
    %59 = vector.extract_strided_slice %1 {offsets = [1, 0, 128], sizes = [4, 4, 128], strides = [1, 1, 1]} : vector<5x5x512xbf16> to vector<4x4x128xbf16>
    %60 = arith.extf %59 : vector<4x4x128xbf16> to vector<4x4x128xf32>
    %c7 = arith.constant 7 : index
    %c0_18 = arith.constant 0 : index
    %c0_19 = arith.constant 0 : index
    %61 = vector.load %arg2[%c7, %c0_18, %c0_19] : memref<9x1x128xf32, #tpu.memory_space<vmem>>, vector<1x1x128xf32>
    %62 = vector.shape_cast %61 : vector<1x1x128xf32> to vector<1x128xf32>
    %63 = vector.shape_cast %62 : vector<1x128xf32> to vector<1x1x128xf32>
    %64 = vector.broadcast %63 : vector<1x1x128xf32> to vector<4x4x128xf32>
    %65 = arith.mulf %60, %64 : vector<4x4x128xf32>
    %66 = arith.addf %58, %65 : vector<4x4x128xf32>
    %67 = vector.extract_strided_slice %1 {offsets = [1, 1, 0], sizes = [4, 4, 128], strides = [1, 1, 1]} : vector<5x5x512xbf16> to vector<4x4x128xbf16>
    %68 = arith.extf %67 : vector<4x4x128xbf16> to vector<4x4x128xf32>
    %c8 = arith.constant 8 : index
    %c0_20 = arith.constant 0 : index
    %c0_21 = arith.constant 0 : index
    %69 = vector.load %arg2[%c8, %c0_20, %c0_21] : memref<9x1x128xf32, #tpu.memory_space<vmem>>, vector<1x1x128xf32>
    %70 = vector.shape_cast %69 : vector<1x1x128xf32> to vector<1x128xf32>
    %71 = vector.shape_cast %70 : vector<1x128xf32> to vector<1x1x128xf32>
    %72 = vector.broadcast %71 : vector<1x1x128xf32> to vector<4x4x128xf32>
    %73 = arith.mulf %68, %72 : vector<4x4x128xf32>
    %74 = arith.addf %66, %73 : vector<4x4x128xf32>
    %c0_22 = arith.constant 0 : index
    %c0_23 = arith.constant 0 : index
    %75 = vector.load %arg3[%c0_22, %c0_23] : memref<1x128xf32, #tpu.memory_space<vmem>>, vector<1x128xf32>
    %76 = vector.shape_cast %75 : vector<1x128xf32> to vector<1x1x128xf32>
    %77 = vector.broadcast %76 : vector<1x1x128xf32> to vector<4x4x128xf32>
    %78 = arith.addf %74, %77 : vector<4x4x128xf32>
    %79 = arith.negf %78 : vector<4x4x128xf32>
    %80 = math.exp %79 : vector<4x4x128xf32>
    %cst_24 = arith.constant 1.000000e+00 : f32
    %81 = vector.broadcast %cst_24 : f32 to vector<4x4x128xf32>
    %82 = arith.addf %81, %80 : vector<4x4x128xf32>
    %83 = arith.divf %81, %82 : vector<4x4x128xf32>
    %84 = arith.mulf %78, %83 : vector<4x4x128xf32>
    %85 = vector.shape_cast %84 : vector<4x4x128xf32> to vector<16x128xf32>
    %cst_25 = arith.constant dense<0.000000e+00> : vector<128xf32>
    %86 = vector.multi_reduction <add>, %85, %cst_25 [0] : vector<16x128xf32> to vector<128xf32>
    %87 = vector.shape_cast %86 : vector<128xf32> to vector<1x128xf32>
    %cst_26 = arith.constant 1.600000e+01 : f32
    %88 = vector.broadcast %cst_26 : f32 to vector<1x128xf32>
    %89 = arith.divf %87, %88 : vector<1x128xf32>
    %90 = arith.truncf %89 : vector<1x128xf32> to vector<1x128xbf16>
    %c0_27 = arith.constant 0 : index
    %c0_28 = arith.constant 0 : index
    %91 = vector.load %arg4[%c0_27, %c0_28] : memref<128x8xbf16, #tpu.memory_space<vmem>>, vector<128x8xbf16>
    %cst_29 = arith.constant dense<0.000000e+00> : vector<1x8xf32>
    %92 = tpu.matmul %90, %91, %cst_29 {dimension_numbers = #tpu.dot_dimension_numbers<[1], [0], [0], [1], [0, 0, 1, 1], [], []>} : vector<1x128xbf16>, vector<128x8xbf16>, vector<1x8xf32> -> vector<1x8xf32>
    %c0_30 = arith.constant 0 : index
    %c0_31 = arith.constant 0 : index
    %93 = vector.load %arg5[%c0_30, %c0_31] : memref<1x8xf32, #tpu.memory_space<vmem>>, vector<1x8xf32>
    %94 = arith.addf %92, %93 : vector<1x8xf32>
    %95 = arith.negf %94 : vector<1x8xf32>
    %96 = math.exp %95 : vector<1x8xf32>
    %cst_32 = arith.constant 1.000000e+00 : f32
    %97 = vector.broadcast %cst_32 : f32 to vector<1x8xf32>
    %98 = arith.addf %97, %96 : vector<1x8xf32>
    %99 = arith.divf %97, %98 : vector<1x8xf32>
    %100 = arith.mulf %94, %99 : vector<1x8xf32>
    %101 = arith.truncf %100 : vector<1x8xf32> to vector<1x8xbf16>
    %c0_33 = arith.constant 0 : index
    %c0_34 = arith.constant 0 : index
    %102 = vector.load %arg6[%c0_33, %c0_34] : memref<8x128xbf16, #tpu.memory_space<vmem>>, vector<8x128xbf16>
    %cst_35 = arith.constant dense<0.000000e+00> : vector<1x128xf32>
    %103 = tpu.matmul %101, %102, %cst_35 {dimension_numbers = #tpu.dot_dimension_numbers<[1], [0], [0], [1], [0, 0, 1, 1], [], []>} : vector<1x8xbf16>, vector<8x128xbf16>, vector<1x128xf32> -> vector<1x128xf32>
    %c0_36 = arith.constant 0 : index
    %c0_37 = arith.constant 0 : index
    %104 = vector.load %arg7[%c0_36, %c0_37] : memref<1x128xf32, #tpu.memory_space<vmem>>, vector<1x128xf32>
    %105 = arith.addf %103, %104 : vector<1x128xf32>
    %106 = arith.negf %105 : vector<1x128xf32>
    %107 = math.exp %106 : vector<1x128xf32>
    %cst_38 = arith.constant 1.000000e+00 : f32
    %108 = vector.broadcast %cst_38 : f32 to vector<1x128xf32>
    %109 = arith.addf %108, %107 : vector<1x128xf32>
    %110 = arith.divf %108, %109 : vector<1x128xf32>
    %111 = vector.broadcast %110 : vector<1x128xf32> to vector<16x128xf32>
    %112 = arith.mulf %85, %111 : vector<16x128xf32>
    %113 = arith.truncf %112 : vector<16x128xf32> to vector<16x128xbf16>
    %c0_39 = arith.constant 0 : index
    %c0_40 = arith.constant 0 : index
    %114 = vector.load %arg8[%c0_39, %c0_40] : memref<128x192xbf16, #tpu.memory_space<vmem>>, vector<128x192xbf16>
    %cst_41 = arith.constant dense<0.000000e+00> : vector<16x192xf32>
    %115 = tpu.matmul %113, %114, %cst_41 {dimension_numbers = #tpu.dot_dimension_numbers<[1], [0], [0], [1], [0, 0, 1, 1], [], []>} : vector<16x128xbf16>, vector<128x192xbf16>, vector<16x192xf32> -> vector<16x192xf32>
    %c0_42 = arith.constant 0 : index
    %c0_43 = arith.constant 0 : index
    %116 = vector.load %arg9[%c0_42, %c0_43] : memref<1x192xf32, #tpu.memory_space<vmem>>, vector<1x192xf32>
    %117 = vector.broadcast %116 : vector<1x192xf32> to vector<16x192xf32>
    %118 = arith.addf %115, %117 : vector<16x192xf32>
    %119 = arith.negf %118 : vector<16x192xf32>
    %120 = math.exp %119 : vector<16x192xf32>
    %cst_44 = arith.constant 1.000000e+00 : f32
    %121 = vector.broadcast %cst_44 : f32 to vector<16x192xf32>
    %122 = arith.addf %121, %120 : vector<16x192xf32>
    %123 = arith.divf %121, %122 : vector<16x192xf32>
    %124 = arith.mulf %118, %123 : vector<16x192xf32>
    %cst_45 = arith.constant dense<0.000000e+00> : vector<192xf32>
    %125 = vector.multi_reduction <add>, %124, %cst_45 [0] : vector<16x192xf32> to vector<192xf32>
    %126 = vector.shape_cast %125 : vector<192xf32> to vector<1x192xf32>
    %cst_46 = arith.constant 1.600000e+01 : f32
    %127 = vector.broadcast %cst_46 : f32 to vector<1x192xf32>
    %128 = arith.divf %126, %127 : vector<1x192xf32>
    %129 = arith.truncf %128 : vector<1x192xf32> to vector<1x192xbf16>
    %c0_47 = arith.constant 0 : index
    %c0_48 = arith.constant 0 : index
    %130 = vector.load %arg10[%c0_47, %c0_48] : memref<192x512xbf16, #tpu.memory_space<vmem>>, vector<192x512xbf16>
    %cst_49 = arith.constant dense<0.000000e+00> : vector<1x512xf32>
    %131 = tpu.matmul %129, %130, %cst_49 {dimension_numbers = #tpu.dot_dimension_numbers<[1], [0], [0], [1], [0, 0, 1, 1], [], []>} : vector<1x192xbf16>, vector<192x512xbf16>, vector<1x512xf32> -> vector<1x512xf32>
    %c0_50 = arith.constant 0 : index
    %c0_51 = arith.constant 0 : index
    %132 = vector.load %arg11[%c0_50, %c0_51] : memref<1x512xf32, #tpu.memory_space<vmem>>, vector<1x512xf32>
    %133 = arith.addf %131, %132 : vector<1x512xf32>
    %c0_52 = arith.constant 0 : index
    %c0_53 = arith.constant 0 : index
    %c0_54 = arith.constant 0 : index
    %134 = vector.load %arg12[%c0_52, %c0_53, %c0_54] : memref<1x1x512xf32, #tpu.memory_space<vmem>>, vector<1x1x512xf32>
    %135 = vector.shape_cast %134 : vector<1x1x512xf32> to vector<1x512xf32>
    %136 = vector.shape_cast %133 : vector<1x512xf32> to vector<1x1x512xf32>
    tpu.vector_store %arg12[%c0_52, %c0_53, %c0_54], %136 {strides = array<i32>} : memref<1x1x512xf32, #tpu.memory_space<vmem>>, vector<1x1x512xf32>,
    return
  }
  func.func @transform_0(%arg0: i32) -> (i32, i32, i32, i32) {
    %c0_i32 = arith.constant 0 : i32
    %c0_i32_0 = arith.constant 0 : i32
    %c0_i32_1 = arith.constant 0 : i32
    %c0_i32_2 = arith.constant 0 : i32
    return %arg0, %c0_i32, %c0_i32_0, %c0_i32_1 : i32, i32, i32, i32
  }
  func.func @transform_1(%arg0: i32) -> (i32, i32, i32) {
    %c0_i32 = arith.constant 0 : i32
    %c0_i32_0 = arith.constant 0 : i32
    %c0_i32_1 = arith.constant 0 : i32
    %c0_i32_2 = arith.constant 0 : i32
    return %c0_i32, %c0_i32_0, %c0_i32_1 : i32, i32, i32
  }
  func.func @transform_2(%arg0: i32) -> (i32, i32) {
    %c0_i32 = arith.constant 0 : i32
    %c0_i32_0 = arith.constant 0 : i32
    %c0_i32_1 = arith.constant 0 : i32
    return %c0_i32, %c0_i32_0 : i32, i32
  }
  func.func @transform_3(%arg0: i32) -> (i32, i32) {
    %c0_i32 = arith.constant 0 : i32
    %c0_i32_0 = arith.constant 0 : i32
    %c0_i32_1 = arith.constant 0 : i32
    return %c0_i32, %c0_i32_0 : i32, i32
  }
  func.func @transform_4(%arg0: i32) -> (i32, i32) {
    %c0_i32 = arith.constant 0 : i32
    %c0_i32_0 = arith.constant 0 : i32
    %c0_i32_1 = arith.constant 0 : i32
    return %c0_i32, %c0_i32_0 : i32, i32
  }
  func.func @transform_5(%arg0: i32) -> (i32, i32) {
    %c0_i32 = arith.constant 0 : i32
    %c0_i32_0 = arith.constant 0 : i32
    %c0_i32_1 = arith.constant 0 : i32
    return %c0_i32, %c0_i32_0 : i32, i32
  }
  func.func @transform_6(%arg0: i32) -> (i32, i32) {
    %c0_i32 = arith.constant 0 : i32
    %c0_i32_0 = arith.constant 0 : i32
    %c0_i32_1 = arith.constant 0 : i32
    return %c0_i32, %c0_i32_0 : i32, i32
  }
  func.func @transform_7(%arg0: i32) -> (i32, i32) {
    %c0_i32 = arith.constant 0 : i32
    %c0_i32_0 = arith.constant 0 : i32
    %c0_i32_1 = arith.constant 0 : i32
    return %c0_i32, %c0_i32_0 : i32, i32
  }
  func.func @transform_8(%arg0: i32) -> (i32, i32) {
    %c0_i32 = arith.constant 0 : i32
    %c0_i32_0 = arith.constant 0 : i32
    %c0_i32_1 = arith.constant 0 : i32
    return %c0_i32, %c0_i32_0 : i32, i32
  }
  func.func @transform_9(%arg0: i32) -> (i32, i32) {
    %c0_i32 = arith.constant 0 : i32
    %c0_i32_0 = arith.constant 0 : i32
    %c0_i32_1 = arith.constant 0 : i32
    return %c0_i32, %c0_i32_0 : i32, i32
  }
  func.func @transform_10(%arg0: i32) -> (i32, i32) {
    %c0_i32 = arith.constant 0 : i32
    %c0_i32_0 = arith.constant 0 : i32
    %c0_i32_1 = arith.constant 0 : i32
    return %c0_i32, %c0_i32_0 : i32, i32
  }
  func.func @transform_11(%arg0: i32) -> (i32, i32, i32) {
    %c0_i32 = arith.constant 0 : i32
    %c0_i32_0 = arith.constant 0 : i32
    %c0_i32_1 = arith.constant 0 : i32
    return %arg0, %c0_i32, %c0_i32_0 : i32, i32, i32
  }
}

</mosaic_0001>

<llo_original>
// kernel: efficientnet_forward.3
$region0: #{efficientnet_forward.3}
  #allocation0 [shape = 'u32[]', space=smem, size = 0x4, offset = 0x4, fixed_abs, tag = 'smem constant byte address 0x4 - core index']
  #allocation1 [shape = 'u32[144,128]{1,0:T(1,128)}', space=vmem, size = 0x12000, scoped, tag = 'internal scratch']
  #allocation2 [shape = 'f32[18,18,16]{2,1,0:T(8,128)}', space=vmem, size = 0x36000, scoped, tag = 'scratch operand']
  %s0 = inlined_call_operand.vmem [shape: bf16[2,17,17,12], index: 0, kind: input, shape index: {}]
  %s1 = inlined_call_operand.vmem [shape: bf16[48,16], index: 1, kind: input, shape index: {}]
  %s2 = inlined_call_operand.vmem [shape: f32[1,16], index: 2, kind: input, shape index: {}]
  %s3 = inlined_call_operand.vmem [shape: bf16[144,16], index: 3, kind: input, shape index: {}]
  %s4 = inlined_call_operand.vmem [shape: f32[1,16], index: 4, kind: input, shape index: {}]
  %s5 = inlined_call_operand.vmem [shape: bf16[2,16,16,16], index: 5, kind: output, shape index: {}]
  %s6 = sld [smem:[#allocation0]]
  $region53: #{efficientnet_forward.3} parent=0
    _
  %s8 = ssub.s32 1, %s6
  %s9 = scalar_select 0, %s8, %s6
  loop: start=0, step=1, limit=4
  $region2: #{efficientnet_forward.3} parent=0 // loop_pre_header
    _
  $region3: #{efficientnet_forward.3} parent=0 // loop_header
    %s11 = sphi 0, %s15
    %p12 = scmp.ge.s32.totalorder %s11, 4
    %s21 = sphi 0, %s23
    %s24 = sphi 0, %s21
    %s25 = sphi 0, %s24
    %s41 = sphi 0, %s25
    %s45 = sphi 0, %s45
    %s47 = sphi 0, %s45
    %s48 = sphi 0, %s47
    %s62 = sphi 0, %s48
    %s66 = sphi 0, %s66
    %s68 = sphi 0, %s66
    %s69 = sphi 0, %s68
    %s83 = sphi 0, %s69
    %s87 = sphi 0, %s87
    %s89 = sphi 0, %s87
    %s90 = sphi 0, %s89
    %s104 = sphi 0, %s90
    %s108 = sphi 0, %s108
    %s110 = sphi 0, %s108
    %s111 = sphi 0, %s110
    %s125 = sphi 0, %s111
    %s131 = sphi 0, %s133
    %s134 = sphi 0, %s131
    %s135 = sphi 0, %s134
    %s151 = sphi 0, %s135
  $region4: #{efficientnet_forward.3} parent=0 // loop_header_branch
    %14 = sbr.rel (%p12) target = $region8
  $region5: #{efficientnet_forward.3} parent=0 // loop_body
    %s16 = ssub.s32 %s11, 1
    %s17 = ssub.s32 %s11, 2
    %s18 = sadd.s32 %s11, 1
    %s19 = ssub.s32 %s11, %s18
    %p20 = scmp.eq.s32.totalorder %s19, 0
    %s22 = sadd.s32 %s21, 1
    %s23 = scalar_select %p20, %s21, %s22
    %p26 = pneg %p20
    %p27 = scmp.eq.s32.totalorder %s11, 1
    %p28 = por %p26, %p27
    %p29 = scmp.ne.s32.totalorder %s21, %s24
    %p30 = scmp.eq.s32.totalorder %s11, 0
    %p31 = por %p29, %p30
    %p32 = scmp.ne.s32.totalorder %s21, %s24
    %p33 = scmp.eq.s32.totalorder %s16, 1
    %p34 = por %p32, %p33
    %p35 = scmp.ne.s32.totalorder %s24, %s25
    %p36 = scmp.eq.s32.totalorder %s16, 0
    %p37 = por %p35, %p36
    %p38 = scmp.ne.s32.totalorder %s24, %s25
    %p39 = scmp.eq.s32.totalorder %s17, 1
    %p40 = por %p38, %p39
    %p42 = scmp.ne.s32.totalorder %s25, %s41
    %p43 = scmp.eq.s32.totalorder %s17, 0
    %p44 = por %p42, %p43
    %s46 = sadd.s32 %s45, 1
    %p49 = scmp.eq.s32.totalorder %s11, 1
    %p50 = scmp.ne.s32.totalorder %s45, %s47
    %p51 = scmp.eq.s32.totalorder %s11, 0
    %p52 = por %p50, %p51
    %p53 = scmp.ne.s32.totalorder %s45, %s47
    %p54 = scmp.eq.s32.totalorder %s16, 1
    %p55 = por %p53, %p54
    %p56 = scmp.ne.s32.totalorder %s47, %s48
    %p57 = scmp.eq.s32.totalorder %s16, 0
    %p58 = por %p56, %p57
    %p59 = scmp.ne.s32.totalorder %s47, %s48
    %p60 = scmp.eq.s32.totalorder %s17, 1
    %p61 = por %p59, %p60
    %p63 = scmp.ne.s32.totalorder %s48, %s62
    %p64 = scmp.eq.s32.totalorder %s17, 0
    %p65 = por %p63, %p64
    %s67 = sadd.s32 %s66, 1
    %p70 = scmp.eq.s32.totalorder %s11, 1
    %p71 = scmp.ne.s32.totalorder %s66, %s68
    %p72 = scmp.eq.s32.totalorder %s11, 0
    %p73 = por %p71, %p72
    %p74 = scmp.ne.s32.totalorder %s66, %s68
    %p75 = scmp.eq.s32.totalorder %s16, 1
    %p76 = por %p74, %p75
    %p77 = scmp.ne.s32.totalorder %s68, %s69
    %p78 = scmp.eq.s32.totalorder %s16, 0
    %p79 = por %p77, %p78
    %p80 = scmp.ne.s32.totalorder %s68, %s69
    %p81 = scmp.eq.s32.totalorder %s17, 1
    %p82 = por %p80, %p81
    %p84 = scmp.ne.s32.totalorder %s69, %s83
    %p85 = scmp.eq.s32.totalorder %s17, 0
    %p86 = por %p84, %p85
    %s88 = sadd.s32 %s87, 1
    %p91 = scmp.eq.s32.totalorder %s11, 1
    %p92 = scmp.ne.s32.totalorder %s87, %s89
    %p93 = scmp.eq.s32.totalorder %s11, 0
    %p94 = por %p92, %p93
    %p95 = scmp.ne.s32.totalorder %s87, %s89
    %p96 = scmp.eq.s32.totalorder %s16, 1
    %p97 = por %p95, %p96
    %p98 = scmp.ne.s32.totalorder %s89, %s90
    %p99 = scmp.eq.s32.totalorder %s16, 0
    %p100 = por %p98, %p99
    %p101 = scmp.ne.s32.totalorder %s89, %s90
    %p102 = scmp.eq.s32.totalorder %s17, 1
    %p103 = por %p101, %p102
    %p105 = scmp.ne.s32.totalorder %s90, %s104
    %p106 = scmp.eq.s32.totalorder %s17, 0
    %p107 = por %p105, %p106
    %s109 = sadd.s32 %s108, 1
    %p112 = scmp.eq.s32.totalorder %s11, 1
    %p113 = scmp.ne.s32.totalorder %s108, %s110
    %p114 = scmp.eq.s32.totalorder %s11, 0
    %p115 = por %p113, %p114
    %p116 = scmp.ne.s32.totalorder %s108, %s110
    %p117 = scmp.eq.s32.totalorder %s16, 1
    %p118 = por %p116, %p117
    %p119 = scmp.ne.s32.totalorder %s110, %s111
    %p120 = scmp.eq.s32.totalorder %s16, 0
    %p121 = por %p119, %p120
    %p122 = scmp.ne.s32.totalorder %s110, %s111
    %p123 = scmp.eq.s32.totalorder %s17, 1
    %p124 = por %p122, %p123
    %p126 = scmp.ne.s32.totalorder %s111, %s125
    %p127 = scmp.eq.s32.totalorder %s17, 0
    %p128 = por %p126, %p127
    %s129 = ssub.s32 %s11, %s18
    %p130 = scmp.eq.s32.totalorder %s129, 0
    %s132 = sadd.s32 %s131, 1
    %s133 = scalar_select %p130, %s131, %s132
    %p136 = pneg %p130
    %p137 = scmp.eq.s32.totalorder %s11, 1
    %p138 = por %p136, %p137
    %p139 = scmp.ne.s32.totalorder %s131, %s134
    %p140 = scmp.eq.s32.totalorder %s11, 0
    %p141 = por %p139, %p140
    %p142 = scmp.ne.s32.totalorder %s131, %s134
    %p143 = scmp.eq.s32.totalorder %s16, 1
    %p144 = por %p142, %p143
    %p145 = scmp.ne.s32.totalorder %s134, %s135
    %p146 = scmp.eq.s32.totalorder %s16, 0
    %p147 = por %p145, %p146
    %p148 = scmp.ne.s32.totalorder %s134, %s135
    %p149 = scmp.eq.s32.totalorder %s17, 1
    %p150 = por %p148, %p149
    %p152 = scmp.ne.s32.totalorder %s135, %s151
    %p153 = scmp.eq.s32.totalorder %s17, 0
    %p154 = por %p152, %p153
    %p155 = scmp.le.s32.totalorder 1, %s11
    %p156 = scmp.lt.s32.totalorder %s11, 3
    %p157 = pnand %p155, %p156
    %p158 = pneg %p157
    // Predicated region
    $region9: #{efficientnet_forward.3} parent=5 // pred_check
      _
    $region10: #{efficientnet_forward.3} parent=5 // pred_check_branch
      %160 = sbr.rel (%p157) target = $region12
    $region11: #{efficientnet_forward.3} parent=5 // pred_region
      %s161 = ssub.s32 %s11, 1
      // Predicated region
      $region13: #{efficientnet_forward.3} parent=11 // pred_check
        %p162 = pneg %p58
      $region14: #{efficientnet_forward.3} parent=11 // pred_check_branch
        %164 = sbr.rel (%p162) target = $region16
      $region15: #{efficientnet_forward.3} parent=11 // pred_region
        _
      $region16: #{efficientnet_forward.3} parent=11 // pred_fallthru
        _
      // Predicated region
      $region17: #{efficientnet_forward.3} parent=11 // pred_check
        %p165 = pneg %p79
      $region18: #{efficientnet_forward.3} parent=11 // pred_check_branch
        %167 = sbr.rel (%p165) target = $region20
      $region19: #{efficientnet_forward.3} parent=11 // pred_region
        _
      $region20: #{efficientnet_forward.3} parent=11 // pred_fallthru
        _
      // Predicated region
      $region21: #{efficientnet_forward.3} parent=11 // pred_check
        %p168 = pneg %p100
      $region22: #{efficientnet_forward.3} parent=11 // pred_check_branch
        %170 = sbr.rel (%p168) target = $region24
      $region23: #{efficientnet_forward.3} parent=11 // pred_region
        _
      $region24: #{efficientnet_forward.3} parent=11 // pred_fallthru
        _
      // Predicated region
      $region25: #{efficientnet_forward.3} parent=11 // pred_check
        %p171 = pneg %p121
      $region26: #{efficientnet_forward.3} parent=11 // pred_check_branch
        %173 = sbr.rel (%p171) target = $region28
      $region27: #{efficientnet_forward.3} parent=11 // pred_region
        _
      $region28: #{efficientnet_forward.3} parent=11 // pred_fallthru
        _
    $region12: #{efficientnet_forward.3} parent=5 // pred_fallthru
      _
    %p174 = scmp.lt.s32.totalorder %s11, 2
    // Predicated region
    $region29: #{efficientnet_forward.3} parent=5 // pred_check
      %p175 = pneg %p174
    $region30: #{efficientnet_forward.3} parent=5 // pred_check_branch
      %177 = sbr.rel (%p175) target = $region32
    $region31: #{efficientnet_forward.3} parent=5 // pred_region
      // Predicated region
      $region33: #{efficientnet_forward.3} parent=31 // pred_check
        %p178 = pneg %p31
      $region34: #{efficientnet_forward.3} parent=31 // pred_check_branch
        %180 = sbr.rel (%p178) target = $region36
      $region35: #{efficientnet_forward.3} parent=31 // pred_region
        %p181 = scmp.lt.s32.totalorder %s11, 1
        %s182 = scalar_select %p181, %s11, 1
        %s183 = smul.addr %s182, 51
        %s184 = smul.addr %s183, 4
        %s185 = scalar_lea.vmem %s0, %s184
      $region36: #{efficientnet_forward.3} parent=31 // pred_fallthru
        _
    $region32: #{efficientnet_forward.3} parent=5 // pred_fallthru
      _
    %p186 = scmp.le.s32.totalorder 1, %s11
    %p187 = scmp.lt.s32.totalorder %s11, 3
    %p188 = pnand %p186, %p187
    %p189 = pneg %p188
    // Predicated region
    $region37: #{efficientnet_forward.3} parent=5 // pred_check
      _
    $region38: #{efficientnet_forward.3} parent=5 // pred_check_branch
      %191 = sbr.rel (%p188) target = $region40
    $region39: #{efficientnet_forward.3} parent=5 // pred_region
      %s192 = ssub.s32 %s11, 1
      %p193 = scmp.lt.s32.totalorder %s16, 1
      %s194 = scalar_select %p193, %s16, 1
      %s195 = smul.addr %s194, 51
      %s196 = smul.addr %s195, 4
      %s197 = scalar_lea.vmem %s0, %s196
      %p198 = pneg %p37
      %p199 = pneg %p34
      %p200 = pneg %p58
      %p201 = pneg %p55
      %p202 = pneg %p79
      %p203 = pneg %p76
      %p204 = pneg %p100
      %p205 = pneg %p97
      %p206 = pneg %p121
      %p207 = pneg %p118
      %p208 = pneg %p147
      %p209 = pneg %p144
      %p210 = scmp.lt.s32.totalorder %s16, 1
      %s211 = scalar_select %p210, %s16, 1
      %s212 = smul.addr %s211, 32
      %s213 = smul.addr %s212, 4
      %s214 = scalar_lea.vmem %s5, %s213
      %p215 = scmp.lt.s32.totalorder %s16, 1
      %s216 = scalar_select %p215, %s16, 1
      %s217 = smul.addr %s216, 51
      %s218 = smul.addr %s217, 4
      %s219 = scalar_lea.vmem %s0, %s218
      %p220 = scmp.lt.s32.totalorder %s16, 1
      %s221 = scalar_select %p220, %s16, 1
      %s222 = smul.addr %s221, 32
      %s223 = smul.addr %s222, 4
      %s224 = scalar_lea.vmem %s5, %s223
      %v226 = vld [vmem:[%s219] sm:$0xf]
      %v227 = vld [vmem:[%s219 + $0x4] sm:$0xf]
      %v228 = vld [vmem:[%s219 + $0x8] sm:$0x1]
      %v229 = vld [vmem:[%s219 + $0xc] sm:$0xf]
      %v230 = vld [vmem:[%s219 + $0x10] sm:$0xf]
      %v231 = vld [vmem:[%s219 + $0x14] sm:$0x1]
      %v232 = vld [vmem:[%s219 + $0x18] sm:$0xf]
      %v233 = vld [vmem:[%s219 + $0x1c] sm:$0xf]
      %v234 = vld [vmem:[%s219 + $0x20] sm:$0x1]
      %v235 = vld [vmem:[%s219 + $0x24] sm:$0xf]
      %v236 = vld [vmem:[%s219 + $0x28] sm:$0xf]
      %v237 = vld [vmem:[%s219 + $0x2c] sm:$0x1]
      %v238 = vld [vmem:[%s219 + $0x30] sm:$0xf]
      %v239 = vld [vmem:[%s219 + $0x34] sm:$0xf]
      %v240 = vld [vmem:[%s219 + $0x38] sm:$0x1]
      %v241 = vld [vmem:[%s219 + $0x3c] sm:$0xf]
      %v242 = vld [vmem:[%s219 + $0x40] sm:$0xf]
      %v243 = vld [vmem:[%s219 + $0x44] sm:$0x1]
      %v244 = vld [vmem:[%s219 + $0x48] sm:$0xf]
      %v245 = vld [vmem:[%s219 + $0x4c] sm:$0xf]
      %v246 = vld [vmem:[%s219 + $0x50] sm:$0x1]
      %v247 = vld [vmem:[%s219 + $0x54] sm:$0xf]
      %v248 = vld [vmem:[%s219 + $0x58] sm:$0xf]
      %v249 = vld [vmem:[%s219 + $0x5c] sm:$0x1]
      %v250 = vld [vmem:[%s219 + $0x60] sm:$0xf]
      %v251 = vld [vmem:[%s219 + $0x64] sm:$0xf]
      %v252 = vld [vmem:[%s219 + $0x68] sm:$0x1]
      %v253 = vld [vmem:[%s219 + $0x6c] sm:$0xf]
      %v254 = vld [vmem:[%s219 + $0x70] sm:$0xf]
      %v255 = vld [vmem:[%s219 + $0x74] sm:$0x1]
      %v256 = vld [vmem:[%s219 + $0x78] sm:$0xf]
      %v257 = vld [vmem:[%s219 + $0x7c] sm:$0xf]
      %v258 = vld [vmem:[%s219 + $0x80] sm:$0x1]
      %v259 = vld [vmem:[%s219 + $0x84] sm:$0xf]
      %v260 = vld [vmem:[%s219 + $0x88] sm:$0xf]
      %v261 = vld [vmem:[%s219 + $0x8c] sm:$0x1]
      %v262 = vld [vmem:[%s219 + $0x90] sm:$0xf]
      %v263 = vld [vmem:[%s219 + $0x94] sm:$0xf]
      %v264 = vld [vmem:[%s219 + $0x98] sm:$0x1]
      %v265 = vld [vmem:[%s219 + $0x9c] sm:$0xf]
      %v266 = vld [vmem:[%s219 + $0xa0] sm:$0xf]
      %v267 = vld [vmem:[%s219 + $0xa4] sm:$0x1]
      %v268 = vld [vmem:[%s219 + $0xa8] sm:$0xf]
      %v269 = vld [vmem:[%s219 + $0xac] sm:$0xf]
      %v270 = vld [vmem:[%s219 + $0xb0] sm:$0x1]
      %v271 = vld [vmem:[%s219 + $0xb4] sm:$0xf]
      %v272 = vld [vmem:[%s219 + $0xb8] sm:$0xf]
      %v273 = vld [vmem:[%s219 + $0xbc] sm:$0x1]
      %v274 = vld [vmem:[%s219 + $0xc0] sm:$0xf]
      %v275 = vld [vmem:[%s219 + $0xc4] sm:$0xf]
      %v276 = vld [vmem:[%s219 + $0xc8] sm:$0x1]
      %vm277 = vsmask.f32 3328
      %vm278 = vsmask.f32 7440
      %vm279 = vmor %vm277, %vm278
      %v281 = vshrl.u32 %v226, 16
      %v283 = vrot.slane %v281, 4
      %v284 = vshll.u32 %v226, 16
      %v286 = vrot.slane %v284, 5
      %v287 = vor.u32 %v283, %v286
      %v288 = vrot.slane %v287, 4
      %v290 = vshll.u32 %v227, 16
      %v292 = vrot.slane %v290, 5
      %v293 = vsel %vm279, %v288, %v292
      %v294 = vshrl.u32 %v227, 16
      %v296 = vrot.slane %v294, 4
      %v297 = vor.u32 %v296, %v292
      %v298 = vrot.slane %v297, 4
      %v300 = vshll.u32 %v228, 16
      %v302 = vrot.slane %v300, 5
      %v303 = vsel %vm279, %v298, %v302
      %v305 = vshrl.u32 %v229, 16
      %v307 = vrot.slane %v305, 4
      %v308 = vshll.u32 %v229, 16
      %v310 = vrot.slane %v308, 5
      %v311 = vor.u32 %v307, %v310
      %v312 = vrot.slane %v311, 4
      %v314 = vshll.u32 %v230, 16
      %v316 = vrot.slane %v314, 5
      %v317 = vsel %vm279, %v312, %v316
      %v318 = vshrl.u32 %v230, 16
      %v320 = vrot.slane %v318, 4
      %v321 = vor.u32 %v320, %v316
      %v322 = vrot.slane %v321, 4
      %v324 = vshll.u32 %v231, 16
      %v326 = vrot.slane %v324, 5
      %v327 = vsel %vm279, %v322, %v326
      %v329 = vshrl.u32 %v232, 16
      %v331 = vrot.slane %v329, 4
      %v332 = vshll.u32 %v232, 16
      %v334 = vrot.slane %v332, 5
      %v335 = vor.u32 %v331, %v334
      %v336 = vrot.slane %v335, 4
      %v338 = vshll.u32 %v233, 16
      %v340 = vrot.slane %v338, 5
      %v341 = vsel %vm279, %v336, %v340
      %v342 = vshrl.u32 %v233, 16
      %v344 = vrot.slane %v342, 4
      %v345 = vor.u32 %v344, %v340
      %v346 = vrot.slane %v345, 4
      %v348 = vshll.u32 %v234, 16
      %v350 = vrot.slane %v348, 5
      %v351 = vsel %vm279, %v346, %v350
      %v353 = vshrl.u32 %v235, 16
      %v355 = vrot.slane %v353, 4
      %v356 = vshll.u32 %v235, 16
      %v358 = vrot.slane %v356, 5
      %v359 = vor.u32 %v355, %v358
      %v360 = vrot.slane %v359, 4
      %v362 = vshll.u32 %v236, 16
      %v364 = vrot.slane %v362, 5
      %v365 = vsel %vm279, %v360, %v364
      %v366 = vshrl.u32 %v236, 16
      %v368 = vrot.slane %v366, 4
      %v369 = vor.u32 %v368, %v364
      %v370 = vrot.slane %v369, 4
      %v372 = vshll.u32 %v237, 16
      %v374 = vrot.slane %v372, 5
      %v375 = vsel %vm279, %v370, %v374
      %v377 = vshrl.u32 %v238, 16
      %v379 = vrot.slane %v377, 4
      %v380 = vshll.u32 %v238, 16
      %v382 = vrot.slane %v380, 5
      %v383 = vor.u32 %v379, %v382
      %v384 = vrot.slane %v383, 4
      %v386 = vshll.u32 %v239, 16
      %v388 = vrot.slane %v386, 5
      %v389 = vsel %vm279, %v384, %v388
      %v390 = vshrl.u32 %v239, 16
      %v392 = vrot.slane %v390, 4
      %v393 = vor.u32 %v392, %v388
      %v394 = vrot.slane %v393, 4
      %v396 = vshll.u32 %v240, 16
      %v398 = vrot.slane %v396, 5
      %v399 = vsel %vm279, %v394, %v398
      %v401 = vshrl.u32 %v241, 16
      %v403 = vrot.slane %v401, 4
      %v404 = vshll.u32 %v241, 16
      %v406 = vrot.slane %v404, 5
      %v407 = vor.u32 %v403, %v406
      %v408 = vrot.slane %v407, 4
      %v410 = vshll.u32 %v242, 16
      %v412 = vrot.slane %v410, 5
      %v413 = vsel %vm279, %v408, %v412
      %v414 = vshrl.u32 %v242, 16
      %v416 = vrot.slane %v414, 4
      %v417 = vor.u32 %v416, %v412
      %v418 = vrot.slane %v417, 4
      %v420 = vshll.u32 %v243, 16
      %v422 = vrot.slane %v420, 5
      %v423 = vsel %vm279, %v418, %v422
      %v425 = vshrl.u32 %v244, 16
      %v427 = vrot.slane %v425, 4
      %v428 = vshll.u32 %v244, 16
      %v430 = vrot.slane %v428, 5
      %v431 = vor.u32 %v427, %v430
      %v432 = vrot.slane %v431, 4
      %v434 = vshll.u32 %v245, 16
      %v436 = vrot.slane %v434, 5
      %v437 = vsel %vm279, %v432, %v436
      %v438 = vshrl.u32 %v245, 16
      %v440 = vrot.slane %v438, 4
      %v441 = vor.u32 %v440, %v436
      %v442 = vrot.slane %v441, 4
      %v444 = vshll.u32 %v246, 16
      %v446 = vrot.slane %v444, 5
      %v447 = vsel %vm279, %v442, %v446
      %v449 = vshrl.u32 %v247, 16
      %v451 = vrot.slane %v449, 4
      %v452 = vshll.u32 %v247, 16
      %v454 = vrot.slane %v452, 5
      %v455 = vor.u32 %v451, %v454
      %v456 = vrot.slane %v455, 4
      %v458 = vshll.u32 %v248, 16
      %v460 = vrot.slane %v458, 5
      %v461 = vsel %vm279, %v456, %v460
      %v462 = vshrl.u32 %v248, 16
      %v464 = vrot.slane %v462, 4
      %v465 = vor.u32 %v464, %v460
      %v466 = vrot.slane %v465, 4
      %v468 = vshll.u32 %v249, 16
      %v470 = vrot.slane %v468, 5
      %v471 = vsel %vm279, %v466, %v470
      %v473 = vshrl.u32 %v250, 16
      %v475 = vrot.slane %v473, 4
      %v476 = vshll.u32 %v250, 16
      %v478 = vrot.slane %v476, 5
      %v479 = vor.u32 %v475, %v478
      %v480 = vrot.slane %v479, 4
      %v482 = vshll.u32 %v251, 16
      %v484 = vrot.slane %v482, 5
      %v485 = vsel %vm279, %v480, %v484
      %v486 = vshrl.u32 %v251, 16
      %v488 = vrot.slane %v486, 4
      %v489 = vor.u32 %v488, %v484
      %v490 = vrot.slane %v489, 4
      %v492 = vshll.u32 %v252, 16
      %v494 = vrot.slane %v492, 5
      %v495 = vsel %vm279, %v490, %v494
      %v497 = vshrl.u32 %v253, 16
      %v499 = vrot.slane %v497, 4
      %v500 = vshll.u32 %v253, 16
      %v502 = vrot.slane %v500, 5
      %v503 = vor.u32 %v499, %v502
      %v504 = vrot.slane %v503, 4
      %v506 = vshll.u32 %v254, 16
      %v508 = vrot.slane %v506, 5
      %v509 = vsel %vm279, %v504, %v508
      %v510 = vshrl.u32 %v254, 16
      %v512 = vrot.slane %v510, 4
      %v513 = vor.u32 %v512, %v508
      %v514 = vrot.slane %v513, 4
      %v516 = vshll.u32 %v255, 16
      %v518 = vrot.slane %v516, 5
      %v519 = vsel %vm279, %v514, %v518
      %v521 = vshrl.u32 %v256, 16
      %v523 = vrot.slane %v521, 4
      %v524 = vshll.u32 %v256, 16
      %v526 = vrot.slane %v524, 5
      %v527 = vor.u32 %v523, %v526
      %v528 = vrot.slane %v527, 4
      %v530 = vshll.u32 %v257, 16
      %v532 = vrot.slane %v530, 5
      %v533 = vsel %vm279, %v528, %v532
      %v534 = vshrl.u32 %v257, 16
      %v536 = vrot.slane %v534, 4
      %v537 = vor.u32 %v536, %v532
      %v538 = vrot.slane %v537, 4
      %v540 = vshll.u32 %v258, 16
      %v542 = vrot.slane %v540, 5
      %v543 = vsel %vm279, %v538, %v542
      %v545 = vshrl.u32 %v259, 16
      %v547 = vrot.slane %v545, 4
      %v548 = vshll.u32 %v259, 16
      %v550 = vrot.slane %v548, 5
      %v551 = vor.u32 %v547, %v550
      %v552 = vrot.slane %v551, 4
      %v554 = vshll.u32 %v260, 16
      %v556 = vrot.slane %v554, 5
      %v557 = vsel %vm279, %v552, %v556
      %v558 = vshrl.u32 %v260, 16
      %v560 = vrot.slane %v558, 4
      %v561 = vor.u32 %v560, %v556
      %v562 = vrot.slane %v561, 4
      %v564 = vshll.u32 %v261, 16
      %v566 = vrot.slane %v564, 5
      %v567 = vsel %vm279, %v562, %v566
      %v569 = vshrl.u32 %v262, 16
      %v571 = vrot.slane %v569, 4
      %v572 = vshll.u32 %v262, 16
      %v574 = vrot.slane %v572, 5
      %v575 = vor.u32 %v571, %v574
      %v576 = vrot.slane %v575, 4
      %v578 = vshll.u32 %v263, 16
      %v580 = vrot.slane %v578, 5
      %v581 = vsel %vm279, %v576, %v580
      %v582 = vshrl.u32 %v263, 16
      %v584 = vrot.slane %v582, 4
      %v585 = vor.u32 %v584, %v580
      %v586 = vrot.slane %v585, 4
      %v588 = vshll.u32 %v264, 16
      %v590 = vrot.slane %v588, 5
      %v591 = vsel %vm279, %v586, %v590
      %v593 = vshrl.u32 %v265, 16
      %v595 = vrot.slane %v593, 4
      %v596 = vshll.u32 %v265, 16
      %v598 = vrot.slane %v596, 5
      %v599 = vor.u32 %v595, %v598
      %v600 = vrot.slane %v599, 4
      %v602 = vshll.u32 %v266, 16
      %v604 = vrot.slane %v602, 5
      %v605 = vsel %vm279, %v600, %v604
      %v606 = vshrl.u32 %v266, 16
      %v608 = vrot.slane %v606, 4
      %v609 = vor.u32 %v608, %v604
      %v610 = vrot.slane %v609, 4
      %v612 = vshll.u32 %v267, 16
      %v614 = vrot.slane %v612, 5
      %v615 = vsel %vm279, %v610, %v614
      %v617 = vshrl.u32 %v268, 16
      %v619 = vrot.slane %v617, 4
      %v620 = vshll.u32 %v268, 16
      %v622 = vrot.slane %v620, 5
      %v623 = vor.u32 %v619, %v622
      %v624 = vrot.slane %v623, 4
      %v626 = vshll.u32 %v269, 16
      %v628 = vrot.slane %v626, 5
      %v629 = vsel %vm279, %v624, %v628
      %v630 = vshrl.u32 %v269, 16
      %v632 = vrot.slane %v630, 4
      %v633 = vor.u32 %v632, %v628
      %v634 = vrot.slane %v633, 4
      %v636 = vshll.u32 %v270, 16
      %v638 = vrot.slane %v636, 5
      %v639 = vsel %vm279, %v634, %v638
      %v641 = vshrl.u32 %v271, 16
      %v643 = vrot.slane %v641, 4
      %v644 = vshll.u32 %v271, 16
      %v646 = vrot.slane %v644, 5
      %v647 = vor.u32 %v643, %v646
      %v648 = vrot.slane %v647, 4
      %v650 = vshll.u32 %v272, 16
      %v652 = vrot.slane %v650, 5
      %v653 = vsel %vm279, %v648, %v652
      %v654 = vshrl.u32 %v272, 16
      %v656 = vrot.slane %v654, 4
      %v657 = vor.u32 %v656, %v652
      %v658 = vrot.slane %v657, 4
      %v660 = vshll.u32 %v273, 16
      %v662 = vrot.slane %v660, 5
      %v663 = vsel %vm279, %v658, %v662
      %v665 = vshrl.u32 %v274, 16
      %v667 = vrot.slane %v665, 4
      %v668 = vshll.u32 %v274, 16
      %v670 = vrot.slane %v668, 5
      %v671 = vor.u32 %v667, %v670
      %v672 = vrot.slane %v671, 4
      %v674 = vshll.u32 %v275, 16
      %v676 = vrot.slane %v674, 5
      %v677 = vsel %vm279, %v672, %v676
      %v678 = vshrl.u32 %v275, 16
      %v680 = vrot.slane %v678, 4
      %v681 = vor.u32 %v680, %v676
      %v682 = vrot.slane %v681, 4
      %v684 = vshll.u32 %v276, 16
      %v686 = vrot.slane %v684, 5
      %v687 = vsel %vm279, %v682, %v686
      %v720 = vunpack.c.l.b16 %v226
      %v721 = vunpack.c.l.b16 %v227
      %v722 = vunpack.c.l.b16 %v229
      %v723 = vunpack.c.l.b16 %v230
      %v724 = vunpack.c.l.b16 %v232
      %v725 = vunpack.c.l.b16 %v233
      %v726 = vunpack.c.l.b16 %v235
      %v727 = vunpack.c.l.b16 %v236
      %v728 = vunpack.c.l.b16 %v238
      %v729 = vunpack.c.l.b16 %v239
      %v730 = vunpack.c.l.b16 %v241
      %v731 = vunpack.c.l.b16 %v242
      %v732 = vunpack.c.l.b16 %v244
      %v733 = vunpack.c.l.b16 %v245
      %v734 = vunpack.c.l.b16 %v247
      %v735 = vunpack.c.l.b16 %v248
      %v736 = vunpack.c.l.b16 %v250
      %v737 = vunpack.c.l.b16 %v251
      %v738 = vunpack.c.l.b16 %v253
      %v739 = vunpack.c.l.b16 %v254
      %v740 = vunpack.c.l.b16 %v256
      %v741 = vunpack.c.l.b16 %v257
      %v742 = vunpack.c.l.b16 %v259
      %v743 = vunpack.c.l.b16 %v260
      %v744 = vunpack.c.l.b16 %v262
      %v745 = vunpack.c.l.b16 %v263
      %v746 = vunpack.c.l.b16 %v265
      %v747 = vunpack.c.l.b16 %v266
      %v748 = vunpack.c.l.b16 %v268
      %v749 = vunpack.c.l.b16 %v269
      %v750 = vunpack.c.l.b16 %v271
      %v751 = vunpack.c.l.b16 %v272
      %v752 = vpack.c.b16 %v721, %v720
      %v753 = vpack.c.b16 %v723, %v722
      %v754 = vpack.c.b16 %v725, %v724
      %v755 = vpack.c.b16 %v727, %v726
      %v756 = vpack.c.b16 %v729, %v728
      %v757 = vpack.c.b16 %v731, %v730
      %v758 = vpack.c.b16 %v733, %v732
      %v759 = vpack.c.b16 %v735, %v734
      %v760 = vpack.c.b16 %v737, %v736
      %v761 = vpack.c.b16 %v739, %v738
      %v762 = vpack.c.b16 %v741, %v740
      %v763 = vpack.c.b16 %v743, %v742
      %v764 = vpack.c.b16 %v745, %v744
      %v765 = vpack.c.b16 %v747, %v746
      %v766 = vpack.c.b16 %v749, %v748
      %v767 = vpack.c.b16 %v751, %v750
      %v768 = vunpack.c.l.b16 %v293
      %v769 = vunpack.c.l.b16 %v303
      %v770 = vunpack.c.l.b16 %v317
      %v771 = vunpack.c.l.b16 %v327
      %v772 = vunpack.c.l.b16 %v341
      %v773 = vunpack.c.l.b16 %v351
      %v774 = vunpack.c.l.b16 %v365
      %v775 = vunpack.c.l.b16 %v375
      %v776 = vunpack.c.l.b16 %v389
      %v777 = vunpack.c.l.b16 %v399
      %v778 = vunpack.c.l.b16 %v413
      %v779 = vunpack.c.l.b16 %v423
      %v780 = vunpack.c.l.b16 %v437
      %v781 = vunpack.c.l.b16 %v447
      %v782 = vunpack.c.l.b16 %v461
      %v783 = vunpack.c.l.b16 %v471
      %v784 = vunpack.c.l.b16 %v485
      %v785 = vunpack.c.l.b16 %v495
      %v786 = vunpack.c.l.b16 %v509
      %v787 = vunpack.c.l.b16 %v519
      %v788 = vunpack.c.l.b16 %v533
      %v789 = vunpack.c.l.b16 %v543
      %v790 = vunpack.c.l.b16 %v557
      %v791 = vunpack.c.l.b16 %v567
      %v792 = vunpack.c.l.b16 %v581
      %v793 = vunpack.c.l.b16 %v591
      %v794 = vunpack.c.l.b16 %v605
      %v795 = vunpack.c.l.b16 %v615
      %v796 = vunpack.c.l.b16 %v629
      %v797 = vunpack.c.l.b16 %v639
      %v798 = vunpack.c.l.b16 %v653
      %v799 = vunpack.c.l.b16 %v663
      %v800 = vpack.c.b16 %v769, %v768
      %v801 = vpack.c.b16 %v771, %v770
      %v802 = vpack.c.b16 %v773, %v772
      %v803 = vpack.c.b16 %v775, %v774
      %v804 = vpack.c.b16 %v777, %v776
      %v805 = vpack.c.b16 %v779, %v778
      %v806 = vpack.c.b16 %v781, %v780
      %v807 = vpack.c.b16 %v783, %v782
      %v808 = vpack.c.b16 %v785, %v784
      %v809 = vpack.c.b16 %v787, %v786
      %v810 = vpack.c.b16 %v789, %v788
      %v811 = vpack.c.b16 %v791, %v790
      %v812 = vpack.c.b16 %v793, %v792
      %v813 = vpack.c.b16 %v795, %v794
      %v814 = vpack.c.b16 %v797, %v796
      %v815 = vpack.c.b16 %v799, %v798
      %816 = vrot.lane.b32.xlu0 %v800, 12
      %v817 = vpop.permute.xlu0 %816
      %818 = vrot.lane.b32.xlu0 %v801, 12
      %v819 = vpop.permute.xlu0 %818
      %820 = vrot.lane.b32.xlu0 %v802, 12
      %v821 = vpop.permute.xlu0 %820
      %822 = vrot.lane.b32.xlu0 %v803, 12
      %v823 = vpop.permute.xlu0 %822
      %824 = vrot.lane.b32.xlu0 %v804, 12
      %v825 = vpop.permute.xlu0 %824
      %826 = vrot.lane.b32.xlu0 %v805, 12
      %v827 = vpop.permute.xlu0 %826
      %828 = vrot.lane.b32.xlu0 %v806, 12
      %v829 = vpop.permute.xlu0 %828
      %830 = vrot.lane.b32.xlu0 %v807, 12
      %v831 = vpop.permute.xlu0 %830
      %832 = vrot.lane.b32.xlu0 %v808, 12
      %v833 = vpop.permute.xlu0 %832
      %834 = vrot.lane.b32.xlu0 %v809, 12
      %v835 = vpop.permute.xlu0 %834
      %836 = vrot.lane.b32.xlu0 %v810, 12
      %v837 = vpop.permute.xlu0 %836
      %838 = vrot.lane.b32.xlu0 %v811, 12
      %v839 = vpop.permute.xlu0 %838
      %840 = vrot.lane.b32.xlu0 %v812, 12
      %v841 = vpop.permute.xlu0 %840
      %842 = vrot.lane.b32.xlu0 %v813, 12
      %v843 = vpop.permute.xlu0 %842
      %844 = vrot.lane.b32.xlu0 %v814, 12
      %v845 = vpop.permute.xlu0 %844
      %846 = vrot.lane.b32.xlu0 %v815, 12
      %v847 = vpop.permute.xlu0 %846
      %v850 = vunpack.c.l.b16 %v274
      %v851 = vunpack.c.l.b16 %v275
      %v852 = vpack.c.b16 %v851, %v850
      %853 = vrot.lane.b32.xlu0 %v753, 24
      %v854 = vpop.permute.xlu0 %853
      %855 = vrot.lane.b32.xlu0 %v754, 24
      %v856 = vpop.permute.xlu0 %855
      %857 = vrot.lane.b32.xlu0 %v755, 24
      %v858 = vpop.permute.xlu0 %857
      %859 = vrot.lane.b32.xlu0 %v756, 24
      %v860 = vpop.permute.xlu0 %859
      %861 = vrot.lane.b32.xlu0 %v757, 24
      %v862 = vpop.permute.xlu0 %861
      %863 = vrot.lane.b32.xlu0 %v758, 24
      %v864 = vpop.permute.xlu0 %863
      %865 = vrot.lane.b32.xlu0 %v759, 24
      %v866 = vpop.permute.xlu0 %865
      %867 = vrot.lane.b32.xlu0 %v760, 24
      %v868 = vpop.permute.xlu0 %867
      %869 = vrot.lane.b32.xlu0 %v761, 24
      %v870 = vpop.permute.xlu0 %869
      %871 = vrot.lane.b32.xlu0 %v762, 24
      %v872 = vpop.permute.xlu0 %871
      %873 = vrot.lane.b32.xlu0 %v763, 24
      %v874 = vpop.permute.xlu0 %873
      %875 = vrot.lane.b32.xlu0 %v764, 24
      %v876 = vpop.permute.xlu0 %875
      %877 = vrot.lane.b32.xlu0 %v765, 24
      %v878 = vpop.permute.xlu0 %877
      %879 = vrot.lane.b32.xlu0 %v766, 24
      %v880 = vpop.permute.xlu0 %879
      %881 = vrot.lane.b32.xlu0 %v767, 24
      %v882 = vpop.permute.xlu0 %881
      %883 = vrot.lane.b32.xlu0 %v852, 24
      %v884 = vpop.permute.xlu0 %883
      %v885 = vunpack.c.l.b16 %v677
      %v886 = vunpack.c.l.b16 %v687
      %v887 = vpack.c.b16 %v886, %v885
      %888 = vrot.lane.b32.xlu0 %v801, 36
      %v889 = vpop.permute.xlu0 %888
      %890 = vrot.lane.b32.xlu0 %v802, 36
      %v891 = vpop.permute.xlu0 %890
      %892 = vrot.lane.b32.xlu0 %v803, 36
      %v893 = vpop.permute.xlu0 %892
      %894 = vrot.lane.b32.xlu0 %v804, 36
      %v895 = vpop.permute.xlu0 %894
      %896 = vrot.lane.b32.xlu0 %v805, 36
      %v897 = vpop.permute.xlu0 %896
      %898 = vrot.lane.b32.xlu0 %v806, 36
      %v899 = vpop.permute.xlu0 %898
      %900 = vrot.lane.b32.xlu0 %v807, 36
      %v901 = vpop.permute.xlu0 %900
      %902 = vrot.lane.b32.xlu0 %v808, 36
      %v903 = vpop.permute.xlu0 %902
      %904 = vrot.lane.b32.xlu0 %v809, 36
      %v905 = vpop.permute.xlu0 %904
      %906 = vrot.lane.b32.xlu0 %v810, 36
      %v907 = vpop.permute.xlu0 %906
      %908 = vrot.lane.b32.xlu0 %v811, 36
      %v909 = vpop.permute.xlu0 %908
      %910 = vrot.lane.b32.xlu0 %v812, 36
      %v911 = vpop.permute.xlu0 %910
      %912 = vrot.lane.b32.xlu0 %v813, 36
      %v913 = vpop.permute.xlu0 %912
      %914 = vrot.lane.b32.xlu0 %v814, 36
      %v915 = vpop.permute.xlu0 %914
      %916 = vrot.lane.b32.xlu0 %v815, 36
      %v917 = vpop.permute.xlu0 %916
      %918 = vrot.lane.b32.xlu0 %v887, 36
      %v919 = vpop.permute.xlu0 %918
      %vm920 = vcmask 97280
      %v923 = vsel %vm920, %v752, %v817
      %v926 = vsel %vm920, %v753, %v819
      %v929 = vsel %vm920, %v754, %v821
      %v932 = vsel %vm920, %v755, %v823
      %v935 = vsel %vm920, %v756, %v825
      %v938 = vsel %vm920, %v757, %v827
      %v941 = vsel %vm920, %v758, %v829
      %v944 = vsel %vm920, %v759, %v831
      %v947 = vsel %vm920, %v760, %v833
      %v950 = vsel %vm920, %v761, %v835
      %v953 = vsel %vm920, %v762, %v837
      %v956 = vsel %vm920, %v763, %v839
      %v959 = vsel %vm920, %v764, %v841
      %v962 = vsel %vm920, %v765, %v843
      %v965 = vsel %vm920, %v766, %v845
      %v968 = vsel %vm920, %v767, %v847
      %vm969 = vcmask 195584
      %v971 = vsel %vm969, %v923, %v854
      %v973 = vsel %vm969, %v926, %v856
      %v975 = vsel %vm969, %v929, %v858
      %v977 = vsel %vm969, %v932, %v860
      %v979 = vsel %vm969, %v935, %v862
      %v981 = vsel %vm969, %v938, %v864
      %v983 = vsel %vm969, %v941, %v866
      %v985 = vsel %vm969, %v944, %v868
      %v987 = vsel %vm969, %v947, %v870
      %v989 = vsel %vm969, %v950, %v872
      %v991 = vsel %vm969, %v953, %v874
      %v993 = vsel %vm969, %v956, %v876
      %v995 = vsel %vm969, %v959, %v878
      %v997 = vsel %vm969, %v962, %v880
      %v999 = vsel %vm969, %v965, %v882
      %v1001 = vsel %vm969, %v968, %v884
      %vm1002 = vcmask 293888
      %v1004 = vsel %vm1002, %v971, %v889
      %v1006 = vsel %vm1002, %v973, %v891
      %v1008 = vsel %vm1002, %v975, %v893
      %v1010 = vsel %vm1002, %v977, %v895
      %v1012 = vsel %vm1002, %v979, %v897
      %v1014 = vsel %vm1002, %v981, %v899
      %v1016 = vsel %vm1002, %v983, %v901
      %v1018 = vsel %vm1002, %v985, %v903
      %v1020 = vsel %vm1002, %v987, %v905
      %v1022 = vsel %vm1002, %v989, %v907
      %v1024 = vsel %vm1002, %v991, %v909
      %v1026 = vsel %vm1002, %v993, %v911
      %v1028 = vsel %vm1002, %v995, %v913
      %v1030 = vsel %vm1002, %v997, %v915
      %v1032 = vsel %vm1002, %v999, %v917
      %v1034 = vsel %vm1002, %v1001, %v919
      %v1035 = vld [vmem:[%s1] sm:$0xf]
      %v1036 = vld [vmem:[%s1 + $0x4] sm:$0xf]
      %v1037 = vld [vmem:[%s1 + $0x8] sm:$0xf]
      %v1038 = vld [vmem:[%s1 + $0xc] sm:$0xf]
      %v1039 = vld [vmem:[%s1 + $0x10] sm:$0xf]
      %v1040 = vld [vmem:[%s1 + $0x14] sm:$0xf]
      %v1041 = vld [vmem:[%s2] sm:$0x1]
      %v1043 = vlaneseq
      %v1044 = vshrl.u32 %v1043, 7
      %v1045 = vsub.s32 0, %v1044
      %v1046 = vrot.slane %v1041, %v1045
      %v1054 = vunpack.c.l.b16 %v1035
      %v1055 = vunpack.c.l.b16 %v1036
      %v1056 = vunpack.c.l.b16 %v1037
      %v1057 = vunpack.c.l.b16 %v1038
      %v1058 = vunpack.c.l.b16 %v1039
      %v1059 = vunpack.c.l.b16 %v1040
      %v1060 = vpack.c.b16 %v1055, %v1054
      %v1061 = vpack.c.b16 %v1057, %v1056
      %v1062 = vpack.c.b16 %v1059, %v1058
      %vm1066 = vcmask 392192
      %v1067 = vsel %vm1066, %v1004, 0
      %v1069 = vsel %vm1066, %v1006, 0
      %v1071 = vsel %vm1066, %v1008, 0
      %v1073 = vsel %vm1066, %v1010, 0
      %v1075 = vsel %vm1066, %v1012, 0
      %v1077 = vsel %vm1066, %v1014, 0
      %v1079 = vsel %vm1066, %v1016, 0
      %v1081 = vsel %vm1066, %v1018, 0
      %v1083 = vsel %vm1066, %v1020, 0
      %v1085 = vsel %vm1066, %v1022, 0
      %v1087 = vsel %vm1066, %v1024, 0
      %v1089 = vsel %vm1066, %v1026, 0
      %v1091 = vsel %vm1066, %v1028, 0
      %v1093 = vsel %vm1066, %v1030, 0
      %v1095 = vsel %vm1066, %v1032, 0
      %v1097 = vsel %vm1066, %v1034, 0
      %1099 = vmatprep.subr.bf16.mxu0 0
      %1100 = vmatpush1.bf16.msra.mxu0 %v1060
      %1101 = vmatprep.subr.bf16.mxu0 0
      %1102 = vmatpush1.bf16.msra.mxu0 %v1061
      %1103 = vmatprep.subr.bf16.mxu0 0
      %1104 = vmatpush1.bf16.msra.mxu0 %v1062
      %1105 = vmatprep.subr.bf16.mxu0 0
      %1106 = vmatpush1.bf16.msra.mxu0 0
      %1107 = vmatprep.subr.bf16.mxu0 0
      %1108 = vmatpush1.bf16.msra.mxu0 0
      %1109 = vmatprep.subr.bf16.mxu0 0
      %1110 = vmatpush1.bf16.msra.mxu0 0
      %1111 = vmatprep.subr.bf16.mxu0 0
      %1112 = vmatpush1.bf16.msra.mxu0 0
      %1113 = vmatprep.subr.bf16.mxu0 0
      %1114 = vmatpush1.bf16.msra.mxu0 0
      %1115 = vmatprep.subr.bf16.mxu0 0
      %1116 = vmatpush1.bf16.msra.mxu0 0
      %1117 = vmatprep.subr.bf16.mxu0 0
      %1118 = vmatpush1.bf16.msra.mxu0 0
      %1119 = vmatprep.subr.bf16.mxu0 0
      %1120 = vmatpush1.bf16.msra.mxu0 0
      %1121 = vmatprep.subr.bf16.mxu0 0
      %1122 = vmatpush1.bf16.msra.mxu0 0
      %1123 = vmatprep.subr.bf16.mxu0 0
      %1124 = vmatpush1.bf16.msra.mxu0 0
      %1125 = vmatprep.subr.bf16.mxu0 0
      %1126 = vmatpush1.bf16.msra.mxu0 0
      %1127 = vmatprep.subr.bf16.mxu0 0
      %1128 = vmatpush1.bf16.msra.mxu0 0
      %1129 = vmatprep.subr.bf16.mxu0 0
      %1130 = vmatpush1.bf16.msra.mxu0 0
      %1131 = vmatprep.mubr.bf16.mxu0 0
      %1132 = vmatmul.mubr.bf16.gmra.mrb[0].mxu0 %v1067
      %v1133 = vpop.f32.mrb[0].mxu0
      %v1134 = vadd.f32 %v1046, %v1133
      %v1135 = vpop.f32.mrb[0].mxu0
      %v1136 = vpop.f32.mrb[0].mxu0
      %v1137 = vadd.f32 %v1046, %v1136
      %v1138 = vpop.f32.mrb[0].mxu0
      %1139 = vmatprep.mubr.bf16.mxu0 0
      %1140 = vmatmul.mubr.bf16.gmra.mrb[0].mxu0 %v1069
      %v1141 = vpop.f32.mrb[0].mxu0
      %v1142 = vadd.f32 %v1046, %v1141
      %v1143 = vpop.f32.mrb[0].mxu0
      %v1144 = vpop.f32.mrb[0].mxu0
      %v1145 = vadd.f32 %v1046, %v1144
      %v1146 = vpop.f32.mrb[0].mxu0
      %1147 = vmatprep.mubr.bf16.mxu0 0
      %1148 = vmatmul.mubr.bf16.gmra.mrb[0].mxu0 %v1071
      %v1149 = vpop.f32.mrb[0].mxu0
      %v1150 = vadd.f32 %v1046, %v1149
      %v1151 = vpop.f32.mrb[0].mxu0
      %v1152 = vpop.f32.mrb[0].mxu0
      %v1153 = vadd.f32 %v1046, %v1152
      %v1154 = vpop.f32.mrb[0].mxu0
      %1155 = vmatprep.mubr.bf16.mxu0 0
      %1156 = vmatmul.mubr.bf16.gmra.mrb[0].mxu0 %v1073
      %v1157 = vpop.f32.mrb[0].mxu0
      %v1158 = vadd.f32 %v1046, %v1157
      %v1159 = vpop.f32.mrb[0].mxu0
      %v1160 = vpop.f32.mrb[0].mxu0
      %v1161 = vadd.f32 %v1046, %v1160
      %v1162 = vpop.f32.mrb[0].mxu0
      %1163 = vmatprep.mubr.bf16.mxu0 0
      %1164 = vmatmul.mubr.bf16.gmra.mrb[0].mxu0 %v1075
      %v1165 = vpop.f32.mrb[0].mxu0
      %v1166 = vadd.f32 %v1046, %v1165
      %v1167 = vpop.f32.mrb[0].mxu0
      %v1168 = vpop.f32.mrb[0].mxu0
      %v1169 = vadd.f32 %v1046, %v1168
      %v1170 = vpop.f32.mrb[0].mxu0
      %1171 = vmatprep.mubr.bf16.mxu0 0
      %1172 = vmatmul.mubr.bf16.gmra.mrb[0].mxu0 %v1077
      %v1173 = vpop.f32.mrb[0].mxu0
      %v1174 = vadd.f32 %v1046, %v1173
      %v1175 = vpop.f32.mrb[0].mxu0
      %v1176 = vpop.f32.mrb[0].mxu0
      %v1177 = vadd.f32 %v1046, %v1176
      %v1178 = vpop.f32.mrb[0].mxu0
      %1179 = vmatprep.mubr.bf16.mxu0 0
      %1180 = vmatmul.mubr.bf16.gmra.mrb[0].mxu0 %v1079
      %v1181 = vpop.f32.mrb[0].mxu0
      %v1182 = vadd.f32 %v1046, %v1181
      %v1183 = vpop.f32.mrb[0].mxu0
      %v1184 = vpop.f32.mrb[0].mxu0
      %v1185 = vadd.f32 %v1046, %v1184
      %v1186 = vpop.f32.mrb[0].mxu0
      %1187 = vmatprep.mubr.bf16.mxu0 0
      %1188 = vmatmul.mubr.bf16.gmra.mrb[0].mxu0 %v1081
      %v1189 = vpop.f32.mrb[0].mxu0
      %v1190 = vadd.f32 %v1046, %v1189
      %v1191 = vpop.f32.mrb[0].mxu0
      %v1192 = vpop.f32.mrb[0].mxu0
      %v1193 = vadd.f32 %v1046, %v1192
      %v1194 = vpop.f32.mrb[0].mxu0
      %1195 = vmatprep.mubr.bf16.mxu0 0
      %1196 = vmatmul.mubr.bf16.gmra.mrb[0].mxu0 %v1083
      %v1197 = vpop.f32.mrb[0].mxu0
      %v1198 = vadd.f32 %v1046, %v1197
      %v1199 = vpop.f32.mrb[0].mxu0
      %v1200 = vpop.f32.mrb[0].mxu0
      %v1201 = vadd.f32 %v1046, %v1200
      %v1202 = vpop.f32.mrb[0].mxu0
      %1203 = vmatprep.mubr.bf16.mxu0 0
      %1204 = vmatmul.mubr.bf16.gmra.mrb[0].mxu0 %v1085
      %v1205 = vpop.f32.mrb[0].mxu0
      %v1206 = vadd.f32 %v1046, %v1205
      %v1207 = vpop.f32.mrb[0].mxu0
      %v1208 = vpop.f32.mrb[0].mxu0
      %v1209 = vadd.f32 %v1046, %v1208
      %v1210 = vpop.f32.mrb[0].mxu0
      %1211 = vmatprep.mubr.bf16.mxu0 0
      %1212 = vmatmul.mubr.bf16.gmra.mrb[0].mxu0 %v1087
      %v1213 = vpop.f32.mrb[0].mxu0
      %v1214 = vadd.f32 %v1046, %v1213
      %v1215 = vpop.f32.mrb[0].mxu0
      %v1216 = vpop.f32.mrb[0].mxu0
      %v1217 = vadd.f32 %v1046, %v1216
      %v1218 = vpop.f32.mrb[0].mxu0
      %1219 = vmatprep.mubr.bf16.mxu0 0
      %1220 = vmatmul.mubr.bf16.gmra.mrb[0].mxu0 %v1089
      %v1221 = vpop.f32.mrb[0].mxu0
      %v1222 = vadd.f32 %v1046, %v1221
      %v1223 = vpop.f32.mrb[0].mxu0
      %v1224 = vpop.f32.mrb[0].mxu0
      %v1225 = vadd.f32 %v1046, %v1224
      %v1226 = vpop.f32.mrb[0].mxu0
      %1227 = vmatprep.mubr.bf16.mxu0 0
      %1228 = vmatmul.mubr.bf16.gmra.mrb[0].mxu0 %v1091
      %v1229 = vpop.f32.mrb[0].mxu0
      %v1230 = vadd.f32 %v1046, %v1229
      %v1231 = vpop.f32.mrb[0].mxu0
      %v1232 = vpop.f32.mrb[0].mxu0
      %v1233 = vadd.f32 %v1046, %v1232
      %v1234 = vpop.f32.mrb[0].mxu0
      %1235 = vmatprep.mubr.bf16.mxu0 0
      %1236 = vmatmul.mubr.bf16.gmra.mrb[0].mxu0 %v1093
      %v1237 = vpop.f32.mrb[0].mxu0
      %v1238 = vadd.f32 %v1046, %v1237
      %v1239 = vpop.f32.mrb[0].mxu0
      %v1240 = vpop.f32.mrb[0].mxu0
      %v1241 = vadd.f32 %v1046, %v1240
      %v1242 = vpop.f32.mrb[0].mxu0
      %1243 = vmatprep.mubr.bf16.mxu0 0
      %1244 = vmatmul.mubr.bf16.gmra.mrb[0].mxu0 %v1095
      %v1245 = vpop.f32.mrb[0].mxu0
      %v1246 = vadd.f32 %v1046, %v1245
      %v1247 = vpop.f32.mrb[0].mxu0
      %v1248 = vpop.f32.mrb[0].mxu0
      %v1249 = vadd.f32 %v1046, %v1248
      %v1250 = vpop.f32.mrb[0].mxu0
      %1251 = vmatprep.mubr.bf16.mxu0 0
      %1252 = vmatmul.mubr.bf16.gmra.mrb[0].mxu0 %v1097
      %v1253 = vpop.f32.mrb[0].mxu0
      %v1254 = vadd.f32 %v1046, %v1253
      %v1255 = vpop.f32.mrb[0].mxu0
      %v1256 = vpop.f32.mrb[0].mxu0
      %v1257 = vadd.f32 %v1046, %v1256
      %v1258 = vpop.f32.mrb[0].mxu0
      %1259 = vdwg.mxu0
      %v1260 = vxor.u32 %v1134, 2147483648
      %v1261 = vxor.u32 %v1137, 2147483648
      %v1262 = vxor.u32 %v1142, 2147483648
      %v1263 = vxor.u32 %v1145, 2147483648
      %v1264 = vxor.u32 %v1150, 2147483648
      %v1265 = vxor.u32 %v1153, 2147483648
      %v1266 = vxor.u32 %v1158, 2147483648
      %v1267 = vxor.u32 %v1161, 2147483648
      %v1268 = vxor.u32 %v1166, 2147483648
      %v1269 = vxor.u32 %v1169, 2147483648
      %v1270 = vxor.u32 %v1174, 2147483648
      %v1271 = vxor.u32 %v1177, 2147483648
      %v1272 = vxor.u32 %v1182, 2147483648
      %v1273 = vxor.u32 %v1185, 2147483648
      %v1274 = vxor.u32 %v1190, 2147483648
      %v1275 = vxor.u32 %v1193, 2147483648
      %v1276 = vxor.u32 %v1198, 2147483648
      %v1277 = vxor.u32 %v1201, 2147483648
      %v1278 = vxor.u32 %v1206, 2147483648
      %v1279 = vxor.u32 %v1209, 2147483648
      %v1280 = vxor.u32 %v1214, 2147483648
      %v1281 = vxor.u32 %v1217, 2147483648
      %v1282 = vxor.u32 %v1222, 2147483648
      %v1283 = vxor.u32 %v1225, 2147483648
      %v1284 = vxor.u32 %v1230, 2147483648
      %v1285 = vxor.u32 %v1233, 2147483648
      %v1286 = vxor.u32 %v1238, 2147483648
      %v1287 = vxor.u32 %v1241, 2147483648
      %v1288 = vxor.u32 %v1246, 2147483648
      %v1289 = vxor.u32 %v1249, 2147483648
      %v1290 = vxor.u32 %v1254, 2147483648
      %v1291 = vxor.u32 %v1257, 2147483648
      %v1292 = vmul.f32 %v1260, 1.442695
      %v1293 = vpow.pop %v1292
      %v1294 = vmul.f32 %v1261, 1.442695
      %v1295 = vpow.pop %v1294
      %v1296 = vmul.f32 %v1262, 1.442695
      %v1297 = vpow.pop %v1296
      %v1298 = vmul.f32 %v1263, 1.442695
      %v1299 = vpow.pop %v1298
      %v1300 = vmul.f32 %v1264, 1.442695
      %v1301 = vpow.pop %v1300
      %v1302 = vmul.f32 %v1265, 1.442695
      %v1303 = vpow.pop %v1302
      %v1304 = vmul.f32 %v1266, 1.442695
      %v1305 = vpow.pop %v1304
      %v1306 = vmul.f32 %v1267, 1.442695
      %v1307 = vpow.pop %v1306
      %v1308 = vmul.f32 %v1268, 1.442695
      %v1309 = vpow.pop %v1308
      %v1310 = vmul.f32 %v1269, 1.442695
      %v1311 = vpow.pop %v1310
      %v1312 = vmul.f32 %v1270, 1.442695
      %v1313 = vpow.pop %v1312
      %v1314 = vmul.f32 %v1271, 1.442695
      %v1315 = vpow.pop %v1314
      %v1316 = vmul.f32 %v1272, 1.442695
      %v1317 = vpow.pop %v1316
      %v1318 = vmul.f32 %v1273, 1.442695
      %v1319 = vpow.pop %v1318
      %v1320 = vmul.f32 %v1274, 1.442695
      %v1321 = vpow.pop %v1320
      %v1322 = vmul.f32 %v1275, 1.442695
      %v1323 = vpow.pop %v1322
      %v1324 = vmul.f32 %v1276, 1.442695
      %v1325 = vpow.pop %v1324
      %v1326 = vmul.f32 %v1277, 1.442695
      %v1327 = vpow.pop %v1326
      %v1328 = vmul.f32 %v1278, 1.442695
      %v1329 = vpow.pop %v1328
      %v1330 = vmul.f32 %v1279, 1.442695
      %v1331 = vpow.pop %v1330
      %v1332 = vmul.f32 %v1280, 1.442695
      %v1333 = vpow.pop %v1332
      %v1334 = vmul.f32 %v1281, 1.442695
      %v1335 = vpow.pop %v1334
      %v1336 = vmul.f32 %v1282, 1.442695
      %v1337 = vpow.pop %v1336
      %v1338 = vmul.f32 %v1283, 1.442695
      %v1339 = vpow.pop %v1338
      %v1340 = vmul.f32 %v1284, 1.442695
      %v1341 = vpow.pop %v1340
      %v1342 = vmul.f32 %v1285, 1.442695
      %v1343 = vpow.pop %v1342
      %v1344 = vmul.f32 %v1286, 1.442695
      %v1345 = vpow.pop %v1344
      %v1346 = vmul.f32 %v1287, 1.442695
      %v1347 = vpow.pop %v1346
      %v1348 = vmul.f32 %v1288, 1.442695
      %v1349 = vpow.pop %v1348
      %v1350 = vmul.f32 %v1289, 1.442695
      %v1351 = vpow.pop %v1350
      %v1352 = vmul.f32 %v1290, 1.442695
      %v1353 = vpow.pop %v1352
      %v1354 = vmul.f32 %v1291, 1.442695
      %v1355 = vpow.pop %v1354
      %v1356 = vadd.f32 %v1293, 1.0
      %v1357 = vadd.f32 %v1295, 1.0
      %v1358 = vadd.f32 %v1297, 1.0
      %v1359 = vadd.f32 %v1299, 1.0
      %v1360 = vadd.f32 %v1301, 1.0
      %v1361 = vadd.f32 %v1303, 1.0
      %v1362 = vadd.f32 %v1305, 1.0
      %v1363 = vadd.f32 %v1307, 1.0
      %v1364 = vadd.f32 %v1309, 1.0
      %v1365 = vadd.f32 %v1311, 1.0
      %v1366 = vadd.f32 %v1313, 1.0
      %v1367 = vadd.f32 %v1315, 1.0
      %v1368 = vadd.f32 %v1317, 1.0
      %v1369 = vadd.f32 %v1319, 1.0
      %v1370 = vadd.f32 %v1321, 1.0
      %v1371 = vadd.f32 %v1323, 1.0
      %v1372 = vadd.f32 %v1325, 1.0
      %v1373 = vadd.f32 %v1327, 1.0
      %v1374 = vadd.f32 %v1329, 1.0
      %v1375 = vadd.f32 %v1331, 1.0
      %v1376 = vadd.f32 %v1333, 1.0
      %v1377 = vadd.f32 %v1335, 1.0
      %v1378 = vadd.f32 %v1337, 1.0
      %v1379 = vadd.f32 %v1339, 1.0
      %v1380 = vadd.f32 %v1341, 1.0
      %v1381 = vadd.f32 %v1343, 1.0
      %v1382 = vadd.f32 %v1345, 1.0
      %v1383 = vadd.f32 %v1347, 1.0
      %v1384 = vadd.f32 %v1349, 1.0
      %v1385 = vadd.f32 %v1351, 1.0
      %v1386 = vadd.f32 %v1353, 1.0
      %v1387 = vadd.f32 %v1355, 1.0
      %v1388 = vrcp.pop %v1356
      %v1389 = vmul.f32 1.0, %v1388
      %v1390 = vrcp.pop %v1357
      %v1391 = vmul.f32 1.0, %v1390
      %v1392 = vrcp.pop %v1358
      %v1393 = vmul.f32 1.0, %v1392
      %v1394 = vrcp.pop %v1359
      %v1395 = vmul.f32 1.0, %v1394
      %v1396 = vrcp.pop %v1360
      %v1397 = vmul.f32 1.0, %v1396
      %v1398 = vrcp.pop %v1361
      %v1399 = vmul.f32 1.0, %v1398
      %v1400 = vrcp.pop %v1362
      %v1401 = vmul.f32 1.0, %v1400
      %v1402 = vrcp.pop %v1363
      %v1403 = vmul.f32 1.0, %v1402
      %v1404 = vrcp.pop %v1364
      %v1405 = vmul.f32 1.0, %v1404
      %v1406 = vrcp.pop %v1365
      %v1407 = vmul.f32 1.0, %v1406
      %v1408 = vrcp.pop %v1366
      %v1409 = vmul.f32 1.0, %v1408
      %v1410 = vrcp.pop %v1367
      %v1411 = vmul.f32 1.0, %v1410
      %v1412 = vrcp.pop %v1368
      %v1413 = vmul.f32 1.0, %v1412
      %v1414 = vrcp.pop %v1369
      %v1415 = vmul.f32 1.0, %v1414
      %v1416 = vrcp.pop %v1370
      %v1417 = vmul.f32 1.0, %v1416
      %v1418 = vrcp.pop %v1371
      %v1419 = vmul.f32 1.0, %v1418
      %v1420 = vrcp.pop %v1372
      %v1421 = vmul.f32 1.0, %v1420
      %v1422 = vrcp.pop %v1373
      %v1423 = vmul.f32 1.0, %v1422
      %v1424 = vrcp.pop %v1374
      %v1425 = vmul.f32 1.0, %v1424
      %v1426 = vrcp.pop %v1375
      %v1427 = vmul.f32 1.0, %v1426
      %v1428 = vrcp.pop %v1376
      %v1429 = vmul.f32 1.0, %v1428
      %v1430 = vrcp.pop %v1377
      %v1431 = vmul.f32 1.0, %v1430
      %v1432 = vrcp.pop %v1378
      %v1433 = vmul.f32 1.0, %v1432
      %v1434 = vrcp.pop %v1379
      %v1435 = vmul.f32 1.0, %v1434
      %v1436 = vrcp.pop %v1380
      %v1437 = vmul.f32 1.0, %v1436
      %v1438 = vrcp.pop %v1381
      %v1439 = vmul.f32 1.0, %v1438
      %v1440 = vrcp.pop %v1382
      %v1441 = vmul.f32 1.0, %v1440
      %v1442 = vrcp.pop %v1383
      %v1443 = vmul.f32 1.0, %v1442
      %v1444 = vrcp.pop %v1384
      %v1445 = vmul.f32 1.0, %v1444
      %v1446 = vrcp.pop %v1385
      %v1447 = vmul.f32 1.0, %v1446
      %v1448 = vrcp.pop %v1386
      %v1449 = vmul.f32 1.0, %v1448
      %v1450 = vrcp.pop %v1387
      %v1451 = vmul.f32 1.0, %v1450
      %v1452 = vmul.f32 %v1134, %v1389
      %v1453 = vmul.f32 %v1137, %v1391
      %v1454 = vmul.f32 %v1142, %v1393
      %v1455 = vmul.f32 %v1145, %v1395
      %v1456 = vmul.f32 %v1150, %v1397
      %v1457 = vmul.f32 %v1153, %v1399
      %v1458 = vmul.f32 %v1158, %v1401
      %v1459 = vmul.f32 %v1161, %v1403
      %v1460 = vmul.f32 %v1166, %v1405
      %v1461 = vmul.f32 %v1169, %v1407
      %v1462 = vmul.f32 %v1174, %v1409
      %v1463 = vmul.f32 %v1177, %v1411
      %v1464 = vmul.f32 %v1182, %v1413
      %v1465 = vmul.f32 %v1185, %v1415
      %v1466 = vmul.f32 %v1190, %v1417
      %v1467 = vmul.f32 %v1193, %v1419
      %v1468 = vmul.f32 %v1198, %v1421
      %v1469 = vmul.f32 %v1201, %v1423
      %v1470 = vmul.f32 %v1206, %v1425
      %v1471 = vmul.f32 %v1209, %v1427
      %v1472 = vmul.f32 %v1214, %v1429
      %v1473 = vmul.f32 %v1217, %v1431
      %v1474 = vmul.f32 %v1222, %v1433
      %v1475 = vmul.f32 %v1225, %v1435
      %v1476 = vmul.f32 %v1230, %v1437
      %v1477 = vmul.f32 %v1233, %v1439
      %v1478 = vmul.f32 %v1238, %v1441
      %v1479 = vmul.f32 %v1241, %v1443
      %v1480 = vmul.f32 %v1246, %v1445
      %v1481 = vmul.f32 %v1249, %v1447
      %v1482 = vmul.f32 %v1254, %v1449
      %v1483 = vmul.f32 %v1257, %v1451
      %vm1484 = vcmask 130048
      %1485 = vst.msk [vmem:[#allocation2] sm:$0xff] %vm1484, 0.0
      %1486 = vst.msk [vmem:[#allocation2 + $0x8] sm:$0xff] %vm1484, 0.0
      %vm1487 = vcmask 123904
      %1488 = vst.msk [vmem:[#allocation2 + $0x10] sm:$0x3] %vm1487, 0.0
      %s1489 = scalar_lea.vmem [#allocation2], 408
      %1490 = vst.msk [vmem:[%s1489] sm:$0xff] %vm1484, 0.0
      %1491 = vst.msk [vmem:[%s1489 + $0x8] sm:$0xff] %vm1484, 0.0
      %1492 = vst.msk [vmem:[%s1489 + $0x10] sm:$0x3] %vm1487, 0.0
      %vm1493 = vcmask 122880
      %1494 = vst.msk [vmem:[#allocation2] sm:$0x1] %vm1493, 0.0
      %1495 = vst.msk [vmem:[#allocation2 + $0x18] sm:$0x1] %vm1493, 0.0
      %1496 = vst.msk [vmem:[#allocation2 + $0x30] sm:$0x1] %vm1493, 0.0
      %1497 = vst.msk [vmem:[#allocation2 + $0x48] sm:$0x1] %vm1493, 0.0
      %1498 = vst.msk [vmem:[#allocation2 + $0x60] sm:$0x1] %vm1493, 0.0
      %1499 = vst.msk [vmem:[#allocation2 + $0x78] sm:$0x1] %vm1493, 0.0
      %1500 = vst.msk [vmem:[#allocation2 + $0x90] sm:$0x1] %vm1493, 0.0
      %1501 = vst.msk [vmem:[#allocation2 + $0xa8] sm:$0x1] %vm1493, 0.0
      %1502 = vst.msk [vmem:[#allocation2 + $0xc0] sm:$0x1] %vm1493, 0.0
      %1503 = vst.msk [vmem:[#allocation2 + $0xd8] sm:$0x1] %vm1493, 0.0
      %1504 = vst.msk [vmem:[#allocation2 + $0xf0] sm:$0x1] %vm1493, 0.0
      %1505 = vst.msk [vmem:[#allocation2 + $0x108] sm:$0x1] %vm1493, 0.0
      %1506 = vst.msk [vmem:[#allocation2 + $0x120] sm:$0x1] %vm1493, 0.0
      %1507 = vst.msk [vmem:[#allocation2 + $0x138] sm:$0x1] %vm1493, 0.0
      %1508 = vst.msk [vmem:[#allocation2 + $0x150] sm:$0x1] %vm1493, 0.0
      %1509 = vst.msk [vmem:[#allocation2 + $0x168] sm:$0x1] %vm1493, 0.0
      %1510 = vst.msk [vmem:[#allocation2 + $0x180] sm:$0x1] %vm1493, 0.0
      %1511 = vst.msk [vmem:[#allocation2 + $0x198] sm:$0x1] %vm1493, 0.0
      %1512 = vst.msk [vmem:[#allocation2 + $0x11] sm:$0x1] %vm1493, 0.0
      %1513 = vst.msk [vmem:[#allocation2 + $0x29] sm:$0x1] %vm1493, 0.0
      %1514 = vst.msk [vmem:[#allocation2 + $0x41] sm:$0x1] %vm1493, 0.0
      %1515 = vst.msk [vmem:[#allocation2 + $0x59] sm:$0x1] %vm1493, 0.0
      %1516 = vst.msk [vmem:[#allocation2 + $0x71] sm:$0x1] %vm1493, 0.0
      %1517 = vst.msk [vmem:[#allocation2 + $0x89] sm:$0x1] %vm1493, 0.0
      %1518 = vst.msk [vmem:[#allocation2 + $0xa1] sm:$0x1] %vm1493, 0.0
      %1519 = vst.msk [vmem:[#allocation2 + $0xb9] sm:$0x1] %vm1493, 0.0
      %1520 = vst.msk [vmem:[#allocation2 + $0xd1] sm:$0x1] %vm1493, 0.0
      %1521 = vst.msk [vmem:[#allocation2 + $0xe9] sm:$0x1] %vm1493, 0.0
      %1522 = vst.msk [vmem:[#allocation2 + $0x101] sm:$0x1] %vm1493, 0.0
      %1523 = vst.msk [vmem:[#allocation2 + $0x119] sm:$0x1] %vm1493, 0.0
      %1524 = vst.msk [vmem:[#allocation2 + $0x131] sm:$0x1] %vm1493, 0.0
      %1525 = vst.msk [vmem:[#allocation2 + $0x149] sm:$0x1] %vm1493, 0.0
      %1526 = vst.msk [vmem:[#allocation2 + $0x161] sm:$0x1] %vm1493, 0.0
      %1527 = vst.msk [vmem:[#allocation2 + $0x179] sm:$0x1] %vm1493, 0.0
      %1528 = vst.msk [vmem:[#allocation2 + $0x191] sm:$0x1] %vm1493, 0.0
      %1529 = vst.msk [vmem:[#allocation2 + $0x1a9] sm:$0x1] %vm1493, 0.0
      %s1530 = scalar_lea.vmem [#allocation2], 24
      %1531 = vst.msk [vmem:[%s1530 + $0x1] sm:$0xff] %vm1484, %v1452
      %1532 = vst.msk [vmem:[%s1530 + $0x9] sm:$0xff] %vm1484, %v1453
      %1533 = vst.msk [vmem:[%s1530 + $0x19] sm:$0xff] %vm1484, %v1454
      %1534 = vst.msk [vmem:[%s1530 + $0x21] sm:$0xff] %vm1484, %v1455
      %1535 = vst.msk [vmem:[%s1530 + $0x31] sm:$0xff] %vm1484, %v1456
      %1536 = vst.msk [vmem:[%s1530 + $0x39] sm:$0xff] %vm1484, %v1457
      %1537 = vst.msk [vmem:[%s1530 + $0x49] sm:$0xff] %vm1484, %v1458
      %1538 = vst.msk [vmem:[%s1530 + $0x51] sm:$0xff] %vm1484, %v1459
      %1539 = vst.msk [vmem:[%s1530 + $0x61] sm:$0xff] %vm1484, %v1460
      %1540 = vst.msk [vmem:[%s1530 + $0x69] sm:$0xff] %vm1484, %v1461
      %1541 = vst.msk [vmem:[%s1530 + $0x79] sm:$0xff] %vm1484, %v1462
      %1542 = vst.msk [vmem:[%s1530 + $0x81] sm:$0xff] %vm1484, %v1463
      %1543 = vst.msk [vmem:[%s1530 + $0x91] sm:$0xff] %vm1484, %v1464
      %1544 = vst.msk [vmem:[%s1530 + $0x99] sm:$0xff] %vm1484, %v1465
      %1545 = vst.msk [vmem:[%s1530 + $0xa9] sm:$0xff] %vm1484, %v1466
      %1546 = vst.msk [vmem:[%s1530 + $0xb1] sm:$0xff] %vm1484, %v1467
      %1547 = vst.msk [vmem:[%s1530 + $0xc1] sm:$0xff] %vm1484, %v1468
      %1548 = vst.msk [vmem:[%s1530 + $0xc9] sm:$0xff] %vm1484, %v1469
      %1549 = vst.msk [vmem:[%s1530 + $0xd9] sm:$0xff] %vm1484, %v1470
      %1550 = vst.msk [vmem:[%s1530 + $0xe1] sm:$0xff] %vm1484, %v1471
      %1551 = vst.msk [vmem:[%s1530 + $0xf1] sm:$0xff] %vm1484, %v1472
      %1552 = vst.msk [vmem:[%s1530 + $0xf9] sm:$0xff] %vm1484, %v1473
      %1553 = vst.msk [vmem:[%s1530 + $0x109] sm:$0xff] %vm1484, %v1474
      %1554 = vst.msk [vmem:[%s1530 + $0x111] sm:$0xff] %vm1484, %v1475
      %1555 = vst.msk [vmem:[%s1530 + $0x121] sm:$0xff] %vm1484, %v1476
      %1556 = vst.msk [vmem:[%s1530 + $0x129] sm:$0xff] %vm1484, %v1477
      %1557 = vst.msk [vmem:[%s1530 + $0x139] sm:$0xff] %vm1484, %v1478
      %1558 = vst.msk [vmem:[%s1530 + $0x141] sm:$0xff] %vm1484, %v1479
      %1559 = vst.msk [vmem:[%s1530 + $0x151] sm:$0xff] %vm1484, %v1480
      %1560 = vst.msk [vmem:[%s1530 + $0x159] sm:$0xff] %vm1484, %v1481
      %1561 = vst.msk [vmem:[%s1530 + $0x169] sm:$0xff] %vm1484, %v1482
      %1562 = vst.msk [vmem:[%s1530 + $0x171] sm:$0xff] %vm1484, %v1483
      %v1563 = vld [vmem:[#allocation2] sm:$0xff]
      %v1564 = vld [vmem:[#allocation2 + $0x8] sm:$0xff]
      %v1565 = vld [vmem:[#allocation2 + $0x18] sm:$0xff]
      %v1566 = vld [vmem:[#allocation2 + $0x20] sm:$0xff]
      %v1567 = vld [vmem:[#allocation2 + $0x30] sm:$0xff]
      %v1568 = vld [vmem:[#allocation2 + $0x38] sm:$0xff]
      %v1569 = vld [vmem:[#allocation2 + $0x48] sm:$0xff]
      %v1570 = vld [vmem:[#allocation2 + $0x50] sm:$0xff]
      %v1571 = vld [vmem:[#allocation2 + $0x60] sm:$0xff]
      %v1572 = vld [vmem:[#allocation2 + $0x68] sm:$0xff]
      %v1573 = vld [vmem:[#allocation2 + $0x78] sm:$0xff]
      %v1574 = vld [vmem:[#allocation2 + $0x80] sm:$0xff]
      %v1575 = vld [vmem:[#allocation2 + $0x90] sm:$0xff]
      %v1576 = vld [vmem:[#allocation2 + $0x98] sm:$0xff]
      %v1577 = vld [vmem:[#allocation2 + $0xa8] sm:$0xff]
      %v1578 = vld [vmem:[#allocation2 + $0xb0] sm:$0xff]
      %v1579 = vld [vmem:[#allocation2 + $0xc0] sm:$0xff]
      %v1580 = vld [vmem:[#allocation2 + $0xc8] sm:$0xff]
      %v1581 = vld [vmem:[#allocation2 + $0xd8] sm:$0xff]
      %v1582 = vld [vmem:[#allocation2 + $0xe0] sm:$0xff]
      %v1583 = vld [vmem:[#allocation2 + $0xf0] sm:$0xff]
      %v1584 = vld [vmem:[#allocation2 + $0xf8] sm:$0xff]
      %v1585 = vld [vmem:[#allocation2 + $0x108] sm:$0xff]
      %v1586 = vld [vmem:[#allocation2 + $0x110] sm:$0xff]
      %v1587 = vld [vmem:[#allocation2 + $0x120] sm:$0xff]
      %v1588 = vld [vmem:[#allocation2 + $0x128] sm:$0xff]
      %v1589 = vld [vmem:[#allocation2 + $0x138] sm:$0xff]
      %v1590 = vld [vmem:[#allocation2 + $0x140] sm:$0xff]
      %v1591 = vld [vmem:[#allocation2 + $0x150] sm:$0xff]
      %v1592 = vld [vmem:[#allocation2 + $0x158] sm:$0xff]
      %v1593 = vld [vmem:[#allocation2 + $0x168] sm:$0xff]
      %v1594 = vld [vmem:[#allocation2 + $0x170] sm:$0xff]
      %v1595 = vpack.c.bf16 %v1564, %v1563
      %v1596 = vpack.c.bf16 %v1566, %v1565
      %v1597 = vpack.c.bf16 %v1568, %v1567
      %v1598 = vpack.c.bf16 %v1570, %v1569
      %v1599 = vpack.c.bf16 %v1572, %v1571
      %v1600 = vpack.c.bf16 %v1574, %v1573
      %v1601 = vpack.c.bf16 %v1576, %v1575
      %v1602 = vpack.c.bf16 %v1578, %v1577
      %v1603 = vpack.c.bf16 %v1580, %v1579
      %v1604 = vpack.c.bf16 %v1582, %v1581
      %v1605 = vpack.c.bf16 %v1584, %v1583
      %v1606 = vpack.c.bf16 %v1586, %v1585
      %v1607 = vpack.c.bf16 %v1588, %v1587
      %v1608 = vpack.c.bf16 %v1590, %v1589
      %v1609 = vpack.c.bf16 %v1592, %v1591
      %v1610 = vpack.c.bf16 %v1594, %v1593
      %v1611 = vld [vmem:[#allocation2 + $0x1] sm:$0xff]
      %v1612 = vld [vmem:[#allocation2 + $0x9] sm:$0xff]
      %v1613 = vld [vmem:[#allocation2 + $0x19] sm:$0xff]
      %v1614 = vld [vmem:[#allocation2 + $0x21] sm:$0xff]
      %v1615 = vld [vmem:[#allocation2 + $0x31] sm:$0xff]
      %v1616 = vld [vmem:[#allocation2 + $0x39] sm:$0xff]
      %v1617 = vld [vmem:[#allocation2 + $0x49] sm:$0xff]
      %v1618 = vld [vmem:[#allocation2 + $0x51] sm:$0xff]
      %v1619 = vld [vmem:[#allocation2 + $0x61] sm:$0xff]
      %v1620 = vld [vmem:[#allocation2 + $0x69] sm:$0xff]
      %v1621 = vld [vmem:[#allocation2 + $0x79] sm:$0xff]
      %v1622 = vld [vmem:[#allocation2 + $0x81] sm:$0xff]
      %v1623 = vld [vmem:[#allocation2 + $0x91] sm:$0xff]
      %v1624 = vld [vmem:[#allocation2 + $0x99] sm:$0xff]
      %v1625 = vld [vmem:[#allocation2 + $0xa9] sm:$0xff]
      %v1626 = vld [vmem:[#allocation2 + $0xb1] sm:$0xff]
      %v1627 = vld [vmem:[#allocation2 + $0xc1] sm:$0xff]
      %v1628 = vld [vmem:[#allocation2 + $0xc9] sm:$0xff]
      %v1629 = vld [vmem:[#allocation2 + $0xd9] sm:$0xff]
      %v1630 = vld [vmem:[#allocation2 + $0xe1] sm:$0xff]
      %v1631 = vld [vmem:[#allocation2 + $0xf1] sm:$0xff]
      %v1632 = vld [vmem:[#allocation2 + $0xf9] sm:$0xff]
      %v1633 = vld [vmem:[#allocation2 + $0x109] sm:$0xff]
      %v1634 = vld [vmem:[#allocation2 + $0x111] sm:$0xff]
      %v1635 = vld [vmem:[#allocation2 + $0x121] sm:$0xff]
      %v1636 = vld [vmem:[#allocation2 + $0x129] sm:$0xff]
      %v1637 = vld [vmem:[#allocation2 + $0x139] sm:$0xff]
      %v1638 = vld [vmem:[#allocation2 + $0x141] sm:$0xff]
      %v1639 = vld [vmem:[#allocation2 + $0x151] sm:$0xff]
      %v1640 = vld [vmem:[#allocation2 + $0x159] sm:$0xff]
      %v1641 = vld [vmem:[#allocation2 + $0x169] sm:$0xff]
      %v1642 = vld [vmem:[#allocation2 + $0x171] sm:$0xff]
      %v1643 = vpack.c.bf16 %v1612, %v1611
      %v1644 = vpack.c.bf16 %v1614, %v1613
      %v1645 = vpack.c.bf16 %v1616, %v1615
      %v1646 = vpack.c.bf16 %v1618, %v1617
      %v1647 = vpack.c.bf16 %v1620, %v1619
      %v1648 = vpack.c.bf16 %v1622, %v1621
      %v1649 = vpack.c.bf16 %v1624, %v1623
      %v1650 = vpack.c.bf16 %v1626, %v1625
      %v1651 = vpack.c.bf16 %v1628, %v1627
      %v1652 = vpack.c.bf16 %v1630, %v1629
      %v1653 = vpack.c.bf16 %v1632, %v1631
      %v1654 = vpack.c.bf16 %v1634, %v1633
      %v1655 = vpack.c.bf16 %v1636, %v1635
      %v1656 = vpack.c.bf16 %v1638, %v1637
      %v1657 = vpack.c.bf16 %v1640, %v1639
      %v1658 = vpack.c.bf16 %v1642, %v1641
      %v1659 = vld [vmem:[#allocation2 + $0x2] sm:$0xff]
      %v1660 = vld [vmem:[#allocation2 + $0xa] sm:$0xff]
      %v1661 = vld [vmem:[#allocation2 + $0x1a] sm:$0xff]
      %v1662 = vld [vmem:[#allocation2 + $0x22] sm:$0xff]
      %v1663 = vld [vmem:[#allocation2 + $0x32] sm:$0xff]
      %v1664 = vld [vmem:[#allocation2 + $0x3a] sm:$0xff]
      %v1665 = vld [vmem:[#allocation2 + $0x4a] sm:$0xff]
      %v1666 = vld [vmem:[#allocation2 + $0x52] sm:$0xff]
      %v1667 = vld [vmem:[#allocation2 + $0x62] sm:$0xff]
      %v1668 = vld [vmem:[#allocation2 + $0x6a] sm:$0xff]
      %v1669 = vld [vmem:[#allocation2 + $0x7a] sm:$0xff]
      %v1670 = vld [vmem:[#allocation2 + $0x82] sm:$0xff]
      %v1671 = vld [vmem:[#allocation2 + $0x92] sm:$0xff]
      %v1672 = vld [vmem:[#allocation2 + $0x9a] sm:$0xff]
      %v1673 = vld [vmem:[#allocation2 + $0xaa] sm:$0xff]
      %v1674 = vld [vmem:[#allocation2 + $0xb2] sm:$0xff]
      %v1675 = vld [vmem:[#allocation2 + $0xc2] sm:$0xff]
      %v1676 = vld [vmem:[#allocation2 + $0xca] sm:$0xff]
      %v1677 = vld [vmem:[#allocation2 + $0xda] sm:$0xff]
      %v1678 = vld [vmem:[#allocation2 + $0xe2] sm:$0xff]
      %v1679 = vld [vmem:[#allocation2 + $0xf2] sm:$0xff]
      %v1680 = vld [vmem:[#allocation2 + $0xfa] sm:$0xff]
      %v1681 = vld [vmem:[#allocation2 + $0x10a] sm:$0xff]
      %v1682 = vld [vmem:[#allocation2 + $0x112] sm:$0xff]
      %v1683 = vld [vmem:[#allocation2 + $0x122] sm:$0xff]
      %v1684 = vld [vmem:[#allocation2 + $0x12a] sm:$0xff]
      %v1685 = vld [vmem:[#allocation2 + $0x13a] sm:$0xff]
      %v1686 = vld [vmem:[#allocation2 + $0x142] sm:$0xff]
      %v1687 = vld [vmem:[#allocation2 + $0x152] sm:$0xff]
      %v1688 = vld [vmem:[#allocation2 + $0x15a] sm:$0xff]
      %v1689 = vld [vmem:[#allocation2 + $0x16a] sm:$0xff]
      %v1690 = vld [vmem:[#allocation2 + $0x172] sm:$0xff]
      %v1691 = vpack.c.bf16 %v1660, %v1659
      %v1692 = vpack.c.bf16 %v1662, %v1661
      %v1693 = vpack.c.bf16 %v1664, %v1663
      %v1694 = vpack.c.bf16 %v1666, %v1665
      %v1695 = vpack.c.bf16 %v1668, %v1667
      %v1696 = vpack.c.bf16 %v1670, %v1669
      %v1697 = vpack.c.bf16 %v1672, %v1671
      %v1698 = vpack.c.bf16 %v1674, %v1673
      %v1699 = vpack.c.bf16 %v1676, %v1675
      %v1700 = vpack.c.bf16 %v1678, %v1677
      %v1701 = vpack.c.bf16 %v1680, %v1679
      %v1702 = vpack.c.bf16 %v1682, %v1681
      %v1703 = vpack.c.bf16 %v1684, %v1683
      %v1704 = vpack.c.bf16 %v1686, %v1685
      %v1705 = vpack.c.bf16 %v1688, %v1687
      %v1706 = vpack.c.bf16 %v1690, %v1689
      %v1707 = vld [vmem:[%s1530] sm:$0xff]
      %v1708 = vld [vmem:[%s1530 + $0x8] sm:$0xff]
      %v1709 = vld [vmem:[%s1530 + $0x18] sm:$0xff]
      %v1710 = vld [vmem:[%s1530 + $0x20] sm:$0xff]
      %v1711 = vld [vmem:[%s1530 + $0x30] sm:$0xff]
      %v1712 = vld [vmem:[%s1530 + $0x38] sm:$0xff]
      %v1713 = vld [vmem:[%s1530 + $0x48] sm:$0xff]
      %v1714 = vld [vmem:[%s1530 + $0x50] sm:$0xff]
      %v1715 = vld [vmem:[%s1530 + $0x60] sm:$0xff]
      %v1716 = vld [vmem:[%s1530 + $0x68] sm:$0xff]
      %v1717 = vld [vmem:[%s1530 + $0x78] sm:$0xff]
      %v1718 = vld [vmem:[%s1530 + $0x80] sm:$0xff]
      %v1719 = vld [vmem:[%s1530 + $0x90] sm:$0xff]
      %v1720 = vld [vmem:[%s1530 + $0x98] sm:$0xff]
      %v1721 = vld [vmem:[%s1530 + $0xa8] sm:$0xff]
      %v1722 = vld [vmem:[%s1530 + $0xb0] sm:$0xff]
      %v1723 = vld [vmem:[%s1530 + $0xc0] sm:$0xff]
      %v1724 = vld [vmem:[%s1530 + $0xc8] sm:$0xff]
      %v1725 = vld [vmem:[%s1530 + $0xd8] sm:$0xff]
      %v1726 = vld [vmem:[%s1530 + $0xe0] sm:$0xff]
      %v1727 = vld [vmem:[%s1530 + $0xf0] sm:$0xff]
      %v1728 = vld [vmem:[%s1530 + $0xf8] sm:$0xff]
      %v1729 = vld [vmem:[%s1530 + $0x108] sm:$0xff]
      %v1730 = vld [vmem:[%s1530 + $0x110] sm:$0xff]
      %v1731 = vld [vmem:[%s1530 + $0x120] sm:$0xff]
      %v1732 = vld [vmem:[%s1530 + $0x128] sm:$0xff]
      %v1733 = vld [vmem:[%s1530 + $0x138] sm:$0xff]
      %v1734 = vld [vmem:[%s1530 + $0x140] sm:$0xff]
      %v1735 = vld [vmem:[%s1530 + $0x150] sm:$0xff]
      %v1736 = vld [vmem:[%s1530 + $0x158] sm:$0xff]
      %v1737 = vld [vmem:[%s1530 + $0x168] sm:$0xff]
      %v1738 = vld [vmem:[%s1530 + $0x170] sm:$0xff]
      %v1739 = vpack.c.bf16 %v1708, %v1707
      %v1740 = vpack.c.bf16 %v1710, %v1709
      %v1741 = vpack.c.bf16 %v1712, %v1711
      %v1742 = vpack.c.bf16 %v1714, %v1713
      %v1743 = vpack.c.bf16 %v1716, %v1715
      %v1744 = vpack.c.bf16 %v1718, %v1717
      %v1745 = vpack.c.bf16 %v1720, %v1719
      %v1746 = vpack.c.bf16 %v1722, %v1721
      %v1747 = vpack.c.bf16 %v1724, %v1723
      %v1748 = vpack.c.bf16 %v1726, %v1725
      %v1749 = vpack.c.bf16 %v1728, %v1727
      %v1750 = vpack.c.bf16 %v1730, %v1729
      %v1751 = vpack.c.bf16 %v1732, %v1731
      %v1752 = vpack.c.bf16 %v1734, %v1733
      %v1753 = vpack.c.bf16 %v1736, %v1735
      %v1754 = vpack.c.bf16 %v1738, %v1737
      %v1755 = vld [vmem:[%s1530 + $0x1] sm:$0xff]
      %v1756 = vld [vmem:[%s1530 + $0x9] sm:$0xff]
      %v1757 = vld [vmem:[%s1530 + $0x19] sm:$0xff]
      %v1758 = vld [vmem:[%s1530 + $0x21] sm:$0xff]
      %v1759 = vld [vmem:[%s1530 + $0x31] sm:$0xff]
      %v1760 = vld [vmem:[%s1530 + $0x39] sm:$0xff]
      %v1761 = vld [vmem:[%s1530 + $0x49] sm:$0xff]
      %v1762 = vld [vmem:[%s1530 + $0x51] sm:$0xff]
      %v1763 = vld [vmem:[%s1530 + $0x61] sm:$0xff]
      %v1764 = vld [vmem:[%s1530 + $0x69] sm:$0xff]
      %v1765 = vld [vmem:[%s1530 + $0x79] sm:$0xff]
      %v1766 = vld [vmem:[%s1530 + $0x81] sm:$0xff]
      %v1767 = vld [vmem:[%s1530 + $0x91] sm:$0xff]
      %v1768 = vld [vmem:[%s1530 + $0x99] sm:$0xff]
      %v1769 = vld [vmem:[%s1530 + $0xa9] sm:$0xff]
      %v1770 = vld [vmem:[%s1530 + $0xb1] sm:$0xff]
      %v1771 = vld [vmem:[%s1530 + $0xc1] sm:$0xff]
      %v1772 = vld [vmem:[%s1530 + $0xc9] sm:$0xff]
      %v1773 = vld [vmem:[%s1530 + $0xd9] sm:$0xff]
      %v1774 = vld [vmem:[%s1530 + $0xe1] sm:$0xff]
      %v1775 = vld [vmem:[%s1530 + $0xf1] sm:$0xff]
      %v1776 = vld [vmem:[%s1530 + $0xf9] sm:$0xff]
      %v1777 = vld [vmem:[%s1530 + $0x109] sm:$0xff]
      %v1778 = vld [vmem:[%s1530 + $0x111] sm:$0xff]
      %v1779 = vld [vmem:[%s1530 + $0x121] sm:$0xff]
      %v1780 = vld [vmem:[%s1530 + $0x129] sm:$0xff]
      %v1781 = vld [vmem:[%s1530 + $0x139] sm:$0xff]
      %v1782 = vld [vmem:[%s1530 + $0x141] sm:$0xff]
      %v1783 = vld [vmem:[%s1530 + $0x151] sm:$0xff]
      %v1784 = vld [vmem:[%s1530 + $0x159] sm:$0xff]
      %v1785 = vld [vmem:[%s1530 + $0x169] sm:$0xff]
      %v1786 = vld [vmem:[%s1530 + $0x171] sm:$0xff]
      %v1787 = vpack.c.bf16 %v1756, %v1755
      %v1788 = vpack.c.bf16 %v1758, %v1757
      %v1789 = vpack.c.bf16 %v1760, %v1759
      %v1790 = vpack.c.bf16 %v1762, %v1761
      %v1791 = vpack.c.bf16 %v1764, %v1763
      %v1792 = vpack.c.bf16 %v1766, %v1765
      %v1793 = vpack.c.bf16 %v1768, %v1767
      %v1794 = vpack.c.bf16 %v1770, %v1769
      %v1795 = vpack.c.bf16 %v1772, %v1771
      %v1796 = vpack.c.bf16 %v1774, %v1773
      %v1797 = vpack.c.bf16 %v1776, %v1775
      %v1798 = vpack.c.bf16 %v1778, %v1777
      %v1799 = vpack.c.bf16 %v1780, %v1779
      %v1800 = vpack.c.bf16 %v1782, %v1781
      %v1801 = vpack.c.bf16 %v1784, %v1783
      %v1802 = vpack.c.bf16 %v1786, %v1785
      %v1803 = vld [vmem:[%s1530 + $0x2] sm:$0xff]
      %v1804 = vld [vmem:[%s1530 + $0xa] sm:$0xff]
      %v1805 = vld [vmem:[%s1530 + $0x1a] sm:$0xff]
      %v1806 = vld [vmem:[%s1530 + $0x22] sm:$0xff]
      %v1807 = vld [vmem:[%s1530 + $0x32] sm:$0xff]
      %v1808 = vld [vmem:[%s1530 + $0x3a] sm:$0xff]
      %v1809 = vld [vmem:[%s1530 + $0x4a] sm:$0xff]
      %v1810 = vld [vmem:[%s1530 + $0x52] sm:$0xff]
      %v1811 = vld [vmem:[%s1530 + $0x62] sm:$0xff]
      %v1812 = vld [vmem:[%s1530 + $0x6a] sm:$0xff]
      %v1813 = vld [vmem:[%s1530 + $0x7a] sm:$0xff]
      %v1814 = vld [vmem:[%s1530 + $0x82] sm:$0xff]
      %v1815 = vld [vmem:[%s1530 + $0x92] sm:$0xff]
      %v1816 = vld [vmem:[%s1530 + $0x9a] sm:$0xff]
      %v1817 = vld [vmem:[%s1530 + $0xaa] sm:$0xff]
      %v1818 = vld [vmem:[%s1530 + $0xb2] sm:$0xff]
      %v1819 = vld [vmem:[%s1530 + $0xc2] sm:$0xff]
      %v1820 = vld [vmem:[%s1530 + $0xca] sm:$0xff]
      %v1821 = vld [vmem:[%s1530 + $0xda] sm:$0xff]
      %v1822 = vld [vmem:[%s1530 + $0xe2] sm:$0xff]
      %v1823 = vld [vmem:[%s1530 + $0xf2] sm:$0xff]
      %v1824 = vld [vmem:[%s1530 + $0xfa] sm:$0xff]
      %v1825 = vld [vmem:[%s1530 + $0x10a] sm:$0xff]
      %v1826 = vld [vmem:[%s1530 + $0x112] sm:$0xff]
      %v1827 = vld [vmem:[%s1530 + $0x122] sm:$0xff]
      %v1828 = vld [vmem:[%s1530 + $0x12a] sm:$0xff]
      %v1829 = vld [vmem:[%s1530 + $0x13a] sm:$0xff]
      %v1830 = vld [vmem:[%s1530 + $0x142] sm:$0xff]
      %v1831 = vld [vmem:[%s1530 + $0x152] sm:$0xff]
      %v1832 = vld [vmem:[%s1530 + $0x15a] sm:$0xff]
      %v1833 = vld [vmem:[%s1530 + $0x16a] sm:$0xff]
      %v1834 = vld [vmem:[%s1530 + $0x172] sm:$0xff]
      %v1835 = vpack.c.bf16 %v1804, %v1803
      %v1836 = vpack.c.bf16 %v1806, %v1805
      %v1837 = vpack.c.bf16 %v1808, %v1807
      %v1838 = vpack.c.bf16 %v1810, %v1809
      %v1839 = vpack.c.bf16 %v1812, %v1811
      %v1840 = vpack.c.bf16 %v1814, %v1813
      %v1841 = vpack.c.bf16 %v1816, %v1815
      %v1842 = vpack.c.bf16 %v1818, %v1817
      %v1843 = vpack.c.bf16 %v1820, %v1819
      %v1844 = vpack.c.bf16 %v1822, %v1821
      %v1845 = vpack.c.bf16 %v1824, %v1823
      %v1846 = vpack.c.bf16 %v1826, %v1825
      %v1847 = vpack.c.bf16 %v1828, %v1827
      %v1848 = vpack.c.bf16 %v1830, %v1829
      %v1849 = vpack.c.bf16 %v1832, %v1831
      %v1850 = vpack.c.bf16 %v1834, %v1833
      %s1851 = scalar_lea.vmem [#allocation2], 48
      %v1852 = vld [vmem:[%s1851] sm:$0xff]
      %v1853 = vld [vmem:[%s1851 + $0x8] sm:$0xff]
      %v1854 = vld [vmem:[%s1851 + $0x18] sm:$0xff]
      %v1855 = vld [vmem:[%s1851 + $0x20] sm:$0xff]
      %v1856 = vld [vmem:[%s1851 + $0x30] sm:$0xff]
      %v1857 = vld [vmem:[%s1851 + $0x38] sm:$0xff]
      %v1858 = vld [vmem:[%s1851 + $0x48] sm:$0xff]
      %v1859 = vld [vmem:[%s1851 + $0x50] sm:$0xff]
      %v1860 = vld [vmem:[%s1851 + $0x60] sm:$0xff]
      %v1861 = vld [vmem:[%s1851 + $0x68] sm:$0xff]
      %v1862 = vld [vmem:[%s1851 + $0x78] sm:$0xff]
      %v1863 = vld [vmem:[%s1851 + $0x80] sm:$0xff]
      %v1864 = vld [vmem:[%s1851 + $0x90] sm:$0xff]
      %v1865 = vld [vmem:[%s1851 + $0x98] sm:$0xff]
      %v1866 = vld [vmem:[%s1851 + $0xa8] sm:$0xff]
      %v1867 = vld [vmem:[%s1851 + $0xb0] sm:$0xff]
      %v1868 = vld [vmem:[%s1851 + $0xc0] sm:$0xff]
      %v1869 = vld [vmem:[%s1851 + $0xc8] sm:$0xff]
      %v1870 = vld [vmem:[%s1851 + $0xd8] sm:$0xff]
      %v1871 = vld [vmem:[%s1851 + $0xe0] sm:$0xff]
      %v1872 = vld [vmem:[%s1851 + $0xf0] sm:$0xff]
      %v1873 = vld [vmem:[%s1851 + $0xf8] sm:$0xff]
      %v1874 = vld [vmem:[%s1851 + $0x108] sm:$0xff]
      %v1875 = vld [vmem:[%s1851 + $0x110] sm:$0xff]
      %v1876 = vld [vmem:[%s1851 + $0x120] sm:$0xff]
      %v1877 = vld [vmem:[%s1851 + $0x128] sm:$0xff]
      %v1878 = vld [vmem:[%s1851 + $0x138] sm:$0xff]
      %v1879 = vld [vmem:[%s1851 + $0x140] sm:$0xff]
      %v1880 = vld [vmem:[%s1851 + $0x150] sm:$0xff]
      %v1881 = vld [vmem:[%s1851 + $0x158] sm:$0xff]
      %v1882 = vld [vmem:[%s1851 + $0x168] sm:$0xff]
      %v1883 = vld [vmem:[%s1851 + $0x170] sm:$0xff]
      %v1884 = vpack.c.bf16 %v1853, %v1852
      %v1885 = vpack.c.bf16 %v1855, %v1854
      %v1886 = vpack.c.bf16 %v1857, %v1856
      %v1887 = vpack.c.bf16 %v1859, %v1858
      %v1888 = vpack.c.bf16 %v1861, %v1860
      %v1889 = vpack.c.bf16 %v1863, %v1862
      %v1890 = vpack.c.bf16 %v1865, %v1864
      %v1891 = vpack.c.bf16 %v1867, %v1866
      %v1892 = vpack.c.bf16 %v1869, %v1868
      %v1893 = vpack.c.bf16 %v1871, %v1870
      %v1894 = vpack.c.bf16 %v1873, %v1872
      %v1895 = vpack.c.bf16 %v1875, %v1874
      %v1896 = vpack.c.bf16 %v1877, %v1876
      %v1897 = vpack.c.bf16 %v1879, %v1878
      %v1898 = vpack.c.bf16 %v1881, %v1880
      %v1899 = vpack.c.bf16 %v1883, %v1882
      %v1900 = vld [vmem:[%s1851 + $0x1] sm:$0xff]
      %v1901 = vld [vmem:[%s1851 + $0x9] sm:$0xff]
      %v1902 = vld [vmem:[%s1851 + $0x19] sm:$0xff]
      %v1903 = vld [vmem:[%s1851 + $0x21] sm:$0xff]
      %v1904 = vld [vmem:[%s1851 + $0x31] sm:$0xff]
      %v1905 = vld [vmem:[%s1851 + $0x39] sm:$0xff]
      %v1906 = vld [vmem:[%s1851 + $0x49] sm:$0xff]
      %v1907 = vld [vmem:[%s1851 + $0x51] sm:$0xff]
      %v1908 = vld [vmem:[%s1851 + $0x61] sm:$0xff]
      %v1909 = vld [vmem:[%s1851 + $0x69] sm:$0xff]
      %v1910 = vld [vmem:[%s1851 + $0x79] sm:$0xff]
      %v1911 = vld [vmem:[%s1851 + $0x81] sm:$0xff]
      %v1912 = vld [vmem:[%s1851 + $0x91] sm:$0xff]
      %v1913 = vld [vmem:[%s1851 + $0x99] sm:$0xff]
      %v1914 = vld [vmem:[%s1851 + $0xa9] sm:$0xff]
      %v1915 = vld [vmem:[%s1851 + $0xb1] sm:$0xff]
      %v1916 = vld [vmem:[%s1851 + $0xc1] sm:$0xff]
      %v1917 = vld [vmem:[%s1851 + $0xc9] sm:$0xff]
      %v1918 = vld [vmem:[%s1851 + $0xd9] sm:$0xff]
      %v1919 = vld [vmem:[%s1851 + $0xe1] sm:$0xff]
      %v1920 = vld [vmem:[%s1851 + $0xf1] sm:$0xff]
      %v1921 = vld [vmem:[%s1851 + $0xf9] sm:$0xff]
      %v1922 = vld [vmem:[%s1851 + $0x109] sm:$0xff]
      %v1923 = vld [vmem:[%s1851 + $0x111] sm:$0xff]
      %v1924 = vld [vmem:[%s1851 + $0x121] sm:$0xff]
      %v1925 = vld [vmem:[%s1851 + $0x129] sm:$0xff]
      %v1926 = vld [vmem:[%s1851 + $0x139] sm:$0xff]
      %v1927 = vld [vmem:[%s1851 + $0x141] sm:$0xff]
      %v1928 = vld [vmem:[%s1851 + $0x151] sm:$0xff]
      %v1929 = vld [vmem:[%s1851 + $0x159] sm:$0xff]
      %v1930 = vld [vmem:[%s1851 + $0x169] sm:$0xff]
      %v1931 = vld [vmem:[%s1851 + $0x171] sm:$0xff]
      %v1932 = vpack.c.bf16 %v1901, %v1900
      %v1933 = vpack.c.bf16 %v1903, %v1902
      %v1934 = vpack.c.bf16 %v1905, %v1904
      %v1935 = vpack.c.bf16 %v1907, %v1906
      %v1936 = vpack.c.bf16 %v1909, %v1908
      %v1937 = vpack.c.bf16 %v1911, %v1910
      %v1938 = vpack.c.bf16 %v1913, %v1912
      %v1939 = vpack.c.bf16 %v1915, %v1914
      %v1940 = vpack.c.bf16 %v1917, %v1916
      %v1941 = vpack.c.bf16 %v1919, %v1918
      %v1942 = vpack.c.bf16 %v1921, %v1920
      %v1943 = vpack.c.bf16 %v1923, %v1922
      %v1944 = vpack.c.bf16 %v1925, %v1924
      %v1945 = vpack.c.bf16 %v1927, %v1926
      %v1946 = vpack.c.bf16 %v1929, %v1928
      %v1947 = vpack.c.bf16 %v1931, %v1930
      %v1948 = vld [vmem:[%s1851 + $0x2] sm:$0xff]
      %v1949 = vld [vmem:[%s1851 + $0xa] sm:$0xff]
      %v1950 = vld [vmem:[%s1851 + $0x1a] sm:$0xff]
      %v1951 = vld [vmem:[%s1851 + $0x22] sm:$0xff]
      %v1952 = vld [vmem:[%s1851 + $0x32] sm:$0xff]
      %v1953 = vld [vmem:[%s1851 + $0x3a] sm:$0xff]
      %v1954 = vld [vmem:[%s1851 + $0x4a] sm:$0xff]
      %v1955 = vld [vmem:[%s1851 + $0x52] sm:$0xff]
      %v1956 = vld [vmem:[%s1851 + $0x62] sm:$0xff]
      %v1957 = vld [vmem:[%s1851 + $0x6a] sm:$0xff]
      %v1958 = vld [vmem:[%s1851 + $0x7a] sm:$0xff]
      %v1959 = vld [vmem:[%s1851 + $0x82] sm:$0xff]
      %v1960 = vld [vmem:[%s1851 + $0x92] sm:$0xff]
      %v1961 = vld [vmem:[%s1851 + $0x9a] sm:$0xff]
      %v1962 = vld [vmem:[%s1851 + $0xaa] sm:$0xff]
      %v1963 = vld [vmem:[%s1851 + $0xb2] sm:$0xff]
      %v1964 = vld [vmem:[%s1851 + $0xc2] sm:$0xff]
      %v1965 = vld [vmem:[%s1851 + $0xca] sm:$0xff]
      %v1966 = vld [vmem:[%s1851 + $0xda] sm:$0xff]
      %v1967 = vld [vmem:[%s1851 + $0xe2] sm:$0xff]
      %v1968 = vld [vmem:[%s1851 + $0xf2] sm:$0xff]
      %v1969 = vld [vmem:[%s1851 + $0xfa] sm:$0xff]
      %v1970 = vld [vmem:[%s1851 + $0x10a] sm:$0xff]
      %v1971 = vld [vmem:[%s1851 + $0x112] sm:$0xff]
      %v1972 = vld [vmem:[%s1851 + $0x122] sm:$0xff]
      %v1973 = vld [vmem:[%s1851 + $0x12a] sm:$0xff]
      %v1974 = vld [vmem:[%s1851 + $0x13a] sm:$0xff]
      %v1975 = vld [vmem:[%s1851 + $0x142] sm:$0xff]
      %v1976 = vld [vmem:[%s1851 + $0x152] sm:$0xff]
      %v1977 = vld [vmem:[%s1851 + $0x15a] sm:$0xff]
      %v1978 = vld [vmem:[%s1851 + $0x16a] sm:$0xff]
      %v1979 = vld [vmem:[%s1851 + $0x172] sm:$0xff]
      %v1980 = vpack.c.bf16 %v1949, %v1948
      %v1981 = vpack.c.bf16 %v1951, %v1950
      %v1982 = vpack.c.bf16 %v1953, %v1952
      %v1983 = vpack.c.bf16 %v1955, %v1954
      %v1984 = vpack.c.bf16 %v1957, %v1956
      %v1985 = vpack.c.bf16 %v1959, %v1958
      %v1986 = vpack.c.bf16 %v1961, %v1960
      %v1987 = vpack.c.bf16 %v1963, %v1962
      %v1988 = vpack.c.bf16 %v1965, %v1964
      %v1989 = vpack.c.bf16 %v1967, %v1966
      %v1990 = vpack.c.bf16 %v1969, %v1968
      %v1991 = vpack.c.bf16 %v1971, %v1970
      %v1992 = vpack.c.bf16 %v1973, %v1972
      %v1993 = vpack.c.bf16 %v1975, %v1974
      %v1994 = vpack.c.bf16 %v1977, %v1976
      %v1995 = vpack.c.bf16 %v1979, %v1978
      %2012 = vrot.lane.b32.xlu0 %v1643, 16
      %v2013 = vpop.permute.xlu0 %2012
      %2014 = vrot.lane.b32.xlu0 %v1644, 16
      %v2015 = vpop.permute.xlu0 %2014
      %2016 = vrot.lane.b32.xlu0 %v1645, 16
      %v2017 = vpop.permute.xlu0 %2016
      %2018 = vrot.lane.b32.xlu0 %v1646, 16
      %v2019 = vpop.permute.xlu0 %2018
      %2020 = vrot.lane.b32.xlu0 %v1647, 16
      %v2021 = vpop.permute.xlu0 %2020
      %2022 = vrot.lane.b32.xlu0 %v1648, 16
      %v2023 = vpop.permute.xlu0 %2022
      %2024 = vrot.lane.b32.xlu0 %v1649, 16
      %v2025 = vpop.permute.xlu0 %2024
      %2026 = vrot.lane.b32.xlu0 %v1650, 16
      %v2027 = vpop.permute.xlu0 %2026
      %2028 = vrot.lane.b32.xlu0 %v1651, 16
      %v2029 = vpop.permute.xlu0 %2028
      %2030 = vrot.lane.b32.xlu0 %v1652, 16
      %v2031 = vpop.permute.xlu0 %2030
      %2032 = vrot.lane.b32.xlu0 %v1653, 16
      %v2033 = vpop.permute.xlu0 %2032
      %2034 = vrot.lane.b32.xlu0 %v1654, 16
      %v2035 = vpop.permute.xlu0 %2034
      %2036 = vrot.lane.b32.xlu0 %v1655, 16
      %v2037 = vpop.permute.xlu0 %2036
      %2038 = vrot.lane.b32.xlu0 %v1656, 16
      %v2039 = vpop.permute.xlu0 %2038
      %2040 = vrot.lane.b32.xlu0 %v1657, 16
      %v2041 = vpop.permute.xlu0 %2040
      %2042 = vrot.lane.b32.xlu0 %v1658, 16
      %v2043 = vpop.permute.xlu0 %2042
      %2060 = vrot.lane.b32.xlu0 %v1691, 32
      %v2061 = vpop.permute.xlu0 %2060
      %2062 = vrot.lane.b32.xlu0 %v1692, 32
      %v2063 = vpop.permute.xlu0 %2062
      %2064 = vrot.lane.b32.xlu0 %v1693, 32
      %v2065 = vpop.permute.xlu0 %2064
      %2066 = vrot.lane.b32.xlu0 %v1694, 32
      %v2067 = vpop.permute.xlu0 %2066
      %2068 = vrot.lane.b32.xlu0 %v1695, 32
      %v2069 = vpop.permute.xlu0 %2068
      %2070 = vrot.lane.b32.xlu0 %v1696, 32
      %v2071 = vpop.permute.xlu0 %2070
      %2072 = vrot.lane.b32.xlu0 %v1697, 32
      %v2073 = vpop.permute.xlu0 %2072
      %2074 = vrot.lane.b32.xlu0 %v1698, 32
      %v2075 = vpop.permute.xlu0 %2074
      %2076 = vrot.lane.b32.xlu0 %v1699, 32
      %v2077 = vpop.permute.xlu0 %2076
      %2078 = vrot.lane.b32.xlu0 %v1700, 32
      %v2079 = vpop.permute.xlu0 %2078
      %2080 = vrot.lane.b32.xlu0 %v1701, 32
      %v2081 = vpop.permute.xlu0 %2080
      %2082 = vrot.lane.b32.xlu0 %v1702, 32
      %v2083 = vpop.permute.xlu0 %2082
      %2084 = vrot.lane.b32.xlu0 %v1703, 32
      %v2085 = vpop.permute.xlu0 %2084
      %2086 = vrot.lane.b32.xlu0 %v1704, 32
      %v2087 = vpop.permute.xlu0 %2086
      %2088 = vrot.lane.b32.xlu0 %v1705, 32
      %v2089 = vpop.permute.xlu0 %2088
      %2090 = vrot.lane.b32.xlu0 %v1706, 32
      %v2091 = vpop.permute.xlu0 %2090
      %2108 = vrot.lane.b32.xlu0 %v1739, 48
      %v2109 = vpop.permute.xlu0 %2108
      %2110 = vrot.lane.b32.xlu0 %v1740, 48
      %v2111 = vpop.permute.xlu0 %2110
      %2112 = vrot.lane.b32.xlu0 %v1741, 48
      %v2113 = vpop.permute.xlu0 %2112
      %2114 = vrot.lane.b32.xlu0 %v1742, 48
      %v2115 = vpop.permute.xlu0 %2114
      %2116 = vrot.lane.b32.xlu0 %v1743, 48
      %v2117 = vpop.permute.xlu0 %2116
      %2118 = vrot.lane.b32.xlu0 %v1744, 48
      %v2119 = vpop.permute.xlu0 %2118
      %2120 = vrot.lane.b32.xlu0 %v1745, 48
      %v2121 = vpop.permute.xlu0 %2120
      %2122 = vrot.lane.b32.xlu0 %v1746, 48
      %v2123 = vpop.permute.xlu0 %2122
      %2124 = vrot.lane.b32.xlu0 %v1747, 48
      %v2125 = vpop.permute.xlu0 %2124
      %2126 = vrot.lane.b32.xlu0 %v1748, 48
      %v2127 = vpop.permute.xlu0 %2126
      %2128 = vrot.lane.b32.xlu0 %v1749, 48
      %v2129 = vpop.permute.xlu0 %2128
      %2130 = vrot.lane.b32.xlu0 %v1750, 48
      %v2131 = vpop.permute.xlu0 %2130
      %2132 = vrot.lane.b32.xlu0 %v1751, 48
      %v2133 = vpop.permute.xlu0 %2132
      %2134 = vrot.lane.b32.xlu0 %v1752, 48
      %v2135 = vpop.permute.xlu0 %2134
      %2136 = vrot.lane.b32.xlu0 %v1753, 48
      %v2137 = vpop.permute.xlu0 %2136
      %2138 = vrot.lane.b32.xlu0 %v1754, 48
      %v2139 = vpop.permute.xlu0 %2138
      %2156 = vrot.lane.b32.xlu0 %v1787, 64
      %v2157 = vpop.permute.xlu0 %2156
      %2158 = vrot.lane.b32.xlu0 %v1788, 64
      %v2159 = vpop.permute.xlu0 %2158
      %2160 = vrot.lane.b32.xlu0 %v1789, 64
      %v2161 = vpop.permute.xlu0 %2160
      %2162 = vrot.lane.b32.xlu0 %v1790, 64
      %v2163 = vpop.permute.xlu0 %2162
      %2164 = vrot.lane.b32.xlu0 %v1791, 64
      %v2165 = vpop.permute.xlu0 %2164
      %2166 = vrot.lane.b32.xlu0 %v1792, 64
      %v2167 = vpop.permute.xlu0 %2166
      %2168 = vrot.lane.b32.xlu0 %v1793, 64
      %v2169 = vpop.permute.xlu0 %2168
      %2170 = vrot.lane.b32.xlu0 %v1794, 64
      %v2171 = vpop.permute.xlu0 %2170
      %2172 = vrot.lane.b32.xlu0 %v1795, 64
      %v2173 = vpop.permute.xlu0 %2172
      %2174 = vrot.lane.b32.xlu0 %v1796, 64
      %v2175 = vpop.permute.xlu0 %2174
      %2176 = vrot.lane.b32.xlu0 %v1797, 64
      %v2177 = vpop.permute.xlu0 %2176
      %2178 = vrot.lane.b32.xlu0 %v1798, 64
      %v2179 = vpop.permute.xlu0 %2178
      %2180 = vrot.lane.b32.xlu0 %v1799, 64
      %v2181 = vpop.permute.xlu0 %2180
      %2182 = vrot.lane.b32.xlu0 %v1800, 64
      %v2183 = vpop.permute.xlu0 %2182
      %2184 = vrot.lane.b32.xlu0 %v1801, 64
      %v2185 = vpop.permute.xlu0 %2184
      %2186 = vrot.lane.b32.xlu0 %v1802, 64
      %v2187 = vpop.permute.xlu0 %2186
      %2204 = vrot.lane.b32.xlu0 %v1835, 80
      %v2205 = vpop.permute.xlu0 %2204
      %2206 = vrot.lane.b32.xlu0 %v1836, 80
      %v2207 = vpop.permute.xlu0 %2206
      %2208 = vrot.lane.b32.xlu0 %v1837, 80
      %v2209 = vpop.permute.xlu0 %2208
      %2210 = vrot.lane.b32.xlu0 %v1838, 80
      %v2211 = vpop.permute.xlu0 %2210
      %2212 = vrot.lane.b32.xlu0 %v1839, 80
      %v2213 = vpop.permute.xlu0 %2212
      %2214 = vrot.lane.b32.xlu0 %v1840, 80
      %v2215 = vpop.permute.xlu0 %2214
      %2216 = vrot.lane.b32.xlu0 %v1841, 80
      %v2217 = vpop.permute.xlu0 %2216
      %2218 = vrot.lane.b32.xlu0 %v1842, 80
      %v2219 = vpop.permute.xlu0 %2218
      %2220 = vrot.lane.b32.xlu0 %v1843, 80
      %v2221 = vpop.permute.xlu0 %2220
      %2222 = vrot.lane.b32.xlu0 %v1844, 80
      %v2223 = vpop.permute.xlu0 %2222
      %2224 = vrot.lane.b32.xlu0 %v1845, 80
      %v2225 = vpop.permute.xlu0 %2224
      %2226 = vrot.lane.b32.xlu0 %v1846, 80
      %v2227 = vpop.permute.xlu0 %2226
      %2228 = vrot.lane.b32.xlu0 %v1847, 80
      %v2229 = vpop.permute.xlu0 %2228
      %2230 = vrot.lane.b32.xlu0 %v1848, 80
      %v2231 = vpop.permute.xlu0 %2230
      %2232 = vrot.lane.b32.xlu0 %v1849, 80
      %v2233 = vpop.permute.xlu0 %2232
      %2234 = vrot.lane.b32.xlu0 %v1850, 80
      %v2235 = vpop.permute.xlu0 %2234
      %2252 = vrot.lane.b32.xlu0 %v1884, 96
      %v2253 = vpop.permute.xlu0 %2252
      %2254 = vrot.lane.b32.xlu0 %v1885, 96
      %v2255 = vpop.permute.xlu0 %2254
      %2256 = vrot.lane.b32.xlu0 %v1886, 96
      %v2257 = vpop.permute.xlu0 %2256
      %2258 = vrot.lane.b32.xlu0 %v1887, 96
      %v2259 = vpop.permute.xlu0 %2258
      %2260 = vrot.lane.b32.xlu0 %v1888, 96
      %v2261 = vpop.permute.xlu0 %2260
      %2262 = vrot.lane.b32.xlu0 %v1889, 96
      %v2263 = vpop.permute.xlu0 %2262
      %2264 = vrot.lane.b32.xlu0 %v1890, 96
      %v2265 = vpop.permute.xlu0 %2264
      %2266 = vrot.lane.b32.xlu0 %v1891, 96
      %v2267 = vpop.permute.xlu0 %2266
      %2268 = vrot.lane.b32.xlu0 %v1892, 96
      %v2269 = vpop.permute.xlu0 %2268
      %2270 = vrot.lane.b32.xlu0 %v1893, 96
      %v2271 = vpop.permute.xlu0 %2270
      %2272 = vrot.lane.b32.xlu0 %v1894, 96
      %v2273 = vpop.permute.xlu0 %2272
      %2274 = vrot.lane.b32.xlu0 %v1895, 96
      %v2275 = vpop.permute.xlu0 %2274
      %2276 = vrot.lane.b32.xlu0 %v1896, 96
      %v2277 = vpop.permute.xlu0 %2276
      %2278 = vrot.lane.b32.xlu0 %v1897, 96
      %v2279 = vpop.permute.xlu0 %2278
      %2280 = vrot.lane.b32.xlu0 %v1898, 96
      %v2281 = vpop.permute.xlu0 %2280
      %2282 = vrot.lane.b32.xlu0 %v1899, 96
      %v2283 = vpop.permute.xlu0 %2282
      %2300 = vrot.lane.b32.xlu0 %v1932, 112
      %v2301 = vpop.permute.xlu0 %2300
      %2302 = vrot.lane.b32.xlu0 %v1933, 112
      %v2303 = vpop.permute.xlu0 %2302
      %2304 = vrot.lane.b32.xlu0 %v1934, 112
      %v2305 = vpop.permute.xlu0 %2304
      %2306 = vrot.lane.b32.xlu0 %v1935, 112
      %v2307 = vpop.permute.xlu0 %2306
      %2308 = vrot.lane.b32.xlu0 %v1936, 112
      %v2309 = vpop.permute.xlu0 %2308
      %2310 = vrot.lane.b32.xlu0 %v1937, 112
      %v2311 = vpop.permute.xlu0 %2310
      %2312 = vrot.lane.b32.xlu0 %v1938, 112
      %v2313 = vpop.permute.xlu0 %2312
      %2314 = vrot.lane.b32.xlu0 %v1939, 112
      %v2315 = vpop.permute.xlu0 %2314
      %2316 = vrot.lane.b32.xlu0 %v1940, 112
      %v2317 = vpop.permute.xlu0 %2316
      %2318 = vrot.lane.b32.xlu0 %v1941, 112
      %v2319 = vpop.permute.xlu0 %2318
      %2320 = vrot.lane.b32.xlu0 %v1942, 112
      %v2321 = vpop.permute.xlu0 %2320
      %2322 = vrot.lane.b32.xlu0 %v1943, 112
      %v2323 = vpop.permute.xlu0 %2322
      %2324 = vrot.lane.b32.xlu0 %v1944, 112
      %v2325 = vpop.permute.xlu0 %2324
      %2326 = vrot.lane.b32.xlu0 %v1945, 112
      %v2327 = vpop.permute.xlu0 %2326
      %2328 = vrot.lane.b32.xlu0 %v1946, 112
      %v2329 = vpop.permute.xlu0 %2328
      %2330 = vrot.lane.b32.xlu0 %v1947, 112
      %v2331 = vpop.permute.xlu0 %2330
      %v2334 = vsel %vm1484, %v1595, %v2013
      %v2337 = vsel %vm1484, %v1596, %v2015
      %v2340 = vsel %vm1484, %v1597, %v2017
      %v2343 = vsel %vm1484, %v1598, %v2019
      %v2346 = vsel %vm1484, %v1599, %v2021
      %v2349 = vsel %vm1484, %v1600, %v2023
      %v2352 = vsel %vm1484, %v1601, %v2025
      %v2355 = vsel %vm1484, %v1602, %v2027
      %v2358 = vsel %vm1484, %v1603, %v2029
      %v2361 = vsel %vm1484, %v1604, %v2031
      %v2364 = vsel %vm1484, %v1605, %v2033
      %v2367 = vsel %vm1484, %v1606, %v2035
      %v2370 = vsel %vm1484, %v1607, %v2037
      %v2373 = vsel %vm1484, %v1608, %v2039
      %v2376 = vsel %vm1484, %v1609, %v2041
      %v2379 = vsel %vm1484, %v1610, %v2043
      %vm2380 = vcmask 261120
      %v2382 = vsel %vm2380, %v2334, %v2061
      %v2384 = vsel %vm2380, %v2337, %v2063
      %v2386 = vsel %vm2380, %v2340, %v2065
      %v2388 = vsel %vm2380, %v2343, %v2067
      %v2390 = vsel %vm2380, %v2346, %v2069
      %v2392 = vsel %vm2380, %v2349, %v2071
      %v2394 = vsel %vm2380, %v2352, %v2073
      %v2396 = vsel %vm2380, %v2355, %v2075
      %v2398 = vsel %vm2380, %v2358, %v2077
      %v2400 = vsel %vm2380, %v2361, %v2079
      %v2402 = vsel %vm2380, %v2364, %v2081
      %v2404 = vsel %vm2380, %v2367, %v2083
      %v2406 = vsel %vm2380, %v2370, %v2085
      %v2408 = vsel %vm2380, %v2373, %v2087
      %v2410 = vsel %vm2380, %v2376, %v2089
      %v2412 = vsel %vm2380, %v2379, %v2091
      %v2414 = vsel %vm1066, %v2382, %v2109
      %v2416 = vsel %vm1066, %v2384, %v2111
      %v2418 = vsel %vm1066, %v2386, %v2113
      %v2420 = vsel %vm1066, %v2388, %v2115
      %v2422 = vsel %vm1066, %v2390, %v2117
      %v2424 = vsel %vm1066, %v2392, %v2119
      %v2426 = vsel %vm1066, %v2394, %v2121
      %v2428 = vsel %vm1066, %v2396, %v2123
      %v2430 = vsel %vm1066, %v2398, %v2125
      %v2432 = vsel %vm1066, %v2400, %v2127
      %v2434 = vsel %vm1066, %v2402, %v2129
      %v2436 = vsel %vm1066, %v2404, %v2131
      %v2438 = vsel %vm1066, %v2406, %v2133
      %v2440 = vsel %vm1066, %v2408, %v2135
      %v2442 = vsel %vm1066, %v2410, %v2137
      %v2444 = vsel %vm1066, %v2412, %v2139
      %vm2445 = vcmask 523264
      %v2447 = vsel %vm2445, %v2414, %v2157
      %v2449 = vsel %vm2445, %v2416, %v2159
      %v2451 = vsel %vm2445, %v2418, %v2161
      %v2453 = vsel %vm2445, %v2420, %v2163
      %v2455 = vsel %vm2445, %v2422, %v2165
      %v2457 = vsel %vm2445, %v2424, %v2167
      %v2459 = vsel %vm2445, %v2426, %v2169
      %v2461 = vsel %vm2445, %v2428, %v2171
      %v2463 = vsel %vm2445, %v2430, %v2173
      %v2465 = vsel %vm2445, %v2432, %v2175
      %v2467 = vsel %vm2445, %v2434, %v2177
      %v2469 = vsel %vm2445, %v2436, %v2179
      %v2471 = vsel %vm2445, %v2438, %v2181
      %v2473 = vsel %vm2445, %v2440, %v2183
      %v2475 = vsel %vm2445, %v2442, %v2185
      %v2477 = vsel %vm2445, %v2444, %v2187
      %vm2478 = vcmask 654336
      %v2480 = vsel %vm2478, %v2447, %v2205
      %v2482 = vsel %vm2478, %v2449, %v2207
      %v2484 = vsel %vm2478, %v2451, %v2209
      %v2486 = vsel %vm2478, %v2453, %v2211
      %v2488 = vsel %vm2478, %v2455, %v2213
      %v2490 = vsel %vm2478, %v2457, %v2215
      %v2492 = vsel %vm2478, %v2459, %v2217
      %v2494 = vsel %vm2478, %v2461, %v2219
      %v2496 = vsel %vm2478, %v2463, %v2221
      %v2498 = vsel %vm2478, %v2465, %v2223
      %v2500 = vsel %vm2478, %v2467, %v2225
      %v2502 = vsel %vm2478, %v2469, %v2227
      %v2504 = vsel %vm2478, %v2471, %v2229
      %v2506 = vsel %vm2478, %v2473, %v2231
      %v2508 = vsel %vm2478, %v2475, %v2233
      %v2510 = vsel %vm2478, %v2477, %v2235
      %vm2511 = vcmask 785408
      %v2513 = vsel %vm2511, %v2480, %v2253
      %v2515 = vsel %vm2511, %v2482, %v2255
      %v2517 = vsel %vm2511, %v2484, %v2257
      %v2519 = vsel %vm2511, %v2486, %v2259
      %v2521 = vsel %vm2511, %v2488, %v2261
      %v2523 = vsel %vm2511, %v2490, %v2263
      %v2525 = vsel %vm2511, %v2492, %v2265
      %v2527 = vsel %vm2511, %v2494, %v2267
      %v2529 = vsel %vm2511, %v2496, %v2269
      %v2531 = vsel %vm2511, %v2498, %v2271
      %v2533 = vsel %vm2511, %v2500, %v2273
      %v2535 = vsel %vm2511, %v2502, %v2275
      %v2537 = vsel %vm2511, %v2504, %v2277
      %v2539 = vsel %vm2511, %v2506, %v2279
      %v2541 = vsel %vm2511, %v2508, %v2281
      %v2543 = vsel %vm2511, %v2510, %v2283
      %vm2544 = vcmask 916480
      %v2546 = vsel %vm2544, %v2513, %v2301
      %v2549 = vsel %vm2544, %v2515, %v2303
      %v2552 = vsel %vm2544, %v2517, %v2305
      %v2555 = vsel %vm2544, %v2519, %v2307
      %v2558 = vsel %vm2544, %v2521, %v2309
      %v2561 = vsel %vm2544, %v2523, %v2311
      %v2564 = vsel %vm2544, %v2525, %v2313
      %v2567 = vsel %vm2544, %v2527, %v2315
      %v2570 = vsel %vm2544, %v2529, %v2317
      %v2573 = vsel %vm2544, %v2531, %v2319
      %v2576 = vsel %vm2544, %v2533, %v2321
      %v2579 = vsel %vm2544, %v2535, %v2323
      %v2582 = vsel %vm2544, %v2537, %v2325
      %v2585 = vsel %vm2544, %v2539, %v2327
      %v2588 = vsel %vm2544, %v2541, %v2329
      %v2591 = vsel %vm2544, %v2543, %v2331
      %v2593 = vld [vmem:[%s3] sm:$0xf]
      %v2594 = vld [vmem:[%s3 + $0x4] sm:$0xf]
      %v2595 = vld [vmem:[%s3 + $0x8] sm:$0xf]
      %v2596 = vld [vmem:[%s3 + $0xc] sm:$0xf]
      %v2597 = vld [vmem:[%s3 + $0x10] sm:$0xf]
      %v2598 = vld [vmem:[%s3 + $0x14] sm:$0xf]
      %v2599 = vld [vmem:[%s3 + $0x18] sm:$0xf]
      %v2600 = vld [vmem:[%s3 + $0x1c] sm:$0xf]
      %v2601 = vld [vmem:[%s3 + $0x20] sm:$0xf]
      %v2602 = vld [vmem:[%s3 + $0x24] sm:$0xf]
      %v2603 = vld [vmem:[%s3 + $0x28] sm:$0xf]
      %v2604 = vld [vmem:[%s3 + $0x2c] sm:$0xf]
      %v2605 = vld [vmem:[%s3 + $0x30] sm:$0xf]
      %v2606 = vld [vmem:[%s3 + $0x34] sm:$0xf]
      %v2607 = vld [vmem:[%s3 + $0x38] sm:$0xf]
      %v2608 = vld [vmem:[%s3 + $0x3c] sm:$0xf]
      %v2609 = vld [vmem:[%s3 + $0x40] sm:$0xf]
      %v2610 = vld [vmem:[%s3 + $0x44] sm:$0xf]
      %v2611 = vld [vmem:[%s4] sm:$0x1]
      %v2613 = vlaneseq
      %v2614 = vshrl.u32 %v2613, 7
      %v2615 = vsub.s32 0, %v2614
      %v2616 = vrot.slane %v2611, %v2615
      %v2636 = vunpack.c.l.b16 %v2593
      %v2637 = vunpack.c.l.b16 %v2594
      %v2638 = vunpack.c.l.b16 %v2595
      %v2639 = vunpack.c.l.b16 %v2596
      %v2640 = vunpack.c.l.b16 %v2597
      %v2641 = vunpack.c.l.b16 %v2598
      %v2642 = vunpack.c.l.b16 %v2599
      %v2643 = vunpack.c.l.b16 %v2600
      %v2644 = vunpack.c.l.b16 %v2601
      %v2645 = vunpack.c.l.b16 %v2602
      %v2646 = vunpack.c.l.b16 %v2603
      %v2647 = vunpack.c.l.b16 %v2604
      %v2648 = vunpack.c.l.b16 %v2605
      %v2649 = vunpack.c.l.b16 %v2606
      %v2650 = vunpack.c.l.b16 %v2607
      %v2651 = vunpack.c.l.b16 %v2608
      %v2652 = vunpack.c.l.b16 %v2609
      %v2653 = vunpack.c.l.b16 %v2610
      %v2654 = vpack.c.b16 %v2637, %v2636
      %v2655 = vpack.c.b16 %v2639, %v2638
      %v2656 = vpack.c.b16 %v2641, %v2640
      %v2657 = vpack.c.b16 %v2643, %v2642
      %v2658 = vpack.c.b16 %v2645, %v2644
      %v2659 = vpack.c.b16 %v2647, %v2646
      %v2660 = vpack.c.b16 %v2649, %v2648
      %v2661 = vpack.c.b16 %v2651, %v2650
      %v2662 = vpack.c.b16 %v2653, %v2652
      %v2673 = vsel %vm1484, %v1980, 0
      %v2676 = vsel %vm1484, %v1981, 0
      %v2679 = vsel %vm1484, %v1982, 0
      %v2682 = vsel %vm1484, %v1983, 0
      %v2685 = vsel %vm1484, %v1984, 0
      %v2688 = vsel %vm1484, %v1985, 0
      %v2691 = vsel %vm1484, %v1986, 0
      %v2694 = vsel %vm1484, %v1987, 0
      %v2697 = vsel %vm1484, %v1988, 0
      %v2700 = vsel %vm1484, %v1989, 0
      %v2703 = vsel %vm1484, %v1990, 0
      %v2706 = vsel %vm1484, %v1991, 0
      %v2709 = vsel %vm1484, %v1992, 0
      %v2712 = vsel %vm1484, %v1993, 0
      %v2715 = vsel %vm1484, %v1994, 0
      %v2718 = vsel %vm1484, %v1995, 0
      %2720 = vmatprep.subr.bf16.mxu0 0
      %2721 = vmatpush1.bf16.msra.mxu0 %v2654
      %2722 = vmatprep.subr.bf16.mxu0 0
      %2723 = vmatpush1.bf16.msra.mxu0 %v2655
      %2724 = vmatprep.subr.bf16.mxu0 0
      %2725 = vmatpush1.bf16.msra.mxu0 %v2656
      %2726 = vmatprep.subr.bf16.mxu0 0
      %2727 = vmatpush1.bf16.msra.mxu0 %v2657
      %2728 = vmatprep.subr.bf16.mxu0 0
      %2729 = vmatpush1.bf16.msra.mxu0 %v2658
      %2730 = vmatprep.subr.bf16.mxu0 0
      %2731 = vmatpush1.bf16.msra.mxu0 %v2659
      %2732 = vmatprep.subr.bf16.mxu0 0
      %2733 = vmatpush1.bf16.msra.mxu0 %v2660
      %2734 = vmatprep.subr.bf16.mxu0 0
      %2735 = vmatpush1.bf16.msra.mxu0 %v2661
      %2736 = vmatprep.subr.bf16.mxu0 0
      %2737 = vmatpush1.bf16.msra.mxu0 %v2662
      %2738 = vmatprep.subr.bf16.mxu0 0
      %2739 = vmatpush1.bf16.msra.mxu0 0
      %2740 = vmatprep.subr.bf16.mxu0 0
      %2741 = vmatpush1.bf16.msra.mxu0 0
      %2742 = vmatprep.subr.bf16.mxu0 0
      %2743 = vmatpush1.bf16.msra.mxu0 0
      %2744 = vmatprep.subr.bf16.mxu0 0
      %2745 = vmatpush1.bf16.msra.mxu0 0
      %2746 = vmatprep.subr.bf16.mxu0 0
      %2747 = vmatpush1.bf16.msra.mxu0 0
      %2748 = vmatprep.subr.bf16.mxu0 0
      %2749 = vmatpush1.bf16.msra.mxu0 0
      %2750 = vmatprep.subr.bf16.mxu0 0
      %2751 = vmatpush1.bf16.msra.mxu0 0
      %2752 = vmatprep.mubr.bf16.mxu0 %v2673
      %2753 = vmatmul.mubr.bf16.gmra.mrb[0].mxu0 %v2546
      %v2754 = vpop.f32.mrb[0].mxu0
      %v2755 = vadd.f32 %v2616, %v2754
      %v2756 = vpop.f32.mrb[0].mxu0
      %v2757 = vpop.f32.mrb[0].mxu0
      %v2758 = vadd.f32 %v2616, %v2757
      %v2759 = vpop.f32.mrb[0].mxu0
      %2760 = vmatprep.mubr.bf16.mxu0 %v2676
      %2761 = vmatmul.mubr.bf16.gmra.mrb[0].mxu0 %v2549
      %v2762 = vpop.f32.mrb[0].mxu0
      %v2763 = vadd.f32 %v2616, %v2762
      %v2764 = vpop.f32.mrb[0].mxu0
      %v2765 = vpop.f32.mrb[0].mxu0
      %v2766 = vadd.f32 %v2616, %v2765
      %v2767 = vpop.f32.mrb[0].mxu0
      %2768 = vmatprep.mubr.bf16.mxu0 %v2679
      %2769 = vmatmul.mubr.bf16.gmra.mrb[0].mxu0 %v2552
      %v2770 = vpop.f32.mrb[0].mxu0
      %v2771 = vadd.f32 %v2616, %v2770
      %v2772 = vpop.f32.mrb[0].mxu0
      %v2773 = vpop.f32.mrb[0].mxu0
      %v2774 = vadd.f32 %v2616, %v2773
      %v2775 = vpop.f32.mrb[0].mxu0
      %2776 = vmatprep.mubr.bf16.mxu0 %v2682
      %2777 = vmatmul.mubr.bf16.gmra.mrb[0].mxu0 %v2555
      %v2778 = vpop.f32.mrb[0].mxu0
      %v2779 = vadd.f32 %v2616, %v2778
      %v2780 = vpop.f32.mrb[0].mxu0
      %v2781 = vpop.f32.mrb[0].mxu0
      %v2782 = vadd.f32 %v2616, %v2781
      %v2783 = vpop.f32.mrb[0].mxu0
      %2784 = vmatprep.mubr.bf16.mxu0 %v2685
      %2785 = vmatmul.mubr.bf16.gmra.mrb[0].mxu0 %v2558
      %v2786 = vpop.f32.mrb[0].mxu0
      %v2787 = vadd.f32 %v2616, %v2786
      %v2788 = vpop.f32.mrb[0].mxu0
      %v2789 = vpop.f32.mrb[0].mxu0
      %v2790 = vadd.f32 %v2616, %v2789
      %v2791 = vpop.f32.mrb[0].mxu0
      %2792 = vmatprep.mubr.bf16.mxu0 %v2688
      %2793 = vmatmul.mubr.bf16.gmra.mrb[0].mxu0 %v2561
      %v2794 = vpop.f32.mrb[0].mxu0
      %v2795 = vadd.f32 %v2616, %v2794
      %v2796 = vpop.f32.mrb[0].mxu0
      %v2797 = vpop.f32.mrb[0].mxu0
      %v2798 = vadd.f32 %v2616, %v2797
      %v2799 = vpop.f32.mrb[0].mxu0
      %2800 = vmatprep.mubr.bf16.mxu0 %v2691
      %2801 = vmatmul.mubr.bf16.gmra.mrb[0].mxu0 %v2564
      %v2802 = vpop.f32.mrb[0].mxu0
      %v2803 = vadd.f32 %v2616, %v2802
      %v2804 = vpop.f32.mrb[0].mxu0
      %v2805 = vpop.f32.mrb[0].mxu0
      %v2806 = vadd.f32 %v2616, %v2805
      %v2807 = vpop.f32.mrb[0].mxu0
      %2808 = vmatprep.mubr.bf16.mxu0 %v2694
      %2809 = vmatmul.mubr.bf16.gmra.mrb[0].mxu0 %v2567
      %v2810 = vpop.f32.mrb[0].mxu0
      %v2811 = vadd.f32 %v2616, %v2810
      %v2812 = vpop.f32.mrb[0].mxu0
      %v2813 = vpop.f32.mrb[0].mxu0
      %v2814 = vadd.f32 %v2616, %v2813
      %v2815 = vpop.f32.mrb[0].mxu0
      %2816 = vmatprep.mubr.bf16.mxu0 %v2697
      %2817 = vmatmul.mubr.bf16.gmra.mrb[0].mxu0 %v2570
      %v2818 = vpop.f32.mrb[0].mxu0
      %v2819 = vadd.f32 %v2616, %v2818
      %v2820 = vpop.f32.mrb[0].mxu0
      %v2821 = vpop.f32.mrb[0].mxu0
      %v2822 = vadd.f32 %v2616, %v2821
      %v2823 = vpop.f32.mrb[0].mxu0
      %2824 = vmatprep.mubr.bf16.mxu0 %v2700
      %2825 = vmatmul.mubr.bf16.gmra.mrb[0].mxu0 %v2573
      %v2826 = vpop.f32.mrb[0].mxu0
      %v2827 = vadd.f32 %v2616, %v2826
      %v2828 = vpop.f32.mrb[0].mxu0
      %v2829 = vpop.f32.mrb[0].mxu0
      %v2830 = vadd.f32 %v2616, %v2829
      %v2831 = vpop.f32.mrb[0].mxu0
      %2832 = vmatprep.mubr.bf16.mxu0 %v2703
      %2833 = vmatmul.mubr.bf16.gmra.mrb[0].mxu0 %v2576
      %v2834 = vpop.f32.mrb[0].mxu0
      %v2835 = vadd.f32 %v2616, %v2834
      %v2836 = vpop.f32.mrb[0].mxu0
      %v2837 = vpop.f32.mrb[0].mxu0
      %v2838 = vadd.f32 %v2616, %v2837
      %v2839 = vpop.f32.mrb[0].mxu0
      %2840 = vmatprep.mubr.bf16.mxu0 %v2706
      %2841 = vmatmul.mubr.bf16.gmra.mrb[0].mxu0 %v2579
      %v2842 = vpop.f32.mrb[0].mxu0
      %v2843 = vadd.f32 %v2616, %v2842
      %v2844 = vpop.f32.mrb[0].mxu0
      %v2845 = vpop.f32.mrb[0].mxu0
      %v2846 = vadd.f32 %v2616, %v2845
      %v2847 = vpop.f32.mrb[0].mxu0
      %2848 = vmatprep.mubr.bf16.mxu0 %v2709
      %2849 = vmatmul.mubr.bf16.gmra.mrb[0].mxu0 %v2582
      %v2850 = vpop.f32.mrb[0].mxu0
      %v2851 = vadd.f32 %v2616, %v2850
      %v2852 = vpop.f32.mrb[0].mxu0
      %v2853 = vpop.f32.mrb[0].mxu0
      %v2854 = vadd.f32 %v2616, %v2853
      %v2855 = vpop.f32.mrb[0].mxu0
      %2856 = vmatprep.mubr.bf16.mxu0 %v2712
      %2857 = vmatmul.mubr.bf16.gmra.mrb[0].mxu0 %v2585
      %v2858 = vpop.f32.mrb[0].mxu0
      %v2859 = vadd.f32 %v2616, %v2858
      %v2860 = vpop.f32.mrb[0].mxu0
      %v2861 = vpop.f32.mrb[0].mxu0
      %v2862 = vadd.f32 %v2616, %v2861
      %v2863 = vpop.f32.mrb[0].mxu0
      %2864 = vmatprep.mubr.bf16.mxu0 %v2715
      %2865 = vmatmul.mubr.bf16.gmra.mrb[0].mxu0 %v2588
      %v2866 = vpop.f32.mrb[0].mxu0
      %v2867 = vadd.f32 %v2616, %v2866
      %v2868 = vpop.f32.mrb[0].mxu0
      %v2869 = vpop.f32.mrb[0].mxu0
      %v2870 = vadd.f32 %v2616, %v2869
      %v2871 = vpop.f32.mrb[0].mxu0
      %2872 = vmatprep.mubr.bf16.mxu0 %v2718
      %2873 = vmatmul.mubr.bf16.gmra.mrb[0].mxu0 %v2591
      %v2874 = vpop.f32.mrb[0].mxu0
      %v2875 = vadd.f32 %v2616, %v2874
      %v2876 = vpop.f32.mrb[0].mxu0
      %v2877 = vpop.f32.mrb[0].mxu0
      %v2878 = vadd.f32 %v2616, %v2877
      %v2879 = vpop.f32.mrb[0].mxu0
      %2880 = vdwg.mxu0
      %v2881 = vxor.u32 %v2755, 2147483648
      %v2882 = vxor.u32 %v2758, 2147483648
      %v2883 = vxor.u32 %v2763, 2147483648
      %v2884 = vxor.u32 %v2766, 2147483648
      %v2885 = vxor.u32 %v2771, 2147483648
      %v2886 = vxor.u32 %v2774, 2147483648
      %v2887 = vxor.u32 %v2779, 2147483648
      %v2888 = vxor.u32 %v2782, 2147483648
      %v2889 = vxor.u32 %v2787, 2147483648
      %v2890 = vxor.u32 %v2790, 2147483648
      %v2891 = vxor.u32 %v2795, 2147483648
      %v2892 = vxor.u32 %v2798, 2147483648
      %v2893 = vxor.u32 %v2803, 2147483648
      %v2894 = vxor.u32 %v2806, 2147483648
      %v2895 = vxor.u32 %v2811, 2147483648
      %v2896 = vxor.u32 %v2814, 2147483648
      %v2897 = vxor.u32 %v2819, 2147483648
      %v2898 = vxor.u32 %v2822, 2147483648
      %v2899 = vxor.u32 %v2827, 2147483648
      %v2900 = vxor.u32 %v2830, 2147483648
      %v2901 = vxor.u32 %v2835, 2147483648
      %v2902 = vxor.u32 %v2838, 2147483648
      %v2903 = vxor.u32 %v2843, 2147483648
      %v2904 = vxor.u32 %v2846, 2147483648
      %v2905 = vxor.u32 %v2851, 2147483648
      %v2906 = vxor.u32 %v2854, 2147483648
      %v2907 = vxor.u32 %v2859, 2147483648
      %v2908 = vxor.u32 %v2862, 2147483648
      %v2909 = vxor.u32 %v2867, 2147483648
      %v2910 = vxor.u32 %v2870, 2147483648
      %v2911 = vxor.u32 %v2875, 2147483648
      %v2912 = vxor.u32 %v2878, 2147483648
      %v2913 = vmul.f32 %v2881, 1.442695
      %v2914 = vpow.pop %v2913
      %v2915 = vmul.f32 %v2882, 1.442695
      %v2916 = vpow.pop %v2915
      %v2917 = vmul.f32 %v2883, 1.442695
      %v2918 = vpow.pop %v2917
      %v2919 = vmul.f32 %v2884, 1.442695
      %v2920 = vpow.pop %v2919
      %v2921 = vmul.f32 %v2885, 1.442695
      %v2922 = vpow.pop %v2921
      %v2923 = vmul.f32 %v2886, 1.442695
      %v2924 = vpow.pop %v2923
      %v2925 = vmul.f32 %v2887, 1.442695
      %v2926 = vpow.pop %v2925
      %v2927 = vmul.f32 %v2888, 1.442695
      %v2928 = vpow.pop %v2927
      %v2929 = vmul.f32 %v2889, 1.442695
      %v2930 = vpow.pop %v2929
      %v2931 = vmul.f32 %v2890, 1.442695
      %v2932 = vpow.pop %v2931
      %v2933 = vmul.f32 %v2891, 1.442695
      %v2934 = vpow.pop %v2933
      %v2935 = vmul.f32 %v2892, 1.442695
      %v2936 = vpow.pop %v2935
      %v2937 = vmul.f32 %v2893, 1.442695
      %v2938 = vpow.pop %v2937
      %v2939 = vmul.f32 %v2894, 1.442695
      %v2940 = vpow.pop %v2939
      %v2941 = vmul.f32 %v2895, 1.442695
      %v2942 = vpow.pop %v2941
      %v2943 = vmul.f32 %v2896, 1.442695
      %v2944 = vpow.pop %v2943
      %v2945 = vmul.f32 %v2897, 1.442695
      %v2946 = vpow.pop %v2945
      %v2947 = vmul.f32 %v2898, 1.442695
      %v2948 = vpow.pop %v2947
      %v2949 = vmul.f32 %v2899, 1.442695
      %v2950 = vpow.pop %v2949
      %v2951 = vmul.f32 %v2900, 1.442695
      %v2952 = vpow.pop %v2951
      %v2953 = vmul.f32 %v2901, 1.442695
      %v2954 = vpow.pop %v2953
      %v2955 = vmul.f32 %v2902, 1.442695
      %v2956 = vpow.pop %v2955
      %v2957 = vmul.f32 %v2903, 1.442695
      %v2958 = vpow.pop %v2957
      %v2959 = vmul.f32 %v2904, 1.442695
      %v2960 = vpow.pop %v2959
      %v2961 = vmul.f32 %v2905, 1.442695
      %v2962 = vpow.pop %v2961
      %v2963 = vmul.f32 %v2906, 1.442695
      %v2964 = vpow.pop %v2963
      %v2965 = vmul.f32 %v2907, 1.442695
      %v2966 = vpow.pop %v2965
      %v2967 = vmul.f32 %v2908, 1.442695
      %v2968 = vpow.pop %v2967
      %v2969 = vmul.f32 %v2909, 1.442695
      %v2970 = vpow.pop %v2969
      %v2971 = vmul.f32 %v2910, 1.442695
      %v2972 = vpow.pop %v2971
      %v2973 = vmul.f32 %v2911, 1.442695
      %v2974 = vpow.pop %v2973
      %v2975 = vmul.f32 %v2912, 1.442695
      %v2976 = vpow.pop %v2975
      %v2977 = vadd.f32 %v2914, 1.0
      %v2978 = vadd.f32 %v2916, 1.0
      %v2979 = vadd.f32 %v2918, 1.0
      %v2980 = vadd.f32 %v2920, 1.0
      %v2981 = vadd.f32 %v2922, 1.0
      %v2982 = vadd.f32 %v2924, 1.0
      %v2983 = vadd.f32 %v2926, 1.0
      %v2984 = vadd.f32 %v2928, 1.0
      %v2985 = vadd.f32 %v2930, 1.0
      %v2986 = vadd.f32 %v2932, 1.0
      %v2987 = vadd.f32 %v2934, 1.0
      %v2988 = vadd.f32 %v2936, 1.0
      %v2989 = vadd.f32 %v2938, 1.0
      %v2990 = vadd.f32 %v2940, 1.0
      %v2991 = vadd.f32 %v2942, 1.0
      %v2992 = vadd.f32 %v2944, 1.0
      %v2993 = vadd.f32 %v2946, 1.0
      %v2994 = vadd.f32 %v2948, 1.0
      %v2995 = vadd.f32 %v2950, 1.0
      %v2996 = vadd.f32 %v2952, 1.0
      %v2997 = vadd.f32 %v2954, 1.0
      %v2998 = vadd.f32 %v2956, 1.0
      %v2999 = vadd.f32 %v2958, 1.0
      %v3000 = vadd.f32 %v2960, 1.0
      %v3001 = vadd.f32 %v2962, 1.0
      %v3002 = vadd.f32 %v2964, 1.0
      %v3003 = vadd.f32 %v2966, 1.0
      %v3004 = vadd.f32 %v2968, 1.0
      %v3005 = vadd.f32 %v2970, 1.0
      %v3006 = vadd.f32 %v2972, 1.0
      %v3007 = vadd.f32 %v2974, 1.0
      %v3008 = vadd.f32 %v2976, 1.0
      %v3009 = vrcp.pop %v2977
      %v3010 = vmul.f32 1.0, %v3009
      %v3011 = vrcp.pop %v2978
      %v3012 = vmul.f32 1.0, %v3011
      %v3013 = vrcp.pop %v2979
      %v3014 = vmul.f32 1.0, %v3013
      %v3015 = vrcp.pop %v2980
      %v3016 = vmul.f32 1.0, %v3015
      %v3017 = vrcp.pop %v2981
      %v3018 = vmul.f32 1.0, %v3017
      %v3019 = vrcp.pop %v2982
      %v3020 = vmul.f32 1.0, %v3019
      %v3021 = vrcp.pop %v2983
      %v3022 = vmul.f32 1.0, %v3021
      %v3023 = vrcp.pop %v2984
      %v3024 = vmul.f32 1.0, %v3023
      %v3025 = vrcp.pop %v2985
      %v3026 = vmul.f32 1.0, %v3025
      %v3027 = vrcp.pop %v2986
      %v3028 = vmul.f32 1.0, %v3027
      %v3029 = vrcp.pop %v2987
      %v3030 = vmul.f32 1.0, %v3029
      %v3031 = vrcp.pop %v2988
      %v3032 = vmul.f32 1.0, %v3031
      %v3033 = vrcp.pop %v2989
      %v3034 = vmul.f32 1.0, %v3033
      %v3035 = vrcp.pop %v2990
      %v3036 = vmul.f32 1.0, %v3035
      %v3037 = vrcp.pop %v2991
      %v3038 = vmul.f32 1.0, %v3037
      %v3039 = vrcp.pop %v2992
      %v3040 = vmul.f32 1.0, %v3039
      %v3041 = vrcp.pop %v2993
      %v3042 = vmul.f32 1.0, %v3041
      %v3043 = vrcp.pop %v2994
      %v3044 = vmul.f32 1.0, %v3043
      %v3045 = vrcp.pop %v2995
      %v3046 = vmul.f32 1.0, %v3045
      %v3047 = vrcp.pop %v2996
      %v3048 = vmul.f32 1.0, %v3047
      %v3049 = vrcp.pop %v2997
      %v3050 = vmul.f32 1.0, %v3049
      %v3051 = vrcp.pop %v2998
      %v3052 = vmul.f32 1.0, %v3051
      %v3053 = vrcp.pop %v2999
      %v3054 = vmul.f32 1.0, %v3053
      %v3055 = vrcp.pop %v3000
      %v3056 = vmul.f32 1.0, %v3055
      %v3057 = vrcp.pop %v3001
      %v3058 = vmul.f32 1.0, %v3057
      %v3059 = vrcp.pop %v3002
      %v3060 = vmul.f32 1.0, %v3059
      %v3061 = vrcp.pop %v3003
      %v3062 = vmul.f32 1.0, %v3061
      %v3063 = vrcp.pop %v3004
      %v3064 = vmul.f32 1.0, %v3063
      %v3065 = vrcp.pop %v3005
      %v3066 = vmul.f32 1.0, %v3065
      %v3067 = vrcp.pop %v3006
      %v3068 = vmul.f32 1.0, %v3067
      %v3069 = vrcp.pop %v3007
      %v3070 = vmul.f32 1.0, %v3069
      %v3071 = vrcp.pop %v3008
      %v3072 = vmul.f32 1.0, %v3071
      %v3073 = vmul.f32 %v2755, %v3010
      %v3074 = vmul.f32 %v2758, %v3012
      %v3075 = vmul.f32 %v2763, %v3014
      %v3076 = vmul.f32 %v2766, %v3016
      %v3077 = vmul.f32 %v2771, %v3018
      %v3078 = vmul.f32 %v2774, %v3020
      %v3079 = vmul.f32 %v2779, %v3022
      %v3080 = vmul.f32 %v2782, %v3024
      %v3081 = vmul.f32 %v2787, %v3026
      %v3082 = vmul.f32 %v2790, %v3028
      %v3083 = vmul.f32 %v2795, %v3030
      %v3084 = vmul.f32 %v2798, %v3032
      %v3085 = vmul.f32 %v2803, %v3034
      %v3086 = vmul.f32 %v2806, %v3036
      %v3087 = vmul.f32 %v2811, %v3038
      %v3088 = vmul.f32 %v2814, %v3040
      %v3089 = vmul.f32 %v2819, %v3042
      %v3090 = vmul.f32 %v2822, %v3044
      %v3091 = vmul.f32 %v2827, %v3046
      %v3092 = vmul.f32 %v2830, %v3048
      %v3093 = vmul.f32 %v2835, %v3050
      %v3094 = vmul.f32 %v2838, %v3052
      %v3095 = vmul.f32 %v2843, %v3054
      %v3096 = vmul.f32 %v2846, %v3056
      %v3097 = vmul.f32 %v2851, %v3058
      %v3098 = vmul.f32 %v2854, %v3060
      %v3099 = vmul.f32 %v2859, %v3062
      %v3100 = vmul.f32 %v2862, %v3064
      %v3101 = vmul.f32 %v2867, %v3066
      %v3102 = vmul.f32 %v2870, %v3068
      %v3103 = vmul.f32 %v2875, %v3070
      %v3104 = vmul.f32 %v2878, %v3072
      %v3105 = vadd.f32 %v1452, %v3073
      %v3106 = vadd.f32 %v1453, %v3074
      %v3107 = vadd.f32 %v1454, %v3075
      %v3108 = vadd.f32 %v1455, %v3076
      %v3109 = vadd.f32 %v1456, %v3077
      %v3110 = vadd.f32 %v1457, %v3078
      %v3111 = vadd.f32 %v1458, %v3079
      %v3112 = vadd.f32 %v1459, %v3080
      %v3113 = vadd.f32 %v1460, %v3081
      %v3114 = vadd.f32 %v1461, %v3082
      %v3115 = vadd.f32 %v1462, %v3083
      %v3116 = vadd.f32 %v1463, %v3084
      %v3117 = vadd.f32 %v1464, %v3085
      %v3118 = vadd.f32 %v1465, %v3086
      %v3119 = vadd.f32 %v1466, %v3087
      %v3120 = vadd.f32 %v1467, %v3088
      %v3121 = vadd.f32 %v1468, %v3089
      %v3122 = vadd.f32 %v1469, %v3090
      %v3123 = vadd.f32 %v1470, %v3091
      %v3124 = vadd.f32 %v1471, %v3092
      %v3125 = vadd.f32 %v1472, %v3093
      %v3126 = vadd.f32 %v1473, %v3094
      %v3127 = vadd.f32 %v1474, %v3095
      %v3128 = vadd.f32 %v1475, %v3096
      %v3129 = vadd.f32 %v1476, %v3097
      %v3130 = vadd.f32 %v1477, %v3098
      %v3131 = vadd.f32 %v1478, %v3099
      %v3132 = vadd.f32 %v1479, %v3100
      %v3133 = vadd.f32 %v1480, %v3101
      %v3134 = vadd.f32 %v1481, %v3102
      %v3135 = vadd.f32 %v1482, %v3103
      %v3136 = vadd.f32 %v1483, %v3104
      %v3137 = vpack.c.bf16 %v3106, %v3105
      %v3138 = vpack.c.bf16 %v3108, %v3107
      %v3139 = vpack.c.bf16 %v3110, %v3109
      %v3140 = vpack.c.bf16 %v3112, %v3111
      %v3141 = vpack.c.bf16 %v3114, %v3113
      %v3142 = vpack.c.bf16 %v3116, %v3115
      %v3143 = vpack.c.bf16 %v3118, %v3117
      %v3144 = vpack.c.bf16 %v3120, %v3119
      %v3145 = vpack.c.bf16 %v3122, %v3121
      %v3146 = vpack.c.bf16 %v3124, %v3123
      %v3147 = vpack.c.bf16 %v3126, %v3125
      %v3148 = vpack.c.bf16 %v3128, %v3127
      %v3149 = vpack.c.bf16 %v3130, %v3129
      %v3150 = vpack.c.bf16 %v3132, %v3131
      %v3151 = vpack.c.bf16 %v3134, %v3133
      %v3152 = vpack.c.bf16 %v3136, %v3135
      %v3169 = vunpack.c.l.b16 %v3137
      %v3170 = vunpack.c.h.b16 %v3137
      %v3171 = vunpack.c.l.b16 %v3138
      %v3172 = vunpack.c.h.b16 %v3138
      %v3173 = vunpack.c.l.b16 %v3139
      %v3174 = vunpack.c.h.b16 %v3139
      %v3175 = vunpack.c.l.b16 %v3140
      %v3176 = vunpack.c.h.b16 %v3140
      %v3177 = vunpack.c.l.b16 %v3141
      %v3178 = vunpack.c.h.b16 %v3141
      %v3179 = vunpack.c.l.b16 %v3142
      %v3180 = vunpack.c.h.b16 %v3142
      %v3181 = vunpack.c.l.b16 %v3143
      %v3182 = vunpack.c.h.b16 %v3143
      %v3183 = vunpack.c.l.b16 %v3144
      %v3184 = vunpack.c.h.b16 %v3144
      %v3185 = vunpack.c.l.b16 %v3145
      %v3186 = vunpack.c.h.b16 %v3145
      %v3187 = vunpack.c.l.b16 %v3146
      %v3188 = vunpack.c.h.b16 %v3146
      %v3189 = vunpack.c.l.b16 %v3147
      %v3190 = vunpack.c.h.b16 %v3147
      %v3191 = vunpack.c.l.b16 %v3148
      %v3192 = vunpack.c.h.b16 %v3148
      %v3193 = vunpack.c.l.b16 %v3149
      %v3194 = vunpack.c.h.b16 %v3149
      %v3195 = vunpack.c.l.b16 %v3150
      %v3196 = vunpack.c.h.b16 %v3150
      %v3197 = vunpack.c.l.b16 %v3151
      %v3198 = vunpack.c.h.b16 %v3151
      %v3199 = vunpack.c.l.b16 %v3152
      %v3200 = vunpack.c.h.b16 %v3152
      %v3201 = vpack.c.b16 %v3169, %v3169
      %v3202 = vpack.c.b16 %v3170, %v3170
      %v3203 = vpack.c.b16 %v3171, %v3171
      %v3204 = vpack.c.b16 %v3172, %v3172
      %v3205 = vpack.c.b16 %v3173, %v3173
      %v3206 = vpack.c.b16 %v3174, %v3174
      %v3207 = vpack.c.b16 %v3175, %v3175
      %v3208 = vpack.c.b16 %v3176, %v3176
      %v3209 = vpack.c.b16 %v3177, %v3177
      %v3210 = vpack.c.b16 %v3178, %v3178
      %v3211 = vpack.c.b16 %v3179, %v3179
      %v3212 = vpack.c.b16 %v3180, %v3180
      %v3213 = vpack.c.b16 %v3181, %v3181
      %v3214 = vpack.c.b16 %v3182, %v3182
      %v3215 = vpack.c.b16 %v3183, %v3183
      %v3216 = vpack.c.b16 %v3184, %v3184
      %v3217 = vpack.c.b16 %v3185, %v3185
      %v3218 = vpack.c.b16 %v3186, %v3186
      %v3219 = vpack.c.b16 %v3187, %v3187
      %v3220 = vpack.c.b16 %v3188, %v3188
      %v3221 = vpack.c.b16 %v3189, %v3189
      %v3222 = vpack.c.b16 %v3190, %v3190
      %v3223 = vpack.c.b16 %v3191, %v3191
      %v3224 = vpack.c.b16 %v3192, %v3192
      %v3225 = vpack.c.b16 %v3193, %v3193
      %v3226 = vpack.c.b16 %v3194, %v3194
      %v3227 = vpack.c.b16 %v3195, %v3195
      %v3228 = vpack.c.b16 %v3196, %v3196
      %v3229 = vpack.c.b16 %v3197, %v3197
      %v3230 = vpack.c.b16 %v3198, %v3198
      %v3231 = vpack.c.b16 %v3199, %v3199
      %v3232 = vpack.c.b16 %v3200, %v3200
      %vm3265 = vcmask 125952
      %3266 = vst.msk [vmem:[%s224] sm:$0xf] %vm3265, %v3201
      %3267 = vst.msk [vmem:[%s224 + $0x4] sm:$0xf] %vm3265, %v3202
      %3268 = vst.msk [vmem:[%s224 + $0x8] sm:$0xf] %vm3265, %v3203
      %3269 = vst.msk [vmem:[%s224 + $0xc] sm:$0xf] %vm3265, %v3204
      %3270 = vst.msk [vmem:[%s224 + $0x10] sm:$0xf] %vm3265, %v3205
      %3271 = vst.msk [vmem:[%s224 + $0x14] sm:$0xf] %vm3265, %v3206
      %3272 = vst.msk [vmem:[%s224 + $0x18] sm:$0xf] %vm3265, %v3207
      %3273 = vst.msk [vmem:[%s224 + $0x1c] sm:$0xf] %vm3265, %v3208
      %3274 = vst.msk [vmem:[%s224 + $0x20] sm:$0xf] %vm3265, %v3209
      %3275 = vst.msk [vmem:[%s224 + $0x24] sm:$0xf] %vm3265, %v3210
      %3276 = vst.msk [vmem:[%s224 + $0x28] sm:$0xf] %vm3265, %v3211
      %3277 = vst.msk [vmem:[%s224 + $0x2c] sm:$0xf] %vm3265, %v3212
      %3278 = vst.msk [vmem:[%s224 + $0x30] sm:$0xf] %vm3265, %v3213
      %3279 = vst.msk [vmem:[%s224 + $0x34] sm:$0xf] %vm3265, %v3214
      %3280 = vst.msk [vmem:[%s224 + $0x38] sm:$0xf] %vm3265, %v3215
      %3281 = vst.msk [vmem:[%s224 + $0x3c] sm:$0xf] %vm3265, %v3216
      %3282 = vst.msk [vmem:[%s224 + $0x40] sm:$0xf] %vm3265, %v3217
      %3283 = vst.msk [vmem:[%s224 + $0x44] sm:$0xf] %vm3265, %v3218
      %3284 = vst.msk [vmem:[%s224 + $0x48] sm:$0xf] %vm3265, %v3219
      %3285 = vst.msk [vmem:[%s224 + $0x4c] sm:$0xf] %vm3265, %v3220
      %3286 = vst.msk [vmem:[%s224 + $0x50] sm:$0xf] %vm3265, %v3221
      %3287 = vst.msk [vmem:[%s224 + $0x54] sm:$0xf] %vm3265, %v3222
      %3288 = vst.msk [vmem:[%s224 + $0x58] sm:$0xf] %vm3265, %v3223
      %3289 = vst.msk [vmem:[%s224 + $0x5c] sm:$0xf] %vm3265, %v3224
      %3290 = vst.msk [vmem:[%s224 + $0x60] sm:$0xf] %vm3265, %v3225
      %3291 = vst.msk [vmem:[%s224 + $0x64] sm:$0xf] %vm3265, %v3226
      %3292 = vst.msk [vmem:[%s224 + $0x68] sm:$0xf] %vm3265, %v3227
      %3293 = vst.msk [vmem:[%s224 + $0x6c] sm:$0xf] %vm3265, %v3228
      %3294 = vst.msk [vmem:[%s224 + $0x70] sm:$0xf] %vm3265, %v3229
      %3295 = vst.msk [vmem:[%s224 + $0x74] sm:$0xf] %vm3265, %v3230
      %3296 = vst.msk [vmem:[%s224 + $0x78] sm:$0xf] %vm3265, %v3231
      %3297 = vst.msk [vmem:[%s224 + $0x7c] sm:$0xf] %vm3265, %v3232
      %p3298 = scmp.lt.s32.totalorder %s16, 1
      %s3299 = scalar_select %p3298, %s16, 1
      %s3300 = smul.addr %s3299, 32
      %s3301 = smul.addr %s3300, 4
      %s3302 = scalar_lea.vmem %s5, %s3301
      // Predicated region
      $region41: #{efficientnet_forward.3} parent=39 // pred_check
        %p3303 = pneg %p144
      $region42: #{efficientnet_forward.3} parent=39 // pred_check_branch
        %3305 = sbr.rel (%p3303) target = $region44
      $region43: #{efficientnet_forward.3} parent=39 // pred_region
        _
      $region44: #{efficientnet_forward.3} parent=39 // pred_fallthru
        _
    $region40: #{efficientnet_forward.3} parent=5 // pred_fallthru
      _
    %p3306 = scmp.le.s32.totalorder 2, %s11
    // Predicated region
    $region45: #{efficientnet_forward.3} parent=5 // pred_check
      %p3307 = pneg %p3306
    $region46: #{efficientnet_forward.3} parent=5 // pred_check_branch
      %3309 = sbr.rel (%p3307) target = $region48
    $region47: #{efficientnet_forward.3} parent=5 // pred_region
      %s3310 = ssub.s32 %s11, 2
      // Predicated region
      $region49: #{efficientnet_forward.3} parent=47 // pred_check
        %p3311 = pneg %p150
      $region50: #{efficientnet_forward.3} parent=47 // pred_check_branch
        %3313 = sbr.rel (%p3311) target = $region52
      $region51: #{efficientnet_forward.3} parent=47 // pred_region
        %p3314 = scmp.lt.s32.totalorder %s17, 1
        %s3315 = scalar_select %p3314, %s17, 1
        %s3316 = smul.addr %s3315, 32
        %s3317 = smul.addr %s3316, 4
        %s3318 = scalar_lea.vmem %s5, %s3317
      $region52: #{efficientnet_forward.3} parent=47 // pred_fallthru
        _
    $region48: #{efficientnet_forward.3} parent=5 // pred_fallthru
      _
  $region6: #{efficientnet_forward.3} parent=0 // loop_footer
    %s15 = sadd.s32 1, %s11
  $region7: #{efficientnet_forward.3} parent=0 // loop_footer_branch
    %10 = sbr.rel target = $region3
  $region8: #{efficientnet_forward.3} parent=0 // loop_exit
    _

// kernel: efficientnet_forward.4
$region0: #{efficientnet_forward.4}
  #allocation0 [shape = 'u32[]', space=smem, size = 0x4, offset = 0x4, fixed_abs, tag = 'smem constant byte address 0x4 - core index']
  #allocation1 [shape = 'u32[144,128]{1,0:T(1,128)}', space=vmem, size = 0x12000, scoped, tag = 'internal scratch']
  %s0 = inlined_call_operand.vmem [shape: bf16[2,9,9,64], index: 0, kind: input, shape index: {}]
  %s1 = inlined_call_operand.vmem [shape: bf16[256,64], index: 1, kind: input, shape index: {}]
  %s2 = inlined_call_operand.vmem [shape: f32[1,64], index: 2, kind: input, shape index: {}]
  %s3 = inlined_call_operand.vmem [shape: bf16[64,128], index: 3, kind: input, shape index: {}]
  %s4 = inlined_call_operand.vmem [shape: f32[1,128], index: 4, kind: input, shape index: {}]
  %s5 = inlined_call_operand.vmem [shape: bf16[2,8,8,128], index: 5, kind: output, shape index: {}]
  %s6 = sld [smem:[#allocation0]]
  $region53: #{efficientnet_forward.4} parent=0
    _
  %s8 = ssub.s32 1, %s6
  %s9 = scalar_select 0, %s8, %s6
  loop: start=0, step=1, limit=4
  $region2: #{efficientnet_forward.4} parent=0 // loop_pre_header
    _
  $region3: #{efficientnet_forward.4} parent=0 // loop_header
    %s11 = sphi 0, %s15
    %p12 = scmp.ge.s32.totalorder %s11, 4
    %s21 = sphi 0, %s23
    %s24 = sphi 0, %s21
    %s25 = sphi 0, %s24
    %s41 = sphi 0, %s25
    %s45 = sphi 0, %s45
    %s47 = sphi 0, %s45
    %s48 = sphi 0, %s47
    %s62 = sphi 0, %s48
    %s66 = sphi 0, %s66
    %s68 = sphi 0, %s66
    %s69 = sphi 0, %s68
    %s83 = sphi 0, %s69
    %s87 = sphi 0, %s87
    %s89 = sphi 0, %s87
    %s90 = sphi 0, %s89
    %s104 = sphi 0, %s90
    %s108 = sphi 0, %s108
    %s110 = sphi 0, %s108
    %s111 = sphi 0, %s110
    %s125 = sphi 0, %s111
    %s131 = sphi 0, %s133
    %s134 = sphi 0, %s131
    %s135 = sphi 0, %s134
    %s151 = sphi 0, %s135
  $region4: #{efficientnet_forward.4} parent=0 // loop_header_branch
    %14 = sbr.rel (%p12) target = $region8
  $region5: #{efficientnet_forward.4} parent=0 // loop_body
    %s16 = ssub.s32 %s11, 1
    %s17 = ssub.s32 %s11, 2
    %s18 = sadd.s32 %s11, 1
    %s19 = ssub.s32 %s11, %s18
    %p20 = scmp.eq.s32.totalorder %s19, 0
    %s22 = sadd.s32 %s21, 1
    %s23 = scalar_select %p20, %s21, %s22
    %p26 = pneg %p20
    %p27 = scmp.eq.s32.totalorder %s11, 1
    %p28 = por %p26, %p27
    %p29 = scmp.ne.s32.totalorder %s21, %s24
    %p30 = scmp.eq.s32.totalorder %s11, 0
    %p31 = por %p29, %p30
    %p32 = scmp.ne.s32.totalorder %s21, %s24
    %p33 = scmp.eq.s32.totalorder %s16, 1
    %p34 = por %p32, %p33
    %p35 = scmp.ne.s32.totalorder %s24, %s25
    %p36 = scmp.eq.s32.totalorder %s16, 0
    %p37 = por %p35, %p36
    %p38 = scmp.ne.s32.totalorder %s24, %s25
    %p39 = scmp.eq.s32.totalorder %s17, 1
    %p40 = por %p38, %p39
    %p42 = scmp.ne.s32.totalorder %s25, %s41
    %p43 = scmp.eq.s32.totalorder %s17, 0
    %p44 = por %p42, %p43
    %s46 = sadd.s32 %s45, 1
    %p49 = scmp.eq.s32.totalorder %s11, 1
    %p50 = scmp.ne.s32.totalorder %s45, %s47
    %p51 = scmp.eq.s32.totalorder %s11, 0
    %p52 = por %p50, %p51
    %p53 = scmp.ne.s32.totalorder %s45, %s47
    %p54 = scmp.eq.s32.totalorder %s16, 1
    %p55 = por %p53, %p54
    %p56 = scmp.ne.s32.totalorder %s47, %s48
    %p57 = scmp.eq.s32.totalorder %s16, 0
    %p58 = por %p56, %p57
    %p59 = scmp.ne.s32.totalorder %s47, %s48
    %p60 = scmp.eq.s32.totalorder %s17, 1
    %p61 = por %p59, %p60
    %p63 = scmp.ne.s32.totalorder %s48, %s62
    %p64 = scmp.eq.s32.totalorder %s17, 0
    %p65 = por %p63, %p64
    %s67 = sadd.s32 %s66, 1
    %p70 = scmp.eq.s32.totalorder %s11, 1
    %p71 = scmp.ne.s32.totalorder %s66, %s68
    %p72 = scmp.eq.s32.totalorder %s11, 0
    %p73 = por %p71, %p72
    %p74 = scmp.ne.s32.totalorder %s66, %s68
    %p75 = scmp.eq.s32.totalorder %s16, 1
    %p76 = por %p74, %p75
    %p77 = scmp.ne.s32.totalorder %s68, %s69
    %p78 = scmp.eq.s32.totalorder %s16, 0
    %p79 = por %p77, %p78
    %p80 = scmp.ne.s32.totalorder %s68, %s69
    %p81 = scmp.eq.s32.totalorder %s17, 1
    %p82 = por %p80, %p81
    %p84 = scmp.ne.s32.totalorder %s69, %s83
    %p85 = scmp.eq.s32.totalorder %s17, 0
    %p86 = por %p84, %p85
    %s88 = sadd.s32 %s87, 1
    %p91 = scmp.eq.s32.totalorder %s11, 1
    %p92 = scmp.ne.s32.totalorder %s87, %s89
    %p93 = scmp.eq.s32.totalorder %s11, 0
    %p94 = por %p92, %p93
    %p95 = scmp.ne.s32.totalorder %s87, %s89
    %p96 = scmp.eq.s32.totalorder %s16, 1
    %p97 = por %p95, %p96
    %p98 = scmp.ne.s32.totalorder %s89, %s90
    %p99 = scmp.eq.s32.totalorder %s16, 0
    %p100 = por %p98, %p99
    %p101 = scmp.ne.s32.totalorder %s89, %s90
    %p102 = scmp.eq.s32.totalorder %s17, 1
    %p103 = por %p101, %p102
    %p105 = scmp.ne.s32.totalorder %s90, %s104
    %p106 = scmp.eq.s32.totalorder %s17, 0
    %p107 = por %p105, %p106
    %s109 = sadd.s32 %s108, 1
    %p112 = scmp.eq.s32.totalorder %s11, 1
    %p113 = scmp.ne.s32.totalorder %s108, %s110
    %p114 = scmp.eq.s32.totalorder %s11, 0
    %p115 = por %p113, %p114
    %p116 = scmp.ne.s32.totalorder %s108, %s110
    %p117 = scmp.eq.s32.totalorder %s16, 1
    %p118 = por %p116, %p117
    %p119 = scmp.ne.s32.totalorder %s110, %s111
    %p120 = scmp.eq.s32.totalorder %s16, 0
    %p121 = por %p119, %p120
    %p122 = scmp.ne.s32.totalorder %s110, %s111
    %p123 = scmp.eq.s32.totalorder %s17, 1
    %p124 = por %p122, %p123
    %p126 = scmp.ne.s32.totalorder %s111, %s125
    %p127 = scmp.eq.s32.totalorder %s17, 0
    %p128 = por %p126, %p127
    %s129 = ssub.s32 %s11, %s18
    %p130 = scmp.eq.s32.totalorder %s129, 0
    %s132 = sadd.s32 %s131, 1
    %s133 = scalar_select %p130, %s131, %s132
    %p136 = pneg %p130
    %p137 = scmp.eq.s32.totalorder %s11, 1
    %p138 = por %p136, %p137
    %p139 = scmp.ne.s32.totalorder %s131, %s134
    %p140 = scmp.eq.s32.totalorder %s11, 0
    %p141 = por %p139, %p140
    %p142 = scmp.ne.s32.totalorder %s131, %s134
    %p143 = scmp.eq.s32.totalorder %s16, 1
    %p144 = por %p142, %p143
    %p145 = scmp.ne.s32.totalorder %s134, %s135
    %p146 = scmp.eq.s32.totalorder %s16, 0
    %p147 = por %p145, %p146
    %p148 = scmp.ne.s32.totalorder %s134, %s135
    %p149 = scmp.eq.s32.totalorder %s17, 1
    %p150 = por %p148, %p149
    %p152 = scmp.ne.s32.totalorder %s135, %s151
    %p153 = scmp.eq.s32.totalorder %s17, 0
    %p154 = por %p152, %p153
    %p155 = scmp.le.s32.totalorder 1, %s11
    %p156 = scmp.lt.s32.totalorder %s11, 3
    %p157 = pnand %p155, %p156
    %p158 = pneg %p157
    // Predicated region
    $region9: #{efficientnet_forward.4} parent=5 // pred_check
      _
    $region10: #{efficientnet_forward.4} parent=5 // pred_check_branch
      %160 = sbr.rel (%p157) target = $region12
    $region11: #{efficientnet_forward.4} parent=5 // pred_region
      %s161 = ssub.s32 %s11, 1
      // Predicated region
      $region13: #{efficientnet_forward.4} parent=11 // pred_check
        %p162 = pneg %p58
      $region14: #{efficientnet_forward.4} parent=11 // pred_check_branch
        %164 = sbr.rel (%p162) target = $region16
      $region15: #{efficientnet_forward.4} parent=11 // pred_region
        _
      $region16: #{efficientnet_forward.4} parent=11 // pred_fallthru
        _
      // Predicated region
      $region17: #{efficientnet_forward.4} parent=11 // pred_check
        %p165 = pneg %p79
      $region18: #{efficientnet_forward.4} parent=11 // pred_check_branch
        %167 = sbr.rel (%p165) target = $region20
      $region19: #{efficientnet_forward.4} parent=11 // pred_region
        _
      $region20: #{efficientnet_forward.4} parent=11 // pred_fallthru
        _
      // Predicated region
      $region21: #{efficientnet_forward.4} parent=11 // pred_check
        %p168 = pneg %p100
      $region22: #{efficientnet_forward.4} parent=11 // pred_check_branch
        %170 = sbr.rel (%p168) target = $region24
      $region23: #{efficientnet_forward.4} parent=11 // pred_region
        _
      $region24: #{efficientnet_forward.4} parent=11 // pred_fallthru
        _
      // Predicated region
      $region25: #{efficientnet_forward.4} parent=11 // pred_check
        %p171 = pneg %p121
      $region26: #{efficientnet_forward.4} parent=11 // pred_check_branch
        %173 = sbr.rel (%p171) target = $region28
      $region27: #{efficientnet_forward.4} parent=11 // pred_region
        _
      $region28: #{efficientnet_forward.4} parent=11 // pred_fallthru
        _
    $region12: #{efficientnet_forward.4} parent=5 // pred_fallthru
      _
    %p174 = scmp.lt.s32.totalorder %s11, 2
    // Predicated region
    $region29: #{efficientnet_forward.4} parent=5 // pred_check
      %p175 = pneg %p174
    $region30: #{efficientnet_forward.4} parent=5 // pred_check_branch
      %177 = sbr.rel (%p175) target = $region32
    $region31: #{efficientnet_forward.4} parent=5 // pred_region
      // Predicated region
      $region33: #{efficientnet_forward.4} parent=31 // pred_check
        %p178 = pneg %p31
      $region34: #{efficientnet_forward.4} parent=31 // pred_check_branch
        %180 = sbr.rel (%p178) target = $region36
      $region35: #{efficientnet_forward.4} parent=31 // pred_region
        %p181 = scmp.lt.s32.totalorder %s11, 1
        %s182 = scalar_select %p181, %s11, 1
        %s183 = smul.addr %s182, 18
        %s184 = smul.addr %s183, 4
        %s185 = scalar_lea.vmem %s0, %s184
      $region36: #{efficientnet_forward.4} parent=31 // pred_fallthru
        _
    $region32: #{efficientnet_forward.4} parent=5 // pred_fallthru
      _
    %p186 = scmp.le.s32.totalorder 1, %s11
    %p187 = scmp.lt.s32.totalorder %s11, 3
    %p188 = pnand %p186, %p187
    %p189 = pneg %p188
    // Predicated region
    $region37: #{efficientnet_forward.4} parent=5 // pred_check
      _
    $region38: #{efficientnet_forward.4} parent=5 // pred_check_branch
      %191 = sbr.rel (%p188) target = $region40
    $region39: #{efficientnet_forward.4} parent=5 // pred_region
      %s192 = ssub.s32 %s11, 1
      %p193 = scmp.lt.s32.totalorder %s16, 1
      %s194 = scalar_select %p193, %s16, 1
      %s195 = smul.addr %s194, 18
      %s196 = smul.addr %s195, 4
      %s197 = scalar_lea.vmem %s0, %s196
      %p198 = pneg %p37
      %p199 = pneg %p34
      %p200 = pneg %p58
      %p201 = pneg %p55
      %p202 = pneg %p79
      %p203 = pneg %p76
      %p204 = pneg %p100
      %p205 = pneg %p97
      %p206 = pneg %p121
      %p207 = pneg %p118
      %p208 = pneg %p147
      %p209 = pneg %p144
      %p210 = scmp.lt.s32.totalorder %s16, 1
      %s211 = scalar_select %p210, %s16, 1
      %s212 = smul.addr %s211, 8
      %s213 = smul.addr %s212, 4
      %s214 = scalar_lea.vmem %s5, %s213
      %p215 = scmp.lt.s32.totalorder %s16, 1
      %s216 = scalar_select %p215, %s16, 1
      %s217 = smul.addr %s216, 18
      %s218 = smul.addr %s217, 4
      %s219 = scalar_lea.vmem %s0, %s218
      %p220 = scmp.lt.s32.totalorder %s16, 1
      %s221 = scalar_select %p220, %s16, 1
      %s222 = smul.addr %s221, 8
      %s223 = smul.addr %s222, 4
      %s224 = scalar_lea.vmem %s5, %s223
      %v226 = vld [vmem:[%s219] sm:$0xf]
      %v227 = vld [vmem:[%s219 + $0x4] sm:$0x1]
      %v228 = vld [vmem:[%s219 + $0x8] sm:$0xf]
      %v229 = vld [vmem:[%s219 + $0xc] sm:$0x1]
      %v230 = vld [vmem:[%s219 + $0x10] sm:$0xf]
      %v231 = vld [vmem:[%s219 + $0x14] sm:$0x1]
      %v232 = vld [vmem:[%s219 + $0x18] sm:$0xf]
      %v233 = vld [vmem:[%s219 + $0x1c] sm:$0x1]
      %v234 = vld [vmem:[%s219 + $0x20] sm:$0xf]
      %v235 = vld [vmem:[%s219 + $0x24] sm:$0x1]
      %v236 = vld [vmem:[%s219 + $0x28] sm:$0xf]
      %v237 = vld [vmem:[%s219 + $0x2c] sm:$0x1]
      %v238 = vld [vmem:[%s219 + $0x30] sm:$0xf]
      %v239 = vld [vmem:[%s219 + $0x34] sm:$0x1]
      %v240 = vld [vmem:[%s219 + $0x38] sm:$0xf]
      %v241 = vld [vmem:[%s219 + $0x3c] sm:$0x1]
      %v242 = vld [vmem:[%s219 + $0x40] sm:$0xf]
      %v243 = vld [vmem:[%s219 + $0x44] sm:$0x1]
      %vm244 = vsmask.f32 3328
      %vm245 = vsmask.f32 7440
      %vm246 = vmor %vm244, %vm245
      %v248 = vshrl.u32 %v226, 16
      %v250 = vrot.slane %v248, 4
      %v251 = vshll.u32 %v226, 16
      %v253 = vrot.slane %v251, 5
      %v254 = vor.u32 %v250, %v253
      %v255 = vrot.slane %v254, 4
      %v257 = vshll.u32 %v227, 16
      %v259 = vrot.slane %v257, 5
      %v260 = vsel %vm246, %v255, %v259
      %v262 = vshrl.u32 %v228, 16
      %v264 = vrot.slane %v262, 4
      %v265 = vshll.u32 %v228, 16
      %v267 = vrot.slane %v265, 5
      %v268 = vor.u32 %v264, %v267
      %v269 = vrot.slane %v268, 4
      %v271 = vshll.u32 %v229, 16
      %v273 = vrot.slane %v271, 5
      %v274 = vsel %vm246, %v269, %v273
      %v276 = vshrl.u32 %v230, 16
      %v278 = vrot.slane %v276, 4
      %v279 = vshll.u32 %v230, 16
      %v281 = vrot.slane %v279, 5
      %v282 = vor.u32 %v278, %v281
      %v283 = vrot.slane %v282, 4
      %v285 = vshll.u32 %v231, 16
      %v287 = vrot.slane %v285, 5
      %v288 = vsel %vm246, %v283, %v287
      %v290 = vshrl.u32 %v232, 16
      %v292 = vrot.slane %v290, 4
      %v293 = vshll.u32 %v232, 16
      %v295 = vrot.slane %v293, 5
      %v296 = vor.u32 %v292, %v295
      %v297 = vrot.slane %v296, 4
      %v299 = vshll.u32 %v233, 16
      %v301 = vrot.slane %v299, 5
      %v302 = vsel %vm246, %v297, %v301
      %v304 = vshrl.u32 %v234, 16
      %v306 = vrot.slane %v304, 4
      %v307 = vshll.u32 %v234, 16
      %v309 = vrot.slane %v307, 5
      %v310 = vor.u32 %v306, %v309
      %v311 = vrot.slane %v310, 4
      %v313 = vshll.u32 %v235, 16
      %v315 = vrot.slane %v313, 5
      %v316 = vsel %vm246, %v311, %v315
      %v318 = vshrl.u32 %v236, 16
      %v320 = vrot.slane %v318, 4
      %v321 = vshll.u32 %v236, 16
      %v323 = vrot.slane %v321, 5
      %v324 = vor.u32 %v320, %v323
      %v325 = vrot.slane %v324, 4
      %v327 = vshll.u32 %v237, 16
      %v329 = vrot.slane %v327, 5
      %v330 = vsel %vm246, %v325, %v329
      %v332 = vshrl.u32 %v238, 16
      %v334 = vrot.slane %v332, 4
      %v335 = vshll.u32 %v238, 16
      %v337 = vrot.slane %v335, 5
      %v338 = vor.u32 %v334, %v337
      %v339 = vrot.slane %v338, 4
      %v341 = vshll.u32 %v239, 16
      %v343 = vrot.slane %v341, 5
      %v344 = vsel %vm246, %v339, %v343
      %v346 = vshrl.u32 %v240, 16
      %v348 = vrot.slane %v346, 4
      %v349 = vshll.u32 %v240, 16
      %v351 = vrot.slane %v349, 5
      %v352 = vor.u32 %v348, %v351
      %v353 = vrot.slane %v352, 4
      %v355 = vshll.u32 %v241, 16
      %v357 = vrot.slane %v355, 5
      %v358 = vsel %vm246, %v353, %v357
      %v360 = vshrl.u32 %v242, 16
      %v362 = vrot.slane %v360, 4
      %v363 = vshll.u32 %v242, 16
      %v365 = vrot.slane %v363, 5
      %v366 = vor.u32 %v362, %v365
      %v367 = vrot.slane %v366, 4
      %v369 = vshll.u32 %v243, 16
      %v371 = vrot.slane %v369, 5
      %v372 = vsel %vm246, %v367, %v371
      %v381 = vunpack.c.l.b16 %v226
      %v382 = vunpack.c.l.b16 %v228
      %v383 = vunpack.c.l.b16 %v230
      %v384 = vunpack.c.l.b16 %v232
      %v385 = vunpack.c.l.b16 %v234
      %v386 = vunpack.c.l.b16 %v236
      %v387 = vunpack.c.l.b16 %v238
      %v388 = vunpack.c.l.b16 %v240
      %v389 = vpack.c.b16 %v382, %v381
      %v390 = vpack.c.b16 %v384, %v383
      %v391 = vpack.c.b16 %v386, %v385
      %v392 = vpack.c.b16 %v388, %v387
      %v393 = vunpack.c.l.b16 %v260
      %v394 = vunpack.c.l.b16 %v274
      %v395 = vunpack.c.l.b16 %v288
      %v396 = vunpack.c.l.b16 %v302
      %v397 = vunpack.c.l.b16 %v316
      %v398 = vunpack.c.l.b16 %v330
      %v399 = vunpack.c.l.b16 %v344
      %v400 = vunpack.c.l.b16 %v358
      %v401 = vpack.c.b16 %v394, %v393
      %v402 = vpack.c.b16 %v396, %v395
      %v403 = vpack.c.b16 %v398, %v397
      %v404 = vpack.c.b16 %v400, %v399
      %405 = vrot.lane.b32.xlu0 %v401, 64
      %v406 = vpop.permute.xlu0 %405
      %407 = vrot.lane.b32.xlu0 %v402, 64
      %v408 = vpop.permute.xlu0 %407
      %409 = vrot.lane.b32.xlu0 %v403, 64
      %v410 = vpop.permute.xlu0 %409
      %411 = vrot.lane.b32.xlu0 %v404, 64
      %v412 = vpop.permute.xlu0 %411
      %v414 = vunpack.c.l.b16 %v242
      %v415 = vpack.c.b16 %v383, %v382
      %v416 = vpack.c.b16 %v385, %v384
      %v417 = vpack.c.b16 %v387, %v386
      %v418 = vpack.c.b16 %v414, %v388
      %v419 = vunpack.c.l.b16 %v372
      %v420 = vpack.c.b16 %v395, %v394
      %v421 = vpack.c.b16 %v397, %v396
      %v422 = vpack.c.b16 %v399, %v398
      %v423 = vpack.c.b16 %v419, %v400
      %424 = vrot.lane.b32.xlu0 %v420, 64
      %v425 = vpop.permute.xlu0 %424
      %426 = vrot.lane.b32.xlu0 %v421, 64
      %v427 = vpop.permute.xlu0 %426
      %428 = vrot.lane.b32.xlu0 %v422, 64
      %v429 = vpop.permute.xlu0 %428
      %430 = vrot.lane.b32.xlu0 %v423, 64
      %v431 = vpop.permute.xlu0 %430
      %vm432 = vcmask 523264
      %v435 = vsel %vm432, %v389, %v406
      %v439 = vsel %vm432, %v390, %v408
      %v443 = vsel %vm432, %v391, %v410
      %v447 = vsel %vm432, %v392, %v412
      %v451 = vsel %vm432, %v415, %v425
      %v455 = vsel %vm432, %v416, %v427
      %v459 = vsel %vm432, %v417, %v429
      %v463 = vsel %vm432, %v418, %v431
      %v465 = vld [vmem:[%s1] sm:$0xf]
      %v466 = vld [vmem:[%s1 + $0x4] sm:$0xf]
      %v467 = vld [vmem:[%s1 + $0x8] sm:$0xf]
      %v468 = vld [vmem:[%s1 + $0xc] sm:$0xf]
      %v469 = vld [vmem:[%s1 + $0x10] sm:$0xf]
      %v470 = vld [vmem:[%s1 + $0x14] sm:$0xf]
      %v471 = vld [vmem:[%s1 + $0x18] sm:$0xf]
      %v472 = vld [vmem:[%s1 + $0x1c] sm:$0xf]
      %v473 = vld [vmem:[%s1 + $0x20] sm:$0xf]
      %v474 = vld [vmem:[%s1 + $0x24] sm:$0xf]
      %v475 = vld [vmem:[%s1 + $0x28] sm:$0xf]
      %v476 = vld [vmem:[%s1 + $0x2c] sm:$0xf]
      %v477 = vld [vmem:[%s1 + $0x30] sm:$0xf]
      %v478 = vld [vmem:[%s1 + $0x34] sm:$0xf]
      %v479 = vld [vmem:[%s1 + $0x38] sm:$0xf]
      %v480 = vld [vmem:[%s1 + $0x3c] sm:$0xf]
      %v481 = vld [vmem:[%s1 + $0x40] sm:$0xf]
      %v482 = vld [vmem:[%s1 + $0x44] sm:$0xf]
      %v483 = vld [vmem:[%s1 + $0x48] sm:$0xf]
      %v484 = vld [vmem:[%s1 + $0x4c] sm:$0xf]
      %v485 = vld [vmem:[%s1 + $0x50] sm:$0xf]
      %v486 = vld [vmem:[%s1 + $0x54] sm:$0xf]
      %v487 = vld [vmem:[%s1 + $0x58] sm:$0xf]
      %v488 = vld [vmem:[%s1 + $0x5c] sm:$0xf]
      %v489 = vld [vmem:[%s1 + $0x60] sm:$0xf]
      %v490 = vld [vmem:[%s1 + $0x64] sm:$0xf]
      %v491 = vld [vmem:[%s1 + $0x68] sm:$0xf]
      %v492 = vld [vmem:[%s1 + $0x6c] sm:$0xf]
      %v493 = vld [vmem:[%s1 + $0x70] sm:$0xf]
      %v494 = vld [vmem:[%s1 + $0x74] sm:$0xf]
      %v495 = vld [vmem:[%s1 + $0x78] sm:$0xf]
      %v496 = vld [vmem:[%s1 + $0x7c] sm:$0xf]
      %v497 = vld [vmem:[%s2] sm:$0x1]
      %v499 = vlaneseq
      %v500 = vshrl.u32 %v499, 7
      %v501 = vsub.s32 0, %v500
      %v502 = vrot.slane %v497, %v501
      %v536 = vunpack.c.l.b16 %v465
      %v537 = vunpack.c.l.b16 %v466
      %v538 = vunpack.c.l.b16 %v467
      %v539 = vunpack.c.l.b16 %v468
      %v540 = vunpack.c.l.b16 %v469
      %v541 = vunpack.c.l.b16 %v470
      %v542 = vunpack.c.l.b16 %v471
      %v543 = vunpack.c.l.b16 %v472
      %v544 = vunpack.c.l.b16 %v473
      %v545 = vunpack.c.l.b16 %v474
      %v546 = vunpack.c.l.b16 %v475
      %v547 = vunpack.c.l.b16 %v476
      %v548 = vunpack.c.l.b16 %v477
      %v549 = vunpack.c.l.b16 %v478
      %v550 = vunpack.c.l.b16 %v479
      %v551 = vunpack.c.l.b16 %v480
      %v552 = vunpack.c.l.b16 %v481
      %v553 = vunpack.c.l.b16 %v482
      %v554 = vunpack.c.l.b16 %v483
      %v555 = vunpack.c.l.b16 %v484
      %v556 = vunpack.c.l.b16 %v485
      %v557 = vunpack.c.l.b16 %v486
      %v558 = vunpack.c.l.b16 %v487
      %v559 = vunpack.c.l.b16 %v488
      %v560 = vunpack.c.l.b16 %v489
      %v561 = vunpack.c.l.b16 %v490
      %v562 = vunpack.c.l.b16 %v491
      %v563 = vunpack.c.l.b16 %v492
      %v564 = vunpack.c.l.b16 %v493
      %v565 = vunpack.c.l.b16 %v494
      %v566 = vunpack.c.l.b16 %v495
      %v567 = vunpack.c.l.b16 %v496
      %v568 = vpack.c.b16 %v537, %v536
      %v569 = vpack.c.b16 %v539, %v538
      %v570 = vpack.c.b16 %v541, %v540
      %v571 = vpack.c.b16 %v543, %v542
      %v572 = vpack.c.b16 %v545, %v544
      %v573 = vpack.c.b16 %v547, %v546
      %v574 = vpack.c.b16 %v549, %v548
      %v575 = vpack.c.b16 %v551, %v550
      %v576 = vpack.c.b16 %v553, %v552
      %v577 = vpack.c.b16 %v555, %v554
      %v578 = vpack.c.b16 %v557, %v556
      %v579 = vpack.c.b16 %v559, %v558
      %v580 = vpack.c.b16 %v561, %v560
      %v581 = vpack.c.b16 %v563, %v562
      %v582 = vpack.c.b16 %v565, %v564
      %v583 = vpack.c.b16 %v567, %v566
      %600 = vmatprep.subr.bf16.mxu0 0
      %601 = vmatpush1.bf16.msra.mxu0 %v568
      %602 = vmatprep.subr.bf16.mxu0 0
      %603 = vmatpush1.bf16.msra.mxu0 %v569
      %604 = vmatprep.subr.bf16.mxu0 0
      %605 = vmatpush1.bf16.msra.mxu0 %v570
      %606 = vmatprep.subr.bf16.mxu0 0
      %607 = vmatpush1.bf16.msra.mxu0 %v571
      %608 = vmatprep.subr.bf16.mxu0 0
      %609 = vmatpush1.bf16.msra.mxu0 %v572
      %610 = vmatprep.subr.bf16.mxu0 0
      %611 = vmatpush1.bf16.msra.mxu0 %v573
      %612 = vmatprep.subr.bf16.mxu0 0
      %613 = vmatpush1.bf16.msra.mxu0 %v574
      %614 = vmatprep.subr.bf16.mxu0 0
      %615 = vmatpush1.bf16.msra.mxu0 %v575
      %616 = vmatprep.subr.bf16.mxu0 0
      %617 = vmatpush1.bf16.msra.mxu0 %v576
      %618 = vmatprep.subr.bf16.mxu0 0
      %619 = vmatpush1.bf16.msra.mxu0 %v577
      %620 = vmatprep.subr.bf16.mxu0 0
      %621 = vmatpush1.bf16.msra.mxu0 %v578
      %622 = vmatprep.subr.bf16.mxu0 0
      %623 = vmatpush1.bf16.msra.mxu0 %v579
      %624 = vmatprep.subr.bf16.mxu0 0
      %625 = vmatpush1.bf16.msra.mxu0 %v580
      %626 = vmatprep.subr.bf16.mxu0 0
      %627 = vmatpush1.bf16.msra.mxu0 %v581
      %628 = vmatprep.subr.bf16.mxu0 0
      %629 = vmatpush1.bf16.msra.mxu0 %v582
      %630 = vmatprep.subr.bf16.mxu0 0
      %631 = vmatpush1.bf16.msra.mxu0 %v583
      %632 = vmatprep.mubr.bf16.mxu0 %v451
      %633 = vmatmul.mubr.bf16.gmra.mrb[0].mxu0 %v435
      %v634 = vpop.f32.mrb[0].mxu0
      %v635 = vadd.f32 %v502, %v634
      %v636 = vpop.f32.mrb[0].mxu0
      %v637 = vpop.f32.mrb[0].mxu0
      %v638 = vadd.f32 %v502, %v637
      %v639 = vpop.f32.mrb[0].mxu0
      %640 = vmatprep.mubr.bf16.mxu0 %v455
      %641 = vmatmul.mubr.bf16.gmra.mrb[0].mxu0 %v439
      %v642 = vpop.f32.mrb[0].mxu0
      %v643 = vadd.f32 %v502, %v642
      %v644 = vpop.f32.mrb[0].mxu0
      %v645 = vpop.f32.mrb[0].mxu0
      %v646 = vadd.f32 %v502, %v645
      %v647 = vpop.f32.mrb[0].mxu0
      %648 = vmatprep.mubr.bf16.mxu0 %v459
      %649 = vmatmul.mubr.bf16.gmra.mrb[0].mxu0 %v443
      %v650 = vpop.f32.mrb[0].mxu0
      %v651 = vadd.f32 %v502, %v650
      %v652 = vpop.f32.mrb[0].mxu0
      %v653 = vpop.f32.mrb[0].mxu0
      %v654 = vadd.f32 %v502, %v653
      %v655 = vpop.f32.mrb[0].mxu0
      %656 = vmatprep.mubr.bf16.mxu0 %v463
      %657 = vmatmul.mubr.bf16.gmra.mrb[0].mxu0 %v447
      %v658 = vpop.f32.mrb[0].mxu0
      %v659 = vadd.f32 %v502, %v658
      %v660 = vpop.f32.mrb[0].mxu0
      %v661 = vpop.f32.mrb[0].mxu0
      %v662 = vadd.f32 %v502, %v661
      %v663 = vpop.f32.mrb[0].mxu0
      %664 = vdwg.mxu0
      %v665 = vxor.u32 %v635, 2147483648
      %v666 = vxor.u32 %v638, 2147483648
      %v667 = vxor.u32 %v643, 2147483648
      %v668 = vxor.u32 %v646, 2147483648
      %v669 = vxor.u32 %v651, 2147483648
      %v670 = vxor.u32 %v654, 2147483648
      %v671 = vxor.u32 %v659, 2147483648
      %v672 = vxor.u32 %v662, 2147483648
      %v673 = vmul.f32 %v665, 1.442695
      %v674 = vpow.pop %v673
      %v675 = vmul.f32 %v666, 1.442695
      %v676 = vpow.pop %v675
      %v677 = vmul.f32 %v667, 1.442695
      %v678 = vpow.pop %v677
      %v679 = vmul.f32 %v668, 1.442695
      %v680 = vpow.pop %v679
      %v681 = vmul.f32 %v669, 1.442695
      %v682 = vpow.pop %v681
      %v683 = vmul.f32 %v670, 1.442695
      %v684 = vpow.pop %v683
      %v685 = vmul.f32 %v671, 1.442695
      %v686 = vpow.pop %v685
      %v687 = vmul.f32 %v672, 1.442695
      %v688 = vpow.pop %v687
      %v689 = vadd.f32 %v674, 1.0
      %v690 = vadd.f32 %v676, 1.0
      %v691 = vadd.f32 %v678, 1.0
      %v692 = vadd.f32 %v680, 1.0
      %v693 = vadd.f32 %v682, 1.0
      %v694 = vadd.f32 %v684, 1.0
      %v695 = vadd.f32 %v686, 1.0
      %v696 = vadd.f32 %v688, 1.0
      %v697 = vrcp.pop %v689
      %v698 = vmul.f32 1.0, %v697
      %v699 = vrcp.pop %v690
      %v700 = vmul.f32 1.0, %v699
      %v701 = vrcp.pop %v691
      %v702 = vmul.f32 1.0, %v701
      %v703 = vrcp.pop %v692
      %v704 = vmul.f32 1.0, %v703
      %v705 = vrcp.pop %v693
      %v706 = vmul.f32 1.0, %v705
      %v707 = vrcp.pop %v694
      %v708 = vmul.f32 1.0, %v707
      %v709 = vrcp.pop %v695
      %v710 = vmul.f32 1.0, %v709
      %v711 = vrcp.pop %v696
      %v712 = vmul.f32 1.0, %v711
      %v713 = vmul.f32 %v635, %v698
      %v714 = vmul.f32 %v638, %v700
      %v715 = vmul.f32 %v643, %v702
      %v716 = vmul.f32 %v646, %v704
      %v717 = vmul.f32 %v651, %v706
      %v718 = vmul.f32 %v654, %v708
      %v719 = vmul.f32 %v659, %v710
      %v720 = vmul.f32 %v662, %v712
      %v721 = vpack.c.bf16 %v714, %v713
      %v722 = vpack.c.bf16 %v716, %v715
      %v723 = vpack.c.bf16 %v718, %v717
      %v724 = vpack.c.bf16 %v720, %v719
      %v725 = vld [vmem:[%s3] sm:$0xf]
      %v726 = vld [vmem:[%s3 + $0x4] sm:$0xf]
      %v727 = vld [vmem:[%s3 + $0x8] sm:$0xf]
      %v728 = vld [vmem:[%s3 + $0xc] sm:$0xf]
      %v729 = vld [vmem:[%s3 + $0x10] sm:$0xf]
      %v730 = vld [vmem:[%s3 + $0x14] sm:$0xf]
      %v731 = vld [vmem:[%s3 + $0x18] sm:$0xf]
      %v732 = vld [vmem:[%s3 + $0x1c] sm:$0xf]
      %v733 = vld [vmem:[%s4] sm:$0x1]
      %v735 = vlaneseq
      %v736 = vshrl.u32 %v735, 7
      %v737 = vsub.s32 0, %v736
      %v738 = vrot.slane %v733, %v737
      %v748 = vunpack.c.l.b16 %v725
      %v749 = vunpack.c.l.b16 %v726
      %v750 = vunpack.c.l.b16 %v727
      %v751 = vunpack.c.l.b16 %v728
      %v752 = vunpack.c.l.b16 %v729
      %v753 = vunpack.c.l.b16 %v730
      %v754 = vunpack.c.l.b16 %v731
      %v755 = vunpack.c.l.b16 %v732
      %v756 = vpack.c.b16 %v749, %v748
      %v757 = vpack.c.b16 %v751, %v750
      %v758 = vpack.c.b16 %v753, %v752
      %v759 = vpack.c.b16 %v755, %v754
      %v765 = vsel %vm432, %v721, 0
      %v768 = vsel %vm432, %v722, 0
      %v771 = vsel %vm432, %v723, 0
      %v774 = vsel %vm432, %v724, 0
      %776 = vmatprep.subr.bf16.mxu0 0
      %777 = vmatpush1.bf16.msra.mxu0 %v756
      %778 = vmatprep.subr.bf16.mxu0 0
      %779 = vmatpush1.bf16.msra.mxu0 %v757
      %780 = vmatprep.subr.bf16.mxu0 0
      %781 = vmatpush1.bf16.msra.mxu0 %v758
      %782 = vmatprep.subr.bf16.mxu0 0
      %783 = vmatpush1.bf16.msra.mxu0 %v759
      %784 = vmatprep.subr.bf16.mxu0 0
      %785 = vmatpush1.bf16.msra.mxu0 0
      %786 = vmatprep.subr.bf16.mxu0 0
      %787 = vmatpush1.bf16.msra.mxu0 0
      %788 = vmatprep.subr.bf16.mxu0 0
      %789 = vmatpush1.bf16.msra.mxu0 0
      %790 = vmatprep.subr.bf16.mxu0 0
      %791 = vmatpush1.bf16.msra.mxu0 0
      %792 = vmatprep.subr.bf16.mxu0 0
      %793 = vmatpush1.bf16.msra.mxu0 0
      %794 = vmatprep.subr.bf16.mxu0 0
      %795 = vmatpush1.bf16.msra.mxu0 0
      %796 = vmatprep.subr.bf16.mxu0 0
      %797 = vmatpush1.bf16.msra.mxu0 0
      %798 = vmatprep.subr.bf16.mxu0 0
      %799 = vmatpush1.bf16.msra.mxu0 0
      %800 = vmatprep.subr.bf16.mxu0 0
      %801 = vmatpush1.bf16.msra.mxu0 0
      %802 = vmatprep.subr.bf16.mxu0 0
      %803 = vmatpush1.bf16.msra.mxu0 0
      %804 = vmatprep.subr.bf16.mxu0 0
      %805 = vmatpush1.bf16.msra.mxu0 0
      %806 = vmatprep.subr.bf16.mxu0 0
      %807 = vmatpush1.bf16.msra.mxu0 0
      %808 = vmatprep.mubr.bf16.mxu0 0
      %809 = vmatmul.mubr.bf16.gmra.mrb[0].mxu0 %v765
      %v810 = vpop.f32.mrb[0].mxu0
      %v811 = vadd.f32 %v738, %v810
      %v812 = vpop.f32.mrb[0].mxu0
      %v813 = vpop.f32.mrb[0].mxu0
      %v814 = vadd.f32 %v738, %v813
      %v815 = vpop.f32.mrb[0].mxu0
      %816 = vmatprep.mubr.bf16.mxu0 0
      %817 = vmatmul.mubr.bf16.gmra.mrb[0].mxu0 %v768
      %v818 = vpop.f32.mrb[0].mxu0
      %v819 = vadd.f32 %v738, %v818
      %v820 = vpop.f32.mrb[0].mxu0
      %v821 = vpop.f32.mrb[0].mxu0
      %v822 = vadd.f32 %v738, %v821
      %v823 = vpop.f32.mrb[0].mxu0
      %824 = vmatprep.mubr.bf16.mxu0 0
      %825 = vmatmul.mubr.bf16.gmra.mrb[0].mxu0 %v771
      %v826 = vpop.f32.mrb[0].mxu0
      %v827 = vadd.f32 %v738, %v826
      %v828 = vpop.f32.mrb[0].mxu0
      %v829 = vpop.f32.mrb[0].mxu0
      %v830 = vadd.f32 %v738, %v829
      %v831 = vpop.f32.mrb[0].mxu0
      %832 = vmatprep.mubr.bf16.mxu0 0
      %833 = vmatmul.mubr.bf16.gmra.mrb[0].mxu0 %v774
      %v834 = vpop.f32.mrb[0].mxu0
      %v835 = vadd.f32 %v738, %v834
      %v836 = vpop.f32.mrb[0].mxu0
      %v837 = vpop.f32.mrb[0].mxu0
      %v838 = vadd.f32 %v738, %v837
      %v839 = vpop.f32.mrb[0].mxu0
      %840 = vdwg.mxu0
      %v841 = vxor.u32 %v811, 2147483648
      %v842 = vxor.u32 %v814, 2147483648
      %v843 = vxor.u32 %v819, 2147483648
      %v844 = vxor.u32 %v822, 2147483648
      %v845 = vxor.u32 %v827, 2147483648
      %v846 = vxor.u32 %v830, 2147483648
      %v847 = vxor.u32 %v835, 2147483648
      %v848 = vxor.u32 %v838, 2147483648
      %v849 = vmul.f32 %v841, 1.442695
      %v850 = vpow.pop %v849
      %v851 = vmul.f32 %v842, 1.442695
      %v852 = vpow.pop %v851
      %v853 = vmul.f32 %v843, 1.442695
      %v854 = vpow.pop %v853
      %v855 = vmul.f32 %v844, 1.442695
      %v856 = vpow.pop %v855
      %v857 = vmul.f32 %v845, 1.442695
      %v858 = vpow.pop %v857
      %v859 = vmul.f32 %v846, 1.442695
      %v860 = vpow.pop %v859
      %v861 = vmul.f32 %v847, 1.442695
      %v862 = vpow.pop %v861
      %v863 = vmul.f32 %v848, 1.442695
      %v864 = vpow.pop %v863
      %v865 = vadd.f32 %v850, 1.0
      %v866 = vadd.f32 %v852, 1.0
      %v867 = vadd.f32 %v854, 1.0
      %v868 = vadd.f32 %v856, 1.0
      %v869 = vadd.f32 %v858, 1.0
      %v870 = vadd.f32 %v860, 1.0
      %v871 = vadd.f32 %v862, 1.0
      %v872 = vadd.f32 %v864, 1.0
      %v873 = vrcp.pop %v865
      %v874 = vmul.f32 1.0, %v873
      %v875 = vrcp.pop %v866
      %v876 = vmul.f32 1.0, %v875
      %v877 = vrcp.pop %v867
      %v878 = vmul.f32 1.0, %v877
      %v879 = vrcp.pop %v868
      %v880 = vmul.f32 1.0, %v879
      %v881 = vrcp.pop %v869
      %v882 = vmul.f32 1.0, %v881
      %v883 = vrcp.pop %v870
      %v884 = vmul.f32 1.0, %v883
      %v885 = vrcp.pop %v871
      %v886 = vmul.f32 1.0, %v885
      %v887 = vrcp.pop %v872
      %v888 = vmul.f32 1.0, %v887
      %v889 = vmul.f32 %v811, %v874
      %v890 = vmul.f32 %v814, %v876
      %v891 = vmul.f32 %v819, %v878
      %v892 = vmul.f32 %v822, %v880
      %v893 = vmul.f32 %v827, %v882
      %v894 = vmul.f32 %v830, %v884
      %v895 = vmul.f32 %v835, %v886
      %v896 = vmul.f32 %v838, %v888
      %v897 = vpack.c.bf16 %v889, %v889
      %v898 = vpack.c.bf16 %v890, %v890
      %v899 = vpack.c.bf16 %v891, %v891
      %v900 = vpack.c.bf16 %v892, %v892
      %v901 = vpack.c.bf16 %v893, %v893
      %v902 = vpack.c.bf16 %v894, %v894
      %v903 = vpack.c.bf16 %v895, %v895
      %v904 = vpack.c.bf16 %v896, %v896
      %905 = vst [vmem:[%s224] sm:$0xf] %v897
      %906 = vst [vmem:[%s224 + $0x4] sm:$0xf] %v898
      %907 = vst [vmem:[%s224 + $0x8] sm:$0xf] %v899
      %908 = vst [vmem:[%s224 + $0xc] sm:$0xf] %v900
      %909 = vst [vmem:[%s224 + $0x10] sm:$0xf] %v901
      %910 = vst [vmem:[%s224 + $0x14] sm:$0xf] %v902
      %911 = vst [vmem:[%s224 + $0x18] sm:$0xf] %v903
      %912 = vst [vmem:[%s224 + $0x1c] sm:$0xf] %v904
      %p913 = scmp.lt.s32.totalorder %s16, 1
      %s914 = scalar_select %p913, %s16, 1
      %s915 = smul.addr %s914, 8
      %s916 = smul.addr %s915, 4
      %s917 = scalar_lea.vmem %s5, %s916
      // Predicated region
      $region41: #{efficientnet_forward.4} parent=39 // pred_check
        %p918 = pneg %p144
      $region42: #{efficientnet_forward.4} parent=39 // pred_check_branch
        %920 = sbr.rel (%p918) target = $region44
      $region43: #{efficientnet_forward.4} parent=39 // pred_region
        _
      $region44: #{efficientnet_forward.4} parent=39 // pred_fallthru
        _
    $region40: #{efficientnet_forward.4} parent=5 // pred_fallthru
      _
    %p921 = scmp.le.s32.totalorder 2, %s11
    // Predicated region
    $region45: #{efficientnet_forward.4} parent=5 // pred_check
      %p922 = pneg %p921
    $region46: #{efficientnet_forward.4} parent=5 // pred_check_branch
      %924 = sbr.rel (%p922) target = $region48
    $region47: #{efficientnet_forward.4} parent=5 // pred_region
      %s925 = ssub.s32 %s11, 2
      // Predicated region
      $region49: #{efficientnet_forward.4} parent=47 // pred_check
        %p926 = pneg %p150
      $region50: #{efficientnet_forward.4} parent=47 // pred_check_branch
        %928 = sbr.rel (%p926) target = $region52
      $region51: #{efficientnet_forward.4} parent=47 // pred_region
        %p929 = scmp.lt.s32.totalorder %s17, 1
        %s930 = scalar_select %p929, %s17, 1
        %s931 = smul.addr %s930, 8
        %s932 = smul.addr %s931, 4
        %s933 = scalar_lea.vmem %s5, %s932
      $region52: #{efficientnet_forward.4} parent=47 // pred_fallthru
        _
    $region48: #{efficientnet_forward.4} parent=5 // pred_fallthru
      _
  $region6: #{efficientnet_forward.4} parent=0 // loop_footer
    %s15 = sadd.s32 1, %s11
  $region7: #{efficientnet_forward.4} parent=0 // loop_footer_branch
    %10 = sbr.rel target = $region3
  $region8: #{efficientnet_forward.4} parent=0 // loop_exit
    _

// kernel: efficientnet_forward.5
$region0: #{efficientnet_forward.5}
  #allocation0 [shape = 'u32[]', space=smem, size = 0x4, offset = 0x4, fixed_abs, tag = 'smem constant byte address 0x4 - core index']
  #allocation1 [shape = 'u32[144,128]{1,0:T(1,128)}', space=vmem, size = 0x12000, scoped, tag = 'internal scratch']
  %s0 = inlined_call_operand.vmem [shape: bf16[2,5,5,512], index: 0, kind: input, shape index: {}]
  %s1 = inlined_call_operand.vmem [shape: f32[9,1,128], index: 1, kind: input, shape index: {}]
  %s2 = inlined_call_operand.vmem [shape: f32[1,128], index: 2, kind: input, shape index: {}]
  %s3 = inlined_call_operand.vmem [shape: bf16[128,8], index: 3, kind: input, shape index: {}]
  %s4 = inlined_call_operand.vmem [shape: f32[1,8], index: 4, kind: input, shape index: {}]
  %s5 = inlined_call_operand.vmem [shape: bf16[8,128], index: 5, kind: input, shape index: {}]
  %s6 = inlined_call_operand.vmem [shape: f32[1,128], index: 6, kind: input, shape index: {}]
  %s7 = inlined_call_operand.vmem [shape: bf16[128,192], index: 7, kind: input, shape index: {}]
  %s8 = inlined_call_operand.vmem [shape: f32[1,192], index: 8, kind: input, shape index: {}]
  %s9 = inlined_call_operand.vmem [shape: bf16[192,512], index: 9, kind: input, shape index: {}]
  %s10 = inlined_call_operand.vmem [shape: f32[1,512], index: 10, kind: input, shape index: {}]
  %s11 = inlined_call_operand.vmem [shape: f32[2,1,512], index: 11, kind: output, shape index: {}]
  %s12 = sld [smem:[#allocation0]]
  $region77: #{efficientnet_forward.5} parent=0
    _
  %s14 = ssub.s32 1, %s12
  %s15 = scalar_select 0, %s14, %s12
  loop: start=0, step=1, limit=4
  $region2: #{efficientnet_forward.5} parent=0 // loop_pre_header
    _
  $region3: #{efficientnet_forward.5} parent=0 // loop_header
    %s17 = sphi 0, %s21
    %p18 = scmp.ge.s32.totalorder %s17, 4
    %s27 = sphi 0, %s29
    %s30 = sphi 0, %s27
    %s31 = sphi 0, %s30
    %s47 = sphi 0, %s31
    %s51 = sphi 0, %s51
    %s53 = sphi 0, %s51
    %s54 = sphi 0, %s53
    %s68 = sphi 0, %s54
    %s72 = sphi 0, %s72
    %s74 = sphi 0, %s72
    %s75 = sphi 0, %s74
    %s89 = sphi 0, %s75
    %s93 = sphi 0, %s93
    %s95 = sphi 0, %s93
    %s96 = sphi 0, %s95
    %s110 = sphi 0, %s96
    %s114 = sphi 0, %s114
    %s116 = sphi 0, %s114
    %s117 = sphi 0, %s116
    %s131 = sphi 0, %s117
    %s135 = sphi 0, %s135
    %s137 = sphi 0, %s135
    %s138 = sphi 0, %s137
    %s152 = sphi 0, %s138
    %s156 = sphi 0, %s156
    %s158 = sphi 0, %s156
    %s159 = sphi 0, %s158
    %s173 = sphi 0, %s159
    %s177 = sphi 0, %s177
    %s179 = sphi 0, %s177
    %s180 = sphi 0, %s179
    %s194 = sphi 0, %s180
    %s198 = sphi 0, %s198
    %s200 = sphi 0, %s198
    %s201 = sphi 0, %s200
    %s215 = sphi 0, %s201
    %s219 = sphi 0, %s219
    %s221 = sphi 0, %s219
    %s222 = sphi 0, %s221
    %s236 = sphi 0, %s222
    %s240 = sphi 0, %s240
    %s242 = sphi 0, %s240
    %s243 = sphi 0, %s242
    %s257 = sphi 0, %s243
    %s263 = sphi 0, %s265
    %s266 = sphi 0, %s263
    %s267 = sphi 0, %s266
    %s283 = sphi 0, %s267
  $region4: #{efficientnet_forward.5} parent=0 // loop_header_branch
    %20 = sbr.rel (%p18) target = $region8
  $region5: #{efficientnet_forward.5} parent=0 // loop_body
    %s22 = ssub.s32 %s17, 1
    %s23 = ssub.s32 %s17, 2
    %s24 = sadd.s32 %s17, 1
    %s25 = ssub.s32 %s17, %s24
    %p26 = scmp.eq.s32.totalorder %s25, 0
    %s28 = sadd.s32 %s27, 1
    %s29 = scalar_select %p26, %s27, %s28
    %p32 = pneg %p26
    %p33 = scmp.eq.s32.totalorder %s17, 1
    %p34 = por %p32, %p33
    %p35 = scmp.ne.s32.totalorder %s27, %s30
    %p36 = scmp.eq.s32.totalorder %s17, 0
    %p37 = por %p35, %p36
    %p38 = scmp.ne.s32.totalorder %s27, %s30
    %p39 = scmp.eq.s32.totalorder %s22, 1
    %p40 = por %p38, %p39
    %p41 = scmp.ne.s32.totalorder %s30, %s31
    %p42 = scmp.eq.s32.totalorder %s22, 0
    %p43 = por %p41, %p42
    %p44 = scmp.ne.s32.totalorder %s30, %s31
    %p45 = scmp.eq.s32.totalorder %s23, 1
    %p46 = por %p44, %p45
    %p48 = scmp.ne.s32.totalorder %s31, %s47
    %p49 = scmp.eq.s32.totalorder %s23, 0
    %p50 = por %p48, %p49
    %s52 = sadd.s32 %s51, 1
    %p55 = scmp.eq.s32.totalorder %s17, 1
    %p56 = scmp.ne.s32.totalorder %s51, %s53
    %p57 = scmp.eq.s32.totalorder %s17, 0
    %p58 = por %p56, %p57
    %p59 = scmp.ne.s32.totalorder %s51, %s53
    %p60 = scmp.eq.s32.totalorder %s22, 1
    %p61 = por %p59, %p60
    %p62 = scmp.ne.s32.totalorder %s53, %s54
    %p63 = scmp.eq.s32.totalorder %s22, 0
    %p64 = por %p62, %p63
    %p65 = scmp.ne.s32.totalorder %s53, %s54
    %p66 = scmp.eq.s32.totalorder %s23, 1
    %p67 = por %p65, %p66
    %p69 = scmp.ne.s32.totalorder %s54, %s68
    %p70 = scmp.eq.s32.totalorder %s23, 0
    %p71 = por %p69, %p70
    %s73 = sadd.s32 %s72, 1
    %p76 = scmp.eq.s32.totalorder %s17, 1
    %p77 = scmp.ne.s32.totalorder %s72, %s74
    %p78 = scmp.eq.s32.totalorder %s17, 0
    %p79 = por %p77, %p78
    %p80 = scmp.ne.s32.totalorder %s72, %s74
    %p81 = scmp.eq.s32.totalorder %s22, 1
    %p82 = por %p80, %p81
    %p83 = scmp.ne.s32.totalorder %s74, %s75
    %p84 = scmp.eq.s32.totalorder %s22, 0
    %p85 = por %p83, %p84
    %p86 = scmp.ne.s32.totalorder %s74, %s75
    %p87 = scmp.eq.s32.totalorder %s23, 1
    %p88 = por %p86, %p87
    %p90 = scmp.ne.s32.totalorder %s75, %s89
    %p91 = scmp.eq.s32.totalorder %s23, 0
    %p92 = por %p90, %p91
    %s94 = sadd.s32 %s93, 1
    %p97 = scmp.eq.s32.totalorder %s17, 1
    %p98 = scmp.ne.s32.totalorder %s93, %s95
    %p99 = scmp.eq.s32.totalorder %s17, 0
    %p100 = por %p98, %p99
    %p101 = scmp.ne.s32.totalorder %s93, %s95
    %p102 = scmp.eq.s32.totalorder %s22, 1
    %p103 = por %p101, %p102
    %p104 = scmp.ne.s32.totalorder %s95, %s96
    %p105 = scmp.eq.s32.totalorder %s22, 0
    %p106 = por %p104, %p105
    %p107 = scmp.ne.s32.totalorder %s95, %s96
    %p108 = scmp.eq.s32.totalorder %s23, 1
    %p109 = por %p107, %p108
    %p111 = scmp.ne.s32.totalorder %s96, %s110
    %p112 = scmp.eq.s32.totalorder %s23, 0
    %p113 = por %p111, %p112
    %s115 = sadd.s32 %s114, 1
    %p118 = scmp.eq.s32.totalorder %s17, 1
    %p119 = scmp.ne.s32.totalorder %s114, %s116
    %p120 = scmp.eq.s32.totalorder %s17, 0
    %p121 = por %p119, %p120
    %p122 = scmp.ne.s32.totalorder %s114, %s116
    %p123 = scmp.eq.s32.totalorder %s22, 1
    %p124 = por %p122, %p123
    %p125 = scmp.ne.s32.totalorder %s116, %s117
    %p126 = scmp.eq.s32.totalorder %s22, 0
    %p127 = por %p125, %p126
    %p128 = scmp.ne.s32.totalorder %s116, %s117
    %p129 = scmp.eq.s32.totalorder %s23, 1
    %p130 = por %p128, %p129
    %p132 = scmp.ne.s32.totalorder %s117, %s131
    %p133 = scmp.eq.s32.totalorder %s23, 0
    %p134 = por %p132, %p133
    %s136 = sadd.s32 %s135, 1
    %p139 = scmp.eq.s32.totalorder %s17, 1
    %p140 = scmp.ne.s32.totalorder %s135, %s137
    %p141 = scmp.eq.s32.totalorder %s17, 0
    %p142 = por %p140, %p141
    %p143 = scmp.ne.s32.totalorder %s135, %s137
    %p144 = scmp.eq.s32.totalorder %s22, 1
    %p145 = por %p143, %p144
    %p146 = scmp.ne.s32.totalorder %s137, %s138
    %p147 = scmp.eq.s32.totalorder %s22, 0
    %p148 = por %p146, %p147
    %p149 = scmp.ne.s32.totalorder %s137, %s138
    %p150 = scmp.eq.s32.totalorder %s23, 1
    %p151 = por %p149, %p150
    %p153 = scmp.ne.s32.totalorder %s138, %s152
    %p154 = scmp.eq.s32.totalorder %s23, 0
    %p155 = por %p153, %p154
    %s157 = sadd.s32 %s156, 1
    %p160 = scmp.eq.s32.totalorder %s17, 1
    %p161 = scmp.ne.s32.totalorder %s156, %s158
    %p162 = scmp.eq.s32.totalorder %s17, 0
    %p163 = por %p161, %p162
    %p164 = scmp.ne.s32.totalorder %s156, %s158
    %p165 = scmp.eq.s32.totalorder %s22, 1
    %p166 = por %p164, %p165
    %p167 = scmp.ne.s32.totalorder %s158, %s159
    %p168 = scmp.eq.s32.totalorder %s22, 0
    %p169 = por %p167, %p168
    %p170 = scmp.ne.s32.totalorder %s158, %s159
    %p171 = scmp.eq.s32.totalorder %s23, 1
    %p172 = por %p170, %p171
    %p174 = scmp.ne.s32.totalorder %s159, %s173
    %p175 = scmp.eq.s32.totalorder %s23, 0
    %p176 = por %p174, %p175
    %s178 = sadd.s32 %s177, 1
    %p181 = scmp.eq.s32.totalorder %s17, 1
    %p182 = scmp.ne.s32.totalorder %s177, %s179
    %p183 = scmp.eq.s32.totalorder %s17, 0
    %p184 = por %p182, %p183
    %p185 = scmp.ne.s32.totalorder %s177, %s179
    %p186 = scmp.eq.s32.totalorder %s22, 1
    %p187 = por %p185, %p186
    %p188 = scmp.ne.s32.totalorder %s179, %s180
    %p189 = scmp.eq.s32.totalorder %s22, 0
    %p190 = por %p188, %p189
    %p191 = scmp.ne.s32.totalorder %s179, %s180
    %p192 = scmp.eq.s32.totalorder %s23, 1
    %p193 = por %p191, %p192
    %p195 = scmp.ne.s32.totalorder %s180, %s194
    %p196 = scmp.eq.s32.totalorder %s23, 0
    %p197 = por %p195, %p196
    %s199 = sadd.s32 %s198, 1
    %p202 = scmp.eq.s32.totalorder %s17, 1
    %p203 = scmp.ne.s32.totalorder %s198, %s200
    %p204 = scmp.eq.s32.totalorder %s17, 0
    %p205 = por %p203, %p204
    %p206 = scmp.ne.s32.totalorder %s198, %s200
    %p207 = scmp.eq.s32.totalorder %s22, 1
    %p208 = por %p206, %p207
    %p209 = scmp.ne.s32.totalorder %s200, %s201
    %p210 = scmp.eq.s32.totalorder %s22, 0
    %p211 = por %p209, %p210
    %p212 = scmp.ne.s32.totalorder %s200, %s201
    %p213 = scmp.eq.s32.totalorder %s23, 1
    %p214 = por %p212, %p213
    %p216 = scmp.ne.s32.totalorder %s201, %s215
    %p217 = scmp.eq.s32.totalorder %s23, 0
    %p218 = por %p216, %p217
    %s220 = sadd.s32 %s219, 1
    %p223 = scmp.eq.s32.totalorder %s17, 1
    %p224 = scmp.ne.s32.totalorder %s219, %s221
    %p225 = scmp.eq.s32.totalorder %s17, 0
    %p226 = por %p224, %p225
    %p227 = scmp.ne.s32.totalorder %s219, %s221
    %p228 = scmp.eq.s32.totalorder %s22, 1
    %p229 = por %p227, %p228
    %p230 = scmp.ne.s32.totalorder %s221, %s222
    %p231 = scmp.eq.s32.totalorder %s22, 0
    %p232 = por %p230, %p231
    %p233 = scmp.ne.s32.totalorder %s221, %s222
    %p234 = scmp.eq.s32.totalorder %s23, 1
    %p235 = por %p233, %p234
    %p237 = scmp.ne.s32.totalorder %s222, %s236
    %p238 = scmp.eq.s32.totalorder %s23, 0
    %p239 = por %p237, %p238
    %s241 = sadd.s32 %s240, 1
    %p244 = scmp.eq.s32.totalorder %s17, 1
    %p245 = scmp.ne.s32.totalorder %s240, %s242
    %p246 = scmp.eq.s32.totalorder %s17, 0
    %p247 = por %p245, %p246
    %p248 = scmp.ne.s32.totalorder %s240, %s242
    %p249 = scmp.eq.s32.totalorder %s22, 1
    %p250 = por %p248, %p249
    %p251 = scmp.ne.s32.totalorder %s242, %s243
    %p252 = scmp.eq.s32.totalorder %s22, 0
    %p253 = por %p251, %p252
    %p254 = scmp.ne.s32.totalorder %s242, %s243
    %p255 = scmp.eq.s32.totalorder %s23, 1
    %p256 = por %p254, %p255
    %p258 = scmp.ne.s32.totalorder %s243, %s257
    %p259 = scmp.eq.s32.totalorder %s23, 0
    %p260 = por %p258, %p259
    %s261 = ssub.s32 %s17, %s24
    %p262 = scmp.eq.s32.totalorder %s261, 0
    %s264 = sadd.s32 %s263, 1
    %s265 = scalar_select %p262, %s263, %s264
    %p268 = pneg %p262
    %p269 = scmp.eq.s32.totalorder %s17, 1
    %p270 = por %p268, %p269
    %p271 = scmp.ne.s32.totalorder %s263, %s266
    %p272 = scmp.eq.s32.totalorder %s17, 0
    %p273 = por %p271, %p272
    %p274 = scmp.ne.s32.totalorder %s263, %s266
    %p275 = scmp.eq.s32.totalorder %s22, 1
    %p276 = por %p274, %p275
    %p277 = scmp.ne.s32.totalorder %s266, %s267
    %p278 = scmp.eq.s32.totalorder %s22, 0
    %p279 = por %p277, %p278
    %p280 = scmp.ne.s32.totalorder %s266, %s267
    %p281 = scmp.eq.s32.totalorder %s23, 1
    %p282 = por %p280, %p281
    %p284 = scmp.ne.s32.totalorder %s267, %s283
    %p285 = scmp.eq.s32.totalorder %s23, 0
    %p286 = por %p284, %p285
    %p287 = scmp.le.s32.totalorder 1, %s17
    %p288 = scmp.lt.s32.totalorder %s17, 3
    %p289 = pnand %p287, %p288
    %p290 = pneg %p289
    // Predicated region
    $region9: #{efficientnet_forward.5} parent=5 // pred_check
      _
    $region10: #{efficientnet_forward.5} parent=5 // pred_check_branch
      %292 = sbr.rel (%p289) target = $region12
    $region11: #{efficientnet_forward.5} parent=5 // pred_region
      %s293 = ssub.s32 %s17, 1
      // Predicated region
      $region13: #{efficientnet_forward.5} parent=11 // pred_check
        %p294 = pneg %p64
      $region14: #{efficientnet_forward.5} parent=11 // pred_check_branch
        %296 = sbr.rel (%p294) target = $region16
      $region15: #{efficientnet_forward.5} parent=11 // pred_region
        _
      $region16: #{efficientnet_forward.5} parent=11 // pred_fallthru
        _
      // Predicated region
      $region17: #{efficientnet_forward.5} parent=11 // pred_check
        %p297 = pneg %p85
      $region18: #{efficientnet_forward.5} parent=11 // pred_check_branch
        %299 = sbr.rel (%p297) target = $region20
      $region19: #{efficientnet_forward.5} parent=11 // pred_region
        _
      $region20: #{efficientnet_forward.5} parent=11 // pred_fallthru
        _
      // Predicated region
      $region21: #{efficientnet_forward.5} parent=11 // pred_check
        %p300 = pneg %p106
      $region22: #{efficientnet_forward.5} parent=11 // pred_check_branch
        %302 = sbr.rel (%p300) target = $region24
      $region23: #{efficientnet_forward.5} parent=11 // pred_region
        _
      $region24: #{efficientnet_forward.5} parent=11 // pred_fallthru
        _
      // Predicated region
      $region25: #{efficientnet_forward.5} parent=11 // pred_check
        %p303 = pneg %p127
      $region26: #{efficientnet_forward.5} parent=11 // pred_check_branch
        %305 = sbr.rel (%p303) target = $region28
      $region27: #{efficientnet_forward.5} parent=11 // pred_region
        _
      $region28: #{efficientnet_forward.5} parent=11 // pred_fallthru
        _
      // Predicated region
      $region29: #{efficientnet_forward.5} parent=11 // pred_check
        %p306 = pneg %p148
      $region30: #{efficientnet_forward.5} parent=11 // pred_check_branch
        %308 = sbr.rel (%p306) target = $region32
      $region31: #{efficientnet_forward.5} parent=11 // pred_region
        _
      $region32: #{efficientnet_forward.5} parent=11 // pred_fallthru
        _
      // Predicated region
      $region33: #{efficientnet_forward.5} parent=11 // pred_check
        %p309 = pneg %p169
      $region34: #{efficientnet_forward.5} parent=11 // pred_check_branch
        %311 = sbr.rel (%p309) target = $region36
      $region35: #{efficientnet_forward.5} parent=11 // pred_region
        _
      $region36: #{efficientnet_forward.5} parent=11 // pred_fallthru
        _
      // Predicated region
      $region37: #{efficientnet_forward.5} parent=11 // pred_check
        %p312 = pneg %p190
      $region38: #{efficientnet_forward.5} parent=11 // pred_check_branch
        %314 = sbr.rel (%p312) target = $region40
      $region39: #{efficientnet_forward.5} parent=11 // pred_region
        _
      $region40: #{efficientnet_forward.5} parent=11 // pred_fallthru
        _
      // Predicated region
      $region41: #{efficientnet_forward.5} parent=11 // pred_check
        %p315 = pneg %p211
      $region42: #{efficientnet_forward.5} parent=11 // pred_check_branch
        %317 = sbr.rel (%p315) target = $region44
      $region43: #{efficientnet_forward.5} parent=11 // pred_region
        _
      $region44: #{efficientnet_forward.5} parent=11 // pred_fallthru
        _
      // Predicated region
      $region45: #{efficientnet_forward.5} parent=11 // pred_check
        %p318 = pneg %p232
      $region46: #{efficientnet_forward.5} parent=11 // pred_check_branch
        %320 = sbr.rel (%p318) target = $region48
      $region47: #{efficientnet_forward.5} parent=11 // pred_region
        _
      $region48: #{efficientnet_forward.5} parent=11 // pred_fallthru
        _
      // Predicated region
      $region49: #{efficientnet_forward.5} parent=11 // pred_check
        %p321 = pneg %p253
      $region50: #{efficientnet_forward.5} parent=11 // pred_check_branch
        %323 = sbr.rel (%p321) target = $region52
      $region51: #{efficientnet_forward.5} parent=11 // pred_region
        _
      $region52: #{efficientnet_forward.5} parent=11 // pred_fallthru
        _
    $region12: #{efficientnet_forward.5} parent=5 // pred_fallthru
      _
    %p324 = scmp.lt.s32.totalorder %s17, 2
    // Predicated region
    $region53: #{efficientnet_forward.5} parent=5 // pred_check
      %p325 = pneg %p324
    $region54: #{efficientnet_forward.5} parent=5 // pred_check_branch
      %327 = sbr.rel (%p325) target = $region56
    $region55: #{efficientnet_forward.5} parent=5 // pred_region
      // Predicated region
      $region57: #{efficientnet_forward.5} parent=55 // pred_check
        %p328 = pneg %p37
      $region58: #{efficientnet_forward.5} parent=55 // pred_check_branch
        %330 = sbr.rel (%p328) target = $region60
      $region59: #{efficientnet_forward.5} parent=55 // pred_region
        %p331 = scmp.lt.s32.totalorder %s17, 1
        %s332 = scalar_select %p331, %s17, 1
        %s333 = smul.addr %s332, 20
        %s334 = smul.addr %s333, 4
        %s335 = scalar_lea.vmem %s0, %s334
      $region60: #{efficientnet_forward.5} parent=55 // pred_fallthru
        _
    $region56: #{efficientnet_forward.5} parent=5 // pred_fallthru
      _
    %p336 = scmp.le.s32.totalorder 1, %s17
    %p337 = scmp.lt.s32.totalorder %s17, 3
    %p338 = pnand %p336, %p337
    %p339 = pneg %p338
    // Predicated region
    $region61: #{efficientnet_forward.5} parent=5 // pred_check
      _
    $region62: #{efficientnet_forward.5} parent=5 // pred_check_branch
      %341 = sbr.rel (%p338) target = $region64
    $region63: #{efficientnet_forward.5} parent=5 // pred_region
      %s342 = ssub.s32 %s17, 1
      %p343 = scmp.lt.s32.totalorder %s22, 1
      %s344 = scalar_select %p343, %s22, 1
      %s345 = smul.addr %s344, 20
      %s346 = smul.addr %s345, 4
      %s347 = scalar_lea.vmem %s0, %s346
      %p348 = pneg %p43
      %p349 = pneg %p40
      %p350 = pneg %p64
      %p351 = pneg %p61
      %p352 = pneg %p85
      %p353 = pneg %p82
      %p354 = pneg %p106
      %p355 = pneg %p103
      %p356 = pneg %p127
      %p357 = pneg %p124
      %p358 = pneg %p148
      %p359 = pneg %p145
      %p360 = pneg %p169
      %p361 = pneg %p166
      %p362 = pneg %p190
      %p363 = pneg %p187
      %p364 = pneg %p211
      %p365 = pneg %p208
      %p366 = pneg %p232
      %p367 = pneg %p229
      %p368 = pneg %p253
      %p369 = pneg %p250
      %p370 = pneg %p279
      %p371 = pneg %p276
      %p372 = scmp.lt.s32.totalorder %s22, 1
      %s373 = scalar_select %p372, %s22, 1
      %s374 = smul.addr %s373, 4
      %s375 = scalar_lea.vmem %s11, %s374
      %p376 = scmp.lt.s32.totalorder %s22, 1
      %s377 = scalar_select %p376, %s22, 1
      %s378 = smul.addr %s377, 20
      %s379 = smul.addr %s378, 4
      %s380 = scalar_lea.vmem %s0, %s379
      %p381 = scmp.lt.s32.totalorder %s22, 1
      %s382 = scalar_select %p381, %s22, 1
      %s383 = smul.addr %s382, 4
      %s384 = scalar_lea.vmem %s11, %s383
      %v386 = vld [vmem:[%s380] sm:$0x77]
      %v387 = vld [vmem:[%s380 + $0x8] sm:$0x77]
      %v388 = vld [vmem:[%s380 + $0x10] sm:$0x77]
      %v389 = vld [vmem:[%s380 + $0x18] sm:$0x77]
      %v390 = vld [vmem:[%s380 + $0x20] sm:$0x77]
      %v391 = vld [vmem:[%s380 + $0x28] sm:$0x77]
      %v392 = vld [vmem:[%s380 + $0x30] sm:$0x77]
      %v393 = vld [vmem:[%s380 + $0x38] sm:$0x77]
      %v394 = vld [vmem:[%s380 + $0x40] sm:$0x77]
      %v395 = vunpack.c.l.bf16 %v386
      %v396 = vunpack.c.l.bf16 %v388
      %v397 = vunpack.c.l.bf16 %v390
      %v398 = vunpack.c.l.bf16 %v392
      %v399 = vld [vmem:[%s1] sm:$0x1]
      %v401 = vlaneseq
      %v402 = vshrl.u32 %v401, 7
      %v403 = vsub.s32 0, %v402
      %v404 = vrot.slane %v399, %v403
      %v406 = vmul.f32 %v395, %v404
      %v407 = vmul.f32 %v396, %v404
      %v408 = vmul.f32 %v397, %v404
      %v409 = vmul.f32 %v398, %v404
      %v410 = vadd.f32 %v406, 0.0
      %v411 = vadd.f32 %v407, 0.0
      %v412 = vadd.f32 %v408, 0.0
      %v413 = vadd.f32 %v409, 0.0
      %v418 = vrot.slane %v386, 4
      %v419 = vrot.slane %v388, 4
      %v420 = vrot.slane %v390, 4
      %v421 = vrot.slane %v392, 4
      %v426 = vunpack.c.l.bf16 %v418
      %v427 = vunpack.c.l.bf16 %v419
      %v428 = vunpack.c.l.bf16 %v420
      %v429 = vunpack.c.l.bf16 %v421
      %s430 = scalar_lea.vmem %s1, 1
      %v431 = vld [vmem:[%s430] sm:$0x1]
      %v433 = vlaneseq
      %v434 = vshrl.u32 %v433, 7
      %v435 = vsub.s32 0, %v434
      %v436 = vrot.slane %v431, %v435
      %v438 = vmul.f32 %v426, %v436
      %v439 = vmul.f32 %v427, %v436
      %v440 = vmul.f32 %v428, %v436
      %v441 = vmul.f32 %v429, %v436
      %v442 = vadd.f32 %v410, %v438
      %v443 = vadd.f32 %v411, %v439
      %v444 = vadd.f32 %v412, %v440
      %v445 = vadd.f32 %v413, %v441
      %s446 = scalar_lea.vmem %s1, 2
      %v447 = vld [vmem:[%s446] sm:$0x1]
      %v449 = vlaneseq
      %v450 = vshrl.u32 %v449, 7
      %v451 = vsub.s32 0, %v450
      %v452 = vrot.slane %v447, %v451
      %v454 = vmul.f32 %v395, %v452
      %v455 = vmul.f32 %v396, %v452
      %v456 = vmul.f32 %v397, %v452
      %v457 = vmul.f32 %v398, %v452
      %v462 = vrot.slane %v454, 1
      %v463 = vrot.slane %v455, 1
      %v464 = vrot.slane %v456, 1
      %v465 = vrot.slane %v457, 1
      %v470 = vadd.f32 %v442, %v462
      %v471 = vadd.f32 %v443, %v463
      %v472 = vadd.f32 %v444, %v464
      %v473 = vadd.f32 %v445, %v465
      %v474 = vunpack.c.l.bf16 %v387
      %v475 = vunpack.c.l.bf16 %v389
      %v476 = vunpack.c.l.bf16 %v391
      %v477 = vunpack.c.l.bf16 %v393
      %s478 = scalar_lea.vmem %s1, 3
      %v479 = vld [vmem:[%s478] sm:$0x1]
      %v481 = vlaneseq
      %v482 = vshrl.u32 %v481, 7
      %v483 = vsub.s32 0, %v482
      %v484 = vrot.slane %v479, %v483
      %v486 = vmul.f32 %v474, %v484
      %v487 = vmul.f32 %v475, %v484
      %v488 = vmul.f32 %v476, %v484
      %v489 = vmul.f32 %v477, %v484
      %v490 = vadd.f32 %v470, %v486
      %v491 = vadd.f32 %v471, %v487
      %v492 = vadd.f32 %v472, %v488
      %v493 = vadd.f32 %v473, %v489
      %v498 = vrot.slane %v387, 4
      %v499 = vrot.slane %v389, 4
      %v500 = vrot.slane %v391, 4
      %v501 = vrot.slane %v393, 4
      %v506 = vunpack.c.l.bf16 %v498
      %v507 = vunpack.c.l.bf16 %v499
      %v508 = vunpack.c.l.bf16 %v500
      %v509 = vunpack.c.l.bf16 %v501
      %s510 = scalar_lea.vmem %s1, 4
      %v511 = vld [vmem:[%s510] sm:$0x1]
      %v513 = vlaneseq
      %v514 = vshrl.u32 %v513, 7
      %v515 = vsub.s32 0, %v514
      %v516 = vrot.slane %v511, %v515
      %v518 = vmul.f32 %v506, %v516
      %v519 = vmul.f32 %v507, %v516
      %v520 = vmul.f32 %v508, %v516
      %v521 = vmul.f32 %v509, %v516
      %v522 = vadd.f32 %v490, %v518
      %v523 = vadd.f32 %v491, %v519
      %v524 = vadd.f32 %v492, %v520
      %v525 = vadd.f32 %v493, %v521
      %s526 = scalar_lea.vmem %s1, 5
      %v527 = vld [vmem:[%s526] sm:$0x1]
      %v529 = vlaneseq
      %v530 = vshrl.u32 %v529, 7
      %v531 = vsub.s32 0, %v530
      %v532 = vrot.slane %v527, %v531
      %v534 = vmul.f32 %v474, %v532
      %v535 = vmul.f32 %v475, %v532
      %v536 = vmul.f32 %v476, %v532
      %v537 = vmul.f32 %v477, %v532
      %v542 = vrot.slane %v534, 1
      %v543 = vrot.slane %v535, 1
      %v544 = vrot.slane %v536, 1
      %v545 = vrot.slane %v537, 1
      %v550 = vadd.f32 %v522, %v542
      %v551 = vadd.f32 %v523, %v543
      %v552 = vadd.f32 %v524, %v544
      %v553 = vadd.f32 %v525, %v545
      %v554 = vunpack.c.l.bf16 %v394
      %s555 = scalar_lea.vmem %s1, 6
      %v556 = vld [vmem:[%s555] sm:$0x1]
      %v558 = vlaneseq
      %v559 = vshrl.u32 %v558, 7
      %v560 = vsub.s32 0, %v559
      %v561 = vrot.slane %v556, %v560
      %v563 = vmul.f32 %v396, %v561
      %v564 = vmul.f32 %v397, %v561
      %v565 = vmul.f32 %v398, %v561
      %v566 = vmul.f32 %v554, %v561
      %v567 = vadd.f32 %v550, %v563
      %v568 = vadd.f32 %v551, %v564
      %v569 = vadd.f32 %v552, %v565
      %v570 = vadd.f32 %v553, %v566
      %v572 = vrot.slane %v394, 4
      %v574 = vunpack.c.l.bf16 %v572
      %s575 = scalar_lea.vmem %s1, 7
      %v576 = vld [vmem:[%s575] sm:$0x1]
      %v578 = vlaneseq
      %v579 = vshrl.u32 %v578, 7
      %v580 = vsub.s32 0, %v579
      %v581 = vrot.slane %v576, %v580
      %v583 = vmul.f32 %v427, %v581
      %v584 = vmul.f32 %v428, %v581
      %v585 = vmul.f32 %v429, %v581
      %v586 = vmul.f32 %v574, %v581
      %v587 = vadd.f32 %v567, %v583
      %v588 = vadd.f32 %v568, %v584
      %v589 = vadd.f32 %v569, %v585
      %v590 = vadd.f32 %v570, %v586
      %s591 = scalar_lea.vmem %s1, 8
      %v592 = vld [vmem:[%s591] sm:$0x1]
      %v594 = vlaneseq
      %v595 = vshrl.u32 %v594, 7
      %v596 = vsub.s32 0, %v595
      %v597 = vrot.slane %v592, %v596
      %v599 = vmul.f32 %v396, %v597
      %v600 = vmul.f32 %v397, %v597
      %v601 = vmul.f32 %v398, %v597
      %v602 = vmul.f32 %v554, %v597
      %v607 = vrot.slane %v599, 1
      %v608 = vrot.slane %v600, 1
      %v609 = vrot.slane %v601, 1
      %v610 = vrot.slane %v602, 1
      %v615 = vadd.f32 %v587, %v607
      %v616 = vadd.f32 %v588, %v608
      %v617 = vadd.f32 %v589, %v609
      %v618 = vadd.f32 %v590, %v610
      %v619 = vld [vmem:[%s2] sm:$0x1]
      %v621 = vlaneseq
      %v622 = vshrl.u32 %v621, 7
      %v623 = vsub.s32 0, %v622
      %v624 = vrot.slane %v619, %v623
      %v626 = vadd.f32 %v615, %v624
      %v627 = vadd.f32 %v616, %v624
      %v628 = vadd.f32 %v617, %v624
      %v629 = vadd.f32 %v618, %v624
      %v630 = vxor.u32 %v626, 2147483648
      %v631 = vxor.u32 %v627, 2147483648
      %v632 = vxor.u32 %v628, 2147483648
      %v633 = vxor.u32 %v629, 2147483648
      %v634 = vmul.f32 %v630, 1.442695
      %v635 = vpow.pop %v634
      %v636 = vmul.f32 %v631, 1.442695
      %v637 = vpow.pop %v636
      %v638 = vmul.f32 %v632, 1.442695
      %v639 = vpow.pop %v638
      %v640 = vmul.f32 %v633, 1.442695
      %v641 = vpow.pop %v640
      %v642 = vadd.f32 %v635, 1.0
      %v643 = vadd.f32 %v637, 1.0
      %v644 = vadd.f32 %v639, 1.0
      %v645 = vadd.f32 %v641, 1.0
      %v646 = vrcp.pop %v642
      %v647 = vmul.f32 1.0, %v646
      %v648 = vrcp.pop %v643
      %v649 = vmul.f32 1.0, %v648
      %v650 = vrcp.pop %v644
      %v651 = vmul.f32 1.0, %v650
      %v652 = vrcp.pop %v645
      %v653 = vmul.f32 1.0, %v652
      %v654 = vmul.f32 %v626, %v647
      %v655 = vmul.f32 %v627, %v649
      %v656 = vmul.f32 %v628, %v651
      %v657 = vmul.f32 %v629, %v653
      %v662 = vcombine.low %v654, %v655
      %v663 = vcombine.low %v656, %v657
      %v666 = vadd.f32 %v662, %v663
      %v667 = vrot.slane %v666, 4
      %v668 = vadd.f32 %v666, %v667
      %v669 = vrot.slane %v668, 2
      %v670 = vadd.f32 %v668, %v669
      %v671 = vrot.slane %v670, 1
      %v672 = vadd.f32 %v670, %v671
      %v673 = vrcp.pop 16.0
      %v674 = vmul.f32 %v672, %v673
      %v675 = vpack.c.bf16 %v674, %v674
      %v676 = vld [vmem:[%s3] sm:$0xf]
      %v677 = vld [vmem:[%s3 + $0x4] sm:$0xf]
      %v678 = vld [vmem:[%s3 + $0x8] sm:$0xf]
      %v679 = vld [vmem:[%s3 + $0xc] sm:$0xf]
      %v680 = vld [vmem:[%s3 + $0x10] sm:$0xf]
      %v681 = vld [vmem:[%s3 + $0x14] sm:$0xf]
      %v682 = vld [vmem:[%s3 + $0x18] sm:$0xf]
      %v683 = vld [vmem:[%s3 + $0x1c] sm:$0xf]
      %v684 = vld [vmem:[%s3 + $0x20] sm:$0xf]
      %v685 = vld [vmem:[%s3 + $0x24] sm:$0xf]
      %v686 = vld [vmem:[%s3 + $0x28] sm:$0xf]
      %v687 = vld [vmem:[%s3 + $0x2c] sm:$0xf]
      %v688 = vld [vmem:[%s3 + $0x30] sm:$0xf]
      %v689 = vld [vmem:[%s3 + $0x34] sm:$0xf]
      %v690 = vld [vmem:[%s3 + $0x38] sm:$0xf]
      %v691 = vld [vmem:[%s3 + $0x3c] sm:$0xf]
      %v692 = vld [vmem:[%s4] sm:$0x1]
      %v709 = vunpack.c.l.b16 %v676
      %v710 = vunpack.c.l.b16 %v677
      %v711 = vunpack.c.l.b16 %v678
      %v712 = vunpack.c.l.b16 %v679
      %v713 = vunpack.c.l.b16 %v680
      %v714 = vunpack.c.l.b16 %v681
      %v715 = vunpack.c.l.b16 %v682
      %v716 = vunpack.c.l.b16 %v683
      %v717 = vunpack.c.l.b16 %v684
      %v718 = vunpack.c.l.b16 %v685
      %v719 = vunpack.c.l.b16 %v686
      %v720 = vunpack.c.l.b16 %v687
      %v721 = vunpack.c.l.b16 %v688
      %v722 = vunpack.c.l.b16 %v689
      %v723 = vunpack.c.l.b16 %v690
      %v724 = vunpack.c.l.b16 %v691
      %v725 = vpack.c.b16 %v710, %v709
      %v726 = vpack.c.b16 %v712, %v711
      %v727 = vpack.c.b16 %v714, %v713
      %v728 = vpack.c.b16 %v716, %v715
      %v729 = vpack.c.b16 %v718, %v717
      %v730 = vpack.c.b16 %v720, %v719
      %v731 = vpack.c.b16 %v722, %v721
      %v732 = vpack.c.b16 %v724, %v723
      %741 = vmatprep.subr.bf16.mxu0 0
      %742 = vmatpush1.bf16.msra.mxu0 %v725
      %743 = vmatprep.subr.bf16.mxu0 0
      %744 = vmatpush1.bf16.msra.mxu0 %v726
      %745 = vmatprep.subr.bf16.mxu0 0
      %746 = vmatpush1.bf16.msra.mxu0 %v727
      %747 = vmatprep.subr.bf16.mxu0 0
      %748 = vmatpush1.bf16.msra.mxu0 %v728
      %749 = vmatprep.subr.bf16.mxu0 0
      %750 = vmatpush1.bf16.msra.mxu0 %v729
      %751 = vmatprep.subr.bf16.mxu0 0
      %752 = vmatpush1.bf16.msra.mxu0 %v730
      %753 = vmatprep.subr.bf16.mxu0 0
      %754 = vmatpush1.bf16.msra.mxu0 %v731
      %755 = vmatprep.subr.bf16.mxu0 0
      %756 = vmatpush1.bf16.msra.mxu0 %v732
      %757 = vmatprep.subr.bf16.mxu0 0
      %758 = vmatpush1.bf16.msra.mxu0 0
      %759 = vmatprep.subr.bf16.mxu0 0
      %760 = vmatpush1.bf16.msra.mxu0 0
      %761 = vmatprep.subr.bf16.mxu0 0
      %762 = vmatpush1.bf16.msra.mxu0 0
      %763 = vmatprep.subr.bf16.mxu0 0
      %764 = vmatpush1.bf16.msra.mxu0 0
      %765 = vmatprep.subr.bf16.mxu0 0
      %766 = vmatpush1.bf16.msra.mxu0 0
      %767 = vmatprep.subr.bf16.mxu0 0
      %768 = vmatpush1.bf16.msra.mxu0 0
      %769 = vmatprep.subr.bf16.mxu0 0
      %770 = vmatpush1.bf16.msra.mxu0 0
      %771 = vmatprep.subr.bf16.mxu0 0
      %772 = vmatpush1.bf16.msra.mxu0 0
      %773 = vmatprep.mubr.bf16.mxu0 0
      %774 = vmatmul.mubr.bf16.gmra.mrb[0].mxu0 %v675
      %v775 = vpop.f32.mrb[0].mxu0
      %v776 = vadd.f32 %v692, %v775
      %v777 = vpop.f32.mrb[0].mxu0
      %v778 = vpop.f32.mrb[0].mxu0
      %v779 = vpop.f32.mrb[0].mxu0
      %780 = vdwg.mxu0
      %v781 = vxor.u32 %v776, 2147483648
      %v782 = vmul.f32 %v781, 1.442695
      %v783 = vpow.pop %v782
      %v784 = vadd.f32 %v783, 1.0
      %v785 = vrcp.pop %v784
      %v786 = vmul.f32 1.0, %v785
      %v787 = vmul.f32 %v776, %v786
      %v788 = vpack.c.bf16 %v787, %v787
      %v789 = vld [vmem:[%s5] sm:$0xf]
      %v790 = vld [vmem:[%s6] sm:$0x1]
      %vm791 = vcmask 64512
      %v793 = vsel %vm791, %v788, 0
      %vm795 = vcmask 1043456
      %v797 = vsel %vm795, %v789, 0
      %799 = vmatprep.subr.bf16.mxu0 0
      %800 = vmatpush1.bf16.msra.mxu0 %v797
      %801 = vmatprep.subr.bf16.mxu0 0
      %802 = vmatpush1.bf16.msra.mxu0 0
      %803 = vmatprep.subr.bf16.mxu0 0
      %804 = vmatpush1.bf16.msra.mxu0 0
      %805 = vmatprep.subr.bf16.mxu0 0
      %806 = vmatpush1.bf16.msra.mxu0 0
      %807 = vmatprep.subr.bf16.mxu0 0
      %808 = vmatpush1.bf16.msra.mxu0 0
      %809 = vmatprep.subr.bf16.mxu0 0
      %810 = vmatpush1.bf16.msra.mxu0 0
      %811 = vmatprep.subr.bf16.mxu0 0
      %812 = vmatpush1.bf16.msra.mxu0 0
      %813 = vmatprep.subr.bf16.mxu0 0
      %814 = vmatpush1.bf16.msra.mxu0 0
      %815 = vmatprep.subr.bf16.mxu0 0
      %816 = vmatpush1.bf16.msra.mxu0 0
      %817 = vmatprep.subr.bf16.mxu0 0
      %818 = vmatpush1.bf16.msra.mxu0 0
      %819 = vmatprep.subr.bf16.mxu0 0
      %820 = vmatpush1.bf16.msra.mxu0 0
      %821 = vmatprep.subr.bf16.mxu0 0
      %822 = vmatpush1.bf16.msra.mxu0 0
      %823 = vmatprep.subr.bf16.mxu0 0
      %824 = vmatpush1.bf16.msra.mxu0 0
      %825 = vmatprep.subr.bf16.mxu0 0
      %826 = vmatpush1.bf16.msra.mxu0 0
      %827 = vmatprep.subr.bf16.mxu0 0
      %828 = vmatpush1.bf16.msra.mxu0 0
      %829 = vmatprep.subr.bf16.mxu0 0
      %830 = vmatpush1.bf16.msra.mxu0 0
      %831 = vmatprep.mubr.bf16.mxu0 0
      %832 = vmatmul.mubr.bf16.gmra.mrb[0].mxu0 %v793
      %v833 = vpop.f32.mrb[0].mxu0
      %v834 = vadd.f32 %v790, %v833
      %v835 = vpop.f32.mrb[0].mxu0
      %v836 = vpop.f32.mrb[0].mxu0
      %v837 = vpop.f32.mrb[0].mxu0
      %838 = vdwg.mxu0
      %v839 = vxor.u32 %v834, 2147483648
      %v840 = vmul.f32 %v839, 1.442695
      %v841 = vpow.pop %v840
      %v842 = vadd.f32 %v841, 1.0
      %v843 = vrcp.pop %v842
      %v844 = vmul.f32 1.0, %v843
      %v845 = vlaneseq
      %v846 = vshrl.u32 %v845, 7
      %v847 = vsub.s32 0, %v846
      %v848 = vrot.slane %v844, %v847
      %v850 = vcombine.high %v848, %v848
      %v852 = vmul.f32 %v654, %v848
      %v853 = vmul.f32 %v655, %v850
      %v854 = vmul.f32 %v656, %v848
      %v855 = vmul.f32 %v657, %v850
      %v860 = vcombine.low %v852, %v853
      %v861 = vcombine.low %v854, %v855
      %v864 = vpack.c.bf16 %v861, %v860
      %v865 = vld [vmem:[%s7] sm:$0xff]
      %v866 = vld [vmem:[%s7 + $0x8] sm:$0xff]
      %v867 = vld [vmem:[%s7 + $0x10] sm:$0xff]
      %v868 = vld [vmem:[%s7 + $0x18] sm:$0xff]
      %v869 = vld [vmem:[%s7 + $0x20] sm:$0xff]
      %v870 = vld [vmem:[%s7 + $0x28] sm:$0xff]
      %v871 = vld [vmem:[%s7 + $0x30] sm:$0xff]
      %v872 = vld [vmem:[%s7 + $0x38] sm:$0xff]
      %v873 = vld [vmem:[%s7 + $0x40] sm:$0xff]
      %v874 = vld [vmem:[%s7 + $0x48] sm:$0xff]
      %v875 = vld [vmem:[%s7 + $0x50] sm:$0xff]
      %v876 = vld [vmem:[%s7 + $0x58] sm:$0xff]
      %v877 = vld [vmem:[%s7 + $0x60] sm:$0xff]
      %v878 = vld [vmem:[%s7 + $0x68] sm:$0xff]
      %v879 = vld [vmem:[%s7 + $0x70] sm:$0xff]
      %v880 = vld [vmem:[%s7 + $0x78] sm:$0xff]
      %v881 = vld [vmem:[%s8] sm:$0x3]
      %v883 = vlaneseq
      %v884 = vshrl.u32 %v883, 7
      %v885 = vsub.s32 0, %v884
      %v886 = vrot.slane %v881, %v885
      %v887 = vlaneseq
      %v888 = vshrl.u32 %v887, 7
      %v889 = vsub.s32 1, %v888
      %v890 = vrot.slane %v881, %v889
      %v909 = vunpack.c.l.b16 %v865
      %v910 = vunpack.c.h.b16 %v865
      %v911 = vunpack.c.l.b16 %v866
      %v912 = vunpack.c.h.b16 %v866
      %v913 = vunpack.c.l.b16 %v867
      %v914 = vunpack.c.h.b16 %v867
      %v915 = vunpack.c.l.b16 %v868
      %v916 = vunpack.c.h.b16 %v868
      %v917 = vunpack.c.l.b16 %v869
      %v918 = vunpack.c.h.b16 %v869
      %v919 = vunpack.c.l.b16 %v870
      %v920 = vunpack.c.h.b16 %v870
      %v921 = vunpack.c.l.b16 %v871
      %v922 = vunpack.c.h.b16 %v871
      %v923 = vunpack.c.l.b16 %v872
      %v924 = vunpack.c.h.b16 %v872
      %v925 = vunpack.c.l.b16 %v873
      %v926 = vunpack.c.h.b16 %v873
      %v927 = vunpack.c.l.b16 %v874
      %v928 = vunpack.c.h.b16 %v874
      %v929 = vunpack.c.l.b16 %v875
      %v930 = vunpack.c.h.b16 %v875
      %v931 = vunpack.c.l.b16 %v876
      %v932 = vunpack.c.h.b16 %v876
      %v933 = vunpack.c.l.b16 %v877
      %v934 = vunpack.c.h.b16 %v877
      %v935 = vunpack.c.l.b16 %v878
      %v936 = vunpack.c.h.b16 %v878
      %v937 = vunpack.c.l.b16 %v879
      %v938 = vunpack.c.h.b16 %v879
      %v939 = vunpack.c.l.b16 %v880
      %v940 = vunpack.c.h.b16 %v880
      %v941 = vpack.c.b16 %v911, %v909
      %v942 = vpack.c.b16 %v912, %v910
      %v943 = vpack.c.b16 %v915, %v913
      %v944 = vpack.c.b16 %v916, %v914
      %v945 = vpack.c.b16 %v919, %v917
      %v946 = vpack.c.b16 %v920, %v918
      %v947 = vpack.c.b16 %v923, %v921
      %v948 = vpack.c.b16 %v924, %v922
      %v949 = vpack.c.b16 %v927, %v925
      %v950 = vpack.c.b16 %v928, %v926
      %v951 = vpack.c.b16 %v931, %v929
      %v952 = vpack.c.b16 %v932, %v930
      %v953 = vpack.c.b16 %v935, %v933
      %v954 = vpack.c.b16 %v936, %v934
      %v955 = vpack.c.b16 %v939, %v937
      %v956 = vpack.c.b16 %v940, %v938
      %973 = vmatprep.subr.bf16.mxu0 %v942
      %974 = vmatpush1.bf16.msra.mxu0 %v941
      %975 = vmatprep.subr.bf16.mxu0 %v944
      %976 = vmatpush1.bf16.msra.mxu0 %v943
      %977 = vmatprep.subr.bf16.mxu0 %v946
      %978 = vmatpush1.bf16.msra.mxu0 %v945
      %979 = vmatprep.subr.bf16.mxu0 %v948
      %980 = vmatpush1.bf16.msra.mxu0 %v947
      %981 = vmatprep.subr.bf16.mxu0 %v950
      %982 = vmatpush1.bf16.msra.mxu0 %v949
      %983 = vmatprep.subr.bf16.mxu0 %v952
      %984 = vmatpush1.bf16.msra.mxu0 %v951
      %985 = vmatprep.subr.bf16.mxu0 %v954
      %986 = vmatpush1.bf16.msra.mxu0 %v953
      %987 = vmatprep.subr.bf16.mxu0 %v956
      %988 = vmatpush1.bf16.msra.mxu0 %v955
      %989 = vmatprep.subr.bf16.mxu0 0
      %990 = vmatpush1.bf16.msra.mxu0 0
      %991 = vmatprep.subr.bf16.mxu0 0
      %992 = vmatpush1.bf16.msra.mxu0 0
      %993 = vmatprep.subr.bf16.mxu0 0
      %994 = vmatpush1.bf16.msra.mxu0 0
      %995 = vmatprep.subr.bf16.mxu0 0
      %996 = vmatpush1.bf16.msra.mxu0 0
      %997 = vmatprep.subr.bf16.mxu0 0
      %998 = vmatpush1.bf16.msra.mxu0 0
      %999 = vmatprep.subr.bf16.mxu0 0
      %1000 = vmatpush1.bf16.msra.mxu0 0
      %1001 = vmatprep.subr.bf16.mxu0 0
      %1002 = vmatpush1.bf16.msra.mxu0 0
      %1003 = vmatprep.subr.bf16.mxu0 0
      %1004 = vmatpush1.bf16.msra.mxu0 0
      %1005 = vmatprep.mubr.bf16.mxu0 0
      %1006 = vmatmul.mubr.bf16.gmra.mrb[0].mxu0 %v864
      %v1007 = vpop.f32.mrb[0].mxu0
      %v1008 = vadd.f32 %v886, %v1007
      %v1009 = vpop.f32.mrb[0].mxu0
      %v1010 = vadd.f32 %v890, %v1009
      %v1011 = vpop.f32.mrb[0].mxu0
      %v1012 = vadd.f32 %v886, %v1011
      %v1013 = vpop.f32.mrb[0].mxu0
      %v1014 = vadd.f32 %v890, %v1013
      %1015 = vdwg.mxu0
      %v1016 = vxor.u32 %v1008, 2147483648
      %v1017 = vxor.u32 %v1010, 2147483648
      %v1018 = vxor.u32 %v1012, 2147483648
      %v1019 = vxor.u32 %v1014, 2147483648
      %v1020 = vmul.f32 %v1016, 1.442695
      %v1021 = vpow.pop %v1020
      %v1022 = vmul.f32 %v1017, 1.442695
      %v1023 = vpow.pop %v1022
      %v1024 = vmul.f32 %v1018, 1.442695
      %v1025 = vpow.pop %v1024
      %v1026 = vmul.f32 %v1019, 1.442695
      %v1027 = vpow.pop %v1026
      %v1028 = vadd.f32 %v1021, 1.0
      %v1029 = vadd.f32 %v1023, 1.0
      %v1030 = vadd.f32 %v1025, 1.0
      %v1031 = vadd.f32 %v1027, 1.0
      %v1032 = vrcp.pop %v1028
      %v1033 = vmul.f32 1.0, %v1032
      %v1034 = vrcp.pop %v1029
      %v1035 = vmul.f32 1.0, %v1034
      %v1036 = vrcp.pop %v1030
      %v1037 = vmul.f32 1.0, %v1036
      %v1038 = vrcp.pop %v1031
      %v1039 = vmul.f32 1.0, %v1038
      %v1040 = vmul.f32 %v1008, %v1033
      %v1041 = vmul.f32 %v1010, %v1035
      %v1042 = vmul.f32 %v1012, %v1037
      %v1043 = vmul.f32 %v1014, %v1039
      %v1044 = vadd.f32 %v1040, %v1042
      %v1045 = vrot.slane %v1044, 4
      %v1046 = vadd.f32 %v1044, %v1045
      %v1047 = vrot.slane %v1046, 2
      %v1048 = vadd.f32 %v1046, %v1047
      %v1049 = vrot.slane %v1048, 1
      %v1050 = vadd.f32 %v1048, %v1049
      %vm1051 = vcmask 523264
      %v1052 = vsel %vm1051, %v1041, 0.0
      %v1053 = vsel %vm1051, %v1043, 0.0
      %v1054 = vadd.f32 %v1052, %v1053
      %v1055 = vrot.slane %v1054, 4
      %v1056 = vadd.f32 %v1054, %v1055
      %v1057 = vrot.slane %v1056, 2
      %v1058 = vadd.f32 %v1056, %v1057
      %v1059 = vrot.slane %v1058, 1
      %v1060 = vadd.f32 %v1058, %v1059
      %v1061 = vmul.f32 %v1050, %v673
      %v1062 = vmul.f32 %v1060, %v673
      %v1063 = vpack.c.bf16 %v1061, %v1061
      %v1064 = vpack.c.bf16 %v1062, %v1062
      %v1065 = vld [vmem:[%s9] sm:$0xff]
      %v1066 = vld [vmem:[%s9 + $0x8] sm:$0xff]
      %v1067 = vld [vmem:[%s9 + $0x10] sm:$0xff]
      %v1068 = vld [vmem:[%s9 + $0x18] sm:$0xff]
      %v1069 = vld [vmem:[%s9 + $0x20] sm:$0xff]
      %v1070 = vld [vmem:[%s9 + $0x28] sm:$0xff]
      %v1071 = vld [vmem:[%s9 + $0x30] sm:$0xff]
      %v1072 = vld [vmem:[%s9 + $0x38] sm:$0xff]
      %v1073 = vld [vmem:[%s9 + $0x40] sm:$0xff]
      %v1074 = vld [vmem:[%s9 + $0x48] sm:$0xff]
      %v1075 = vld [vmem:[%s9 + $0x50] sm:$0xff]
      %v1076 = vld [vmem:[%s9 + $0x58] sm:$0xff]
      %v1077 = vld [vmem:[%s9 + $0x60] sm:$0xff]
      %v1078 = vld [vmem:[%s9 + $0x68] sm:$0xff]
      %v1079 = vld [vmem:[%s9 + $0x70] sm:$0xff]
      %v1080 = vld [vmem:[%s9 + $0x78] sm:$0xff]
      %v1081 = vld [vmem:[%s9 + $0x80] sm:$0xff]
      %v1082 = vld [vmem:[%s9 + $0x88] sm:$0xff]
      %v1083 = vld [vmem:[%s9 + $0x90] sm:$0xff]
      %v1084 = vld [vmem:[%s9 + $0x98] sm:$0xff]
      %v1085 = vld [vmem:[%s9 + $0xa0] sm:$0xff]
      %v1086 = vld [vmem:[%s9 + $0xa8] sm:$0xff]
      %v1087 = vld [vmem:[%s9 + $0xb0] sm:$0xff]
      %v1088 = vld [vmem:[%s9 + $0xb8] sm:$0xff]
      %v1089 = vld [vmem:[%s9 + $0xc0] sm:$0xff]
      %v1090 = vld [vmem:[%s9 + $0xc8] sm:$0xff]
      %v1091 = vld [vmem:[%s9 + $0xd0] sm:$0xff]
      %v1092 = vld [vmem:[%s9 + $0xd8] sm:$0xff]
      %v1093 = vld [vmem:[%s9 + $0xe0] sm:$0xff]
      %v1094 = vld [vmem:[%s9 + $0xe8] sm:$0xff]
      %v1095 = vld [vmem:[%s9 + $0xf0] sm:$0xff]
      %v1096 = vld [vmem:[%s9 + $0xf8] sm:$0xff]
      %v1097 = vld [vmem:[%s9 + $0x100] sm:$0xff]
      %v1098 = vld [vmem:[%s9 + $0x108] sm:$0xff]
      %v1099 = vld [vmem:[%s9 + $0x110] sm:$0xff]
      %v1100 = vld [vmem:[%s9 + $0x118] sm:$0xff]
      %v1101 = vld [vmem:[%s9 + $0x120] sm:$0xff]
      %v1102 = vld [vmem:[%s9 + $0x128] sm:$0xff]
      %v1103 = vld [vmem:[%s9 + $0x130] sm:$0xff]
      %v1104 = vld [vmem:[%s9 + $0x138] sm:$0xff]
      %v1105 = vld [vmem:[%s9 + $0x140] sm:$0xff]
      %v1106 = vld [vmem:[%s9 + $0x148] sm:$0xff]
      %v1107 = vld [vmem:[%s9 + $0x150] sm:$0xff]
      %v1108 = vld [vmem:[%s9 + $0x158] sm:$0xff]
      %v1109 = vld [vmem:[%s9 + $0x160] sm:$0xff]
      %v1110 = vld [vmem:[%s9 + $0x168] sm:$0xff]
      %v1111 = vld [vmem:[%s9 + $0x170] sm:$0xff]
      %v1112 = vld [vmem:[%s9 + $0x178] sm:$0xff]
      %v1113 = vld [vmem:[%s10] sm:$0xf]
      %v1162 = vunpack.c.l.b16 %v1065
      %v1163 = vunpack.c.h.b16 %v1065
      %v1164 = vunpack.c.l.b16 %v1066
      %v1165 = vunpack.c.h.b16 %v1066
      %v1166 = vunpack.c.l.b16 %v1067
      %v1167 = vunpack.c.h.b16 %v1067
      %v1168 = vunpack.c.l.b16 %v1068
      %v1169 = vunpack.c.h.b16 %v1068
      %v1170 = vunpack.c.l.b16 %v1069
      %v1171 = vunpack.c.h.b16 %v1069
      %v1172 = vunpack.c.l.b16 %v1070
      %v1173 = vunpack.c.h.b16 %v1070
      %v1174 = vunpack.c.l.b16 %v1071
      %v1175 = vunpack.c.h.b16 %v1071
      %v1176 = vunpack.c.l.b16 %v1072
      %v1177 = vunpack.c.h.b16 %v1072
      %v1178 = vunpack.c.l.b16 %v1073
      %v1179 = vunpack.c.h.b16 %v1073
      %v1180 = vunpack.c.l.b16 %v1074
      %v1181 = vunpack.c.h.b16 %v1074
      %v1182 = vunpack.c.l.b16 %v1075
      %v1183 = vunpack.c.h.b16 %v1075
      %v1184 = vunpack.c.l.b16 %v1076
      %v1185 = vunpack.c.h.b16 %v1076
      %v1186 = vunpack.c.l.b16 %v1077
      %v1187 = vunpack.c.h.b16 %v1077
      %v1188 = vunpack.c.l.b16 %v1078
      %v1189 = vunpack.c.h.b16 %v1078
      %v1190 = vunpack.c.l.b16 %v1079
      %v1191 = vunpack.c.h.b16 %v1079
      %v1192 = vunpack.c.l.b16 %v1080
      %v1193 = vunpack.c.h.b16 %v1080
      %v1194 = vunpack.c.l.b16 %v1081
      %v1195 = vunpack.c.h.b16 %v1081
      %v1196 = vunpack.c.l.b16 %v1082
      %v1197 = vunpack.c.h.b16 %v1082
      %v1198 = vunpack.c.l.b16 %v1083
      %v1199 = vunpack.c.h.b16 %v1083
      %v1200 = vunpack.c.l.b16 %v1084
      %v1201 = vunpack.c.h.b16 %v1084
      %v1202 = vunpack.c.l.b16 %v1085
      %v1203 = vunpack.c.h.b16 %v1085
      %v1204 = vunpack.c.l.b16 %v1086
      %v1205 = vunpack.c.h.b16 %v1086
      %v1206 = vunpack.c.l.b16 %v1087
      %v1207 = vunpack.c.h.b16 %v1087
      %v1208 = vunpack.c.l.b16 %v1088
      %v1209 = vunpack.c.h.b16 %v1088
      %v1210 = vunpack.c.l.b16 %v1089
      %v1211 = vunpack.c.h.b16 %v1089
      %v1212 = vunpack.c.l.b16 %v1090
      %v1213 = vunpack.c.h.b16 %v1090
      %v1214 = vunpack.c.l.b16 %v1091
      %v1215 = vunpack.c.h.b16 %v1091
      %v1216 = vunpack.c.l.b16 %v1092
      %v1217 = vunpack.c.h.b16 %v1092
      %v1218 = vunpack.c.l.b16 %v1093
      %v1219 = vunpack.c.h.b16 %v1093
      %v1220 = vunpack.c.l.b16 %v1094
      %v1221 = vunpack.c.h.b16 %v1094
      %v1222 = vunpack.c.l.b16 %v1095
      %v1223 = vunpack.c.h.b16 %v1095
      %v1224 = vunpack.c.l.b16 %v1096
      %v1225 = vunpack.c.h.b16 %v1096
      %v1226 = vunpack.c.l.b16 %v1097
      %v1227 = vunpack.c.h.b16 %v1097
      %v1228 = vunpack.c.l.b16 %v1098
      %v1229 = vunpack.c.h.b16 %v1098
      %v1230 = vunpack.c.l.b16 %v1099
      %v1231 = vunpack.c.h.b16 %v1099
      %v1232 = vunpack.c.l.b16 %v1100
      %v1233 = vunpack.c.h.b16 %v1100
      %v1234 = vunpack.c.l.b16 %v1101
      %v1235 = vunpack.c.h.b16 %v1101
      %v1236 = vunpack.c.l.b16 %v1102
      %v1237 = vunpack.c.h.b16 %v1102
      %v1238 = vunpack.c.l.b16 %v1103
      %v1239 = vunpack.c.h.b16 %v1103
      %v1240 = vunpack.c.l.b16 %v1104
      %v1241 = vunpack.c.h.b16 %v1104
      %v1242 = vunpack.c.l.b16 %v1105
      %v1243 = vunpack.c.h.b16 %v1105
      %v1244 = vunpack.c.l.b16 %v1106
      %v1245 = vunpack.c.h.b16 %v1106
      %v1246 = vunpack.c.l.b16 %v1107
      %v1247 = vunpack.c.h.b16 %v1107
      %v1248 = vunpack.c.l.b16 %v1108
      %v1249 = vunpack.c.h.b16 %v1108
      %v1250 = vunpack.c.l.b16 %v1109
      %v1251 = vunpack.c.h.b16 %v1109
      %v1252 = vunpack.c.l.b16 %v1110
      %v1253 = vunpack.c.h.b16 %v1110
      %v1254 = vunpack.c.l.b16 %v1111
      %v1255 = vunpack.c.h.b16 %v1111
      %v1256 = vunpack.c.l.b16 %v1112
      %v1257 = vunpack.c.h.b16 %v1112
      %v1258 = vpack.c.b16 %v1166, %v1162
      %v1259 = vpack.c.b16 %v1167, %v1163
      %v1260 = vpack.c.b16 %v1168, %v1164
      %v1261 = vpack.c.b16 %v1169, %v1165
      %v1262 = vpack.c.b16 %v1174, %v1170
      %v1263 = vpack.c.b16 %v1175, %v1171
      %v1264 = vpack.c.b16 %v1176, %v1172
      %v1265 = vpack.c.b16 %v1177, %v1173
      %v1266 = vpack.c.b16 %v1182, %v1178
      %v1267 = vpack.c.b16 %v1183, %v1179
      %v1268 = vpack.c.b16 %v1184, %v1180
      %v1269 = vpack.c.b16 %v1185, %v1181
      %v1270 = vpack.c.b16 %v1190, %v1186
      %v1271 = vpack.c.b16 %v1191, %v1187
      %v1272 = vpack.c.b16 %v1192, %v1188
      %v1273 = vpack.c.b16 %v1193, %v1189
      %v1274 = vpack.c.b16 %v1198, %v1194
      %v1275 = vpack.c.b16 %v1199, %v1195
      %v1276 = vpack.c.b16 %v1200, %v1196
      %v1277 = vpack.c.b16 %v1201, %v1197
      %v1278 = vpack.c.b16 %v1206, %v1202
      %v1279 = vpack.c.b16 %v1207, %v1203
      %v1280 = vpack.c.b16 %v1208, %v1204
      %v1281 = vpack.c.b16 %v1209, %v1205
      %v1282 = vpack.c.b16 %v1214, %v1210
      %v1283 = vpack.c.b16 %v1215, %v1211
      %v1284 = vpack.c.b16 %v1216, %v1212
      %v1285 = vpack.c.b16 %v1217, %v1213
      %v1286 = vpack.c.b16 %v1222, %v1218
      %v1287 = vpack.c.b16 %v1223, %v1219
      %v1288 = vpack.c.b16 %v1224, %v1220
      %v1289 = vpack.c.b16 %v1225, %v1221
      %v1290 = vpack.c.b16 %v1230, %v1226
      %v1291 = vpack.c.b16 %v1231, %v1227
      %v1292 = vpack.c.b16 %v1232, %v1228
      %v1293 = vpack.c.b16 %v1233, %v1229
      %v1294 = vpack.c.b16 %v1238, %v1234
      %v1295 = vpack.c.b16 %v1239, %v1235
      %v1296 = vpack.c.b16 %v1240, %v1236
      %v1297 = vpack.c.b16 %v1241, %v1237
      %v1298 = vpack.c.b16 %v1246, %v1242
      %v1299 = vpack.c.b16 %v1247, %v1243
      %v1300 = vpack.c.b16 %v1248, %v1244
      %v1301 = vpack.c.b16 %v1249, %v1245
      %v1302 = vpack.c.b16 %v1254, %v1250
      %v1303 = vpack.c.b16 %v1255, %v1251
      %v1304 = vpack.c.b16 %v1256, %v1252
      %v1305 = vpack.c.b16 %v1257, %v1253
      %v1355 = vlaneseq
      %v1356 = vshrl.u32 %v1355, 7
      %v1357 = vsub.s32 0, %v1356
      %v1358 = vrot.slane %v1113, %v1357
      %v1359 = vlaneseq
      %v1360 = vshrl.u32 %v1359, 7
      %v1361 = vsub.s32 1, %v1360
      %v1362 = vrot.slane %v1113, %v1361
      %v1363 = vlaneseq
      %v1364 = vshrl.u32 %v1363, 7
      %v1365 = vsub.s32 2, %v1364
      %v1366 = vrot.slane %v1113, %v1365
      %v1367 = vlaneseq
      %v1368 = vshrl.u32 %v1367, 7
      %v1369 = vsub.s32 3, %v1368
      %v1370 = vrot.slane %v1113, %v1369
      %v1376 = vsel %vm1051, %v1064, 0
      %1378 = vmatprep.subr.bf16.mxu0 %v1259
      %1379 = vmatpush1.bf16.msra.mxu0 %v1258
      %1380 = vmatprep.subr.bf16.mxu0 %v1263
      %1381 = vmatpush1.bf16.msra.mxu0 %v1262
      %1382 = vmatprep.subr.bf16.mxu0 %v1267
      %1383 = vmatpush1.bf16.msra.mxu0 %v1266
      %1384 = vmatprep.subr.bf16.mxu0 %v1271
      %1385 = vmatpush1.bf16.msra.mxu0 %v1270
      %1386 = vmatprep.subr.bf16.mxu0 %v1275
      %1387 = vmatpush1.bf16.msra.mxu0 %v1274
      %1388 = vmatprep.subr.bf16.mxu0 %v1279
      %1389 = vmatpush1.bf16.msra.mxu0 %v1278
      %1390 = vmatprep.subr.bf16.mxu0 %v1283
      %1391 = vmatpush1.bf16.msra.mxu0 %v1282
      %1392 = vmatprep.subr.bf16.mxu0 %v1287
      %1393 = vmatpush1.bf16.msra.mxu0 %v1286
      %1394 = vmatprep.subr.bf16.mxu0 %v1291
      %1395 = vmatpush1.bf16.msra.mxu0 %v1290
      %1396 = vmatprep.subr.bf16.mxu0 %v1295
      %1397 = vmatpush1.bf16.msra.mxu0 %v1294
      %1398 = vmatprep.subr.bf16.mxu0 %v1299
      %1399 = vmatpush1.bf16.msra.mxu0 %v1298
      %1400 = vmatprep.subr.bf16.mxu0 %v1303
      %1401 = vmatpush1.bf16.msra.mxu0 %v1302
      %1402 = vmatprep.subr.bf16.mxu0 0
      %1403 = vmatpush1.bf16.msra.mxu0 0
      %1404 = vmatprep.subr.bf16.mxu0 0
      %1405 = vmatpush1.bf16.msra.mxu0 0
      %1406 = vmatprep.subr.bf16.mxu0 0
      %1407 = vmatpush1.bf16.msra.mxu0 0
      %1408 = vmatprep.subr.bf16.mxu0 0
      %1409 = vmatpush1.bf16.msra.mxu0 0
      %1410 = vmatprep.mubr.bf16.mxu0 %v1376
      %1411 = vmatmul.mubr.bf16.gmra.mrb[0].mxu0 %v1063
      %v1412 = vpop.f32.mrb[0].mxu0
      %v1413 = vadd.f32 %v1358, %v1412
      %v1414 = vpop.f32.mrb[0].mxu0
      %v1415 = vadd.f32 %v1362, %v1414
      %v1416 = vpop.f32.mrb[0].mxu0
      %v1417 = vpop.f32.mrb[0].mxu0
      %1418 = vdwg.mxu0
      %1419 = vmatprep.subr.bf16.mxu0 %v1261
      %1420 = vmatpush1.bf16.msra.mxu0 %v1260
      %1421 = vmatprep.subr.bf16.mxu0 %v1265
      %1422 = vmatpush1.bf16.msra.mxu0 %v1264
      %1423 = vmatprep.subr.bf16.mxu0 %v1269
      %1424 = vmatpush1.bf16.msra.mxu0 %v1268
      %1425 = vmatprep.subr.bf16.mxu0 %v1273
      %1426 = vmatpush1.bf16.msra.mxu0 %v1272
      %1427 = vmatprep.subr.bf16.mxu0 %v1277
      %1428 = vmatpush1.bf16.msra.mxu0 %v1276
      %1429 = vmatprep.subr.bf16.mxu0 %v1281
      %1430 = vmatpush1.bf16.msra.mxu0 %v1280
      %1431 = vmatprep.subr.bf16.mxu0 %v1285
      %1432 = vmatpush1.bf16.msra.mxu0 %v1284
      %1433 = vmatprep.subr.bf16.mxu0 %v1289
      %1434 = vmatpush1.bf16.msra.mxu0 %v1288
      %1435 = vmatprep.subr.bf16.mxu0 %v1293
      %1436 = vmatpush1.bf16.msra.mxu0 %v1292
      %1437 = vmatprep.subr.bf16.mxu0 %v1297
      %1438 = vmatpush1.bf16.msra.mxu0 %v1296
      %1439 = vmatprep.subr.bf16.mxu0 %v1301
      %1440 = vmatpush1.bf16.msra.mxu0 %v1300
      %1441 = vmatprep.subr.bf16.mxu0 %v1305
      %1442 = vmatpush1.bf16.msra.mxu0 %v1304
      %1443 = vmatprep.subr.bf16.mxu0 0
      %1444 = vmatpush1.bf16.msra.mxu0 0
      %1445 = vmatprep.subr.bf16.mxu0 0
      %1446 = vmatpush1.bf16.msra.mxu0 0
      %1447 = vmatprep.subr.bf16.mxu0 0
      %1448 = vmatpush1.bf16.msra.mxu0 0
      %1449 = vmatprep.subr.bf16.mxu0 0
      %1450 = vmatpush1.bf16.msra.mxu0 0
      %1451 = vmatprep.mubr.bf16.mxu0 %v1376
      %1452 = vmatmul.mubr.bf16.gmra.mrb[0].mxu0 %v1063
      %v1453 = vpop.f32.mrb[0].mxu0
      %v1454 = vadd.f32 %v1366, %v1453
      %v1455 = vpop.f32.mrb[0].mxu0
      %v1456 = vadd.f32 %v1370, %v1455
      %v1457 = vpop.f32.mrb[0].mxu0
      %v1458 = vpop.f32.mrb[0].mxu0
      %1459 = vdwg.mxu0
      %v1464 = vcombine.low %v1413, %v1415
      %v1465 = vcombine.low %v1454, %v1456
      %v1467 = vunpack.c.l.s4 1966171168
      %v1468 = vunpack.c.0.s8 %v1467
      %v1469 = vlaneseq
      %v1470 = vshrl.u32 %v1469, 7
      %v1471 = vsub.s32 %v1468, %v1470
      %v1472 = vrot.slane %v1464, %v1471
      %v1474 = vunpack.c.l.s4 1966171168
      %v1475 = vunpack.c.0.s8 %v1474
      %v1476 = vlaneseq
      %v1477 = vshrl.u32 %v1476, 7
      %v1478 = vsub.s32 %v1475, %v1477
      %v1479 = vrot.slane %v1465, %v1478
      %v1480 = vcombine.low %v1472, %v1479
      %v1482 = vunpack.c.l.s4 1966171168
      %v1483 = vunpack.c.0.s8 %v1482
      %v1484 = vlaneseq
      %v1485 = vshrl.u32 %v1484, 7
      %v1486 = vsub.s32 %v1483, %v1485
      %v1487 = vrot.slane %v1480, %v1486
      %v1489 = vlaneseq
      %vm1490 = vcmp.ge.s32.totalorder %v1489, 0
      %vm1491 = vcmp.lt.s32.totalorder %v1489, 512
      %vm1492 = vmand %vm1490, %vm1491
      %1493 = vst.msk [vmem:[%s384] sm:$0xf] %vm1492, %v1487
      %p1494 = scmp.lt.s32.totalorder %s22, 1
      %s1495 = scalar_select %p1494, %s22, 1
      %s1496 = smul.addr %s1495, 4
      %s1497 = scalar_lea.vmem %s11, %s1496
      // Predicated region
      $region65: #{efficientnet_forward.5} parent=63 // pred_check
        %p1498 = pneg %p276
      $region66: #{efficientnet_forward.5} parent=63 // pred_check_branch
        %1500 = sbr.rel (%p1498) target = $region68
      $region67: #{efficientnet_forward.5} parent=63 // pred_region
        _
      $region68: #{efficientnet_forward.5} parent=63 // pred_fallthru
        _
    $region64: #{efficientnet_forward.5} parent=5 // pred_fallthru
      _
    %p1501 = scmp.le.s32.totalorder 2, %s17
    // Predicated region
    $region69: #{efficientnet_forward.5} parent=5 // pred_check
      %p1502 = pneg %p1501
    $region70: #{efficientnet_forward.5} parent=5 // pred_check_branch
      %1504 = sbr.rel (%p1502) target = $region72
    $region71: #{efficientnet_forward.5} parent=5 // pred_region
      %s1505 = ssub.s32 %s17, 2
      // Predicated region
      $region73: #{efficientnet_forward.5} parent=71 // pred_check
        %p1506 = pneg %p282
      $region74: #{efficientnet_forward.5} parent=71 // pred_check_branch
        %1508 = sbr.rel (%p1506) target = $region76
      $region75: #{efficientnet_forward.5} parent=71 // pred_region
        %p1509 = scmp.lt.s32.totalorder %s23, 1
        %s1510 = scalar_select %p1509, %s23, 1
        %s1511 = smul.addr %s1510, 4
        %s1512 = scalar_lea.vmem %s11, %s1511
      $region76: #{efficientnet_forward.5} parent=71 // pred_fallthru
        _
    $region72: #{efficientnet_forward.5} parent=5 // pred_fallthru
      _
  $region6: #{efficientnet_forward.5} parent=0 // loop_footer
    %s21 = sadd.s32 1, %s17
  $region7: #{efficientnet_forward.5} parent=0 // loop_footer_branch
    %16 = sbr.rel target = $region3
  $region8: #{efficientnet_forward.5} parent=0 // loop_exit
    _

</llo_original>
